<compile_context>
chip_gen: v6e
topology: v6e:2x2x1
jax: 0.10.0
libtpu: 0.0.40
codegen_flags: <defaults>
</compile_context>

<pallas_src>
import functools

import jax
import jax.numpy as jnp
from jax import lax
from jax.experimental import pallas as pl
from jax.experimental.pallas import tpu as pltpu


GATE_PAD = 128        # per-gate lane padding; all hidden sizes here are <= 128
FULL_UNROLL_T = 16    # fully unroll the wavefront when T <= this


# --------------------------------------------------------------------------
# Kernel
# --------------------------------------------------------------------------
def encoder_kernel(
    x_ref,
    wih1_ref, whh1_ref, b1_ref,
    w2_ref, b2_ref,
    w3_ref, b3_ref,
    out_ref,
    proj_s,
    *, T, Bblk,
):
    GP = GATE_PAD

    # ---- hoisted layer-1 input projection for this shard's T*Bblk rows -----
    # One well-shaped matmul for all timesteps; bias folded in once.  Kept f32
    # so the per-step dynamic row slice stays (8,128)-tile aligned.
    # TODO(synk): for very large T on v7x, chunk this over T (or store bf16)
    # to bound VMEM; per-shard sizing already halves it vs. the old version.
    proj_s[...] = jnp.dot(x_ref[0], wih1_ref[...],
                          preferred_element_type=jnp.float32) + b1_ref[...]

    whh1 = whh1_ref[...]
    w2 = w2_ref[...]
    b2 = b2_ref[...]
    w3 = w3_ref[...]
    b3 = b3_ref[...]

    # Gates are padded/reordered as (i, f, o, g): one contiguous sigmoid slab
    # [0:3*GP) and one tanh slab [3*GP:4*GP) -> fewer EUP pushes per step.
    def gates_to_hc(gates, c):
        sig = jax.nn.sigmoid(gates[:, 0:3 * GP])
        i_g = sig[:, 0 * GP:1 * GP]
        f_g = sig[:, 1 * GP:2 * GP]
        o_g = sig[:, 2 * GP:3 * GP]
        g_g = jnp.tanh(gates[:, 3 * GP:4 * GP])
        c_new = f_g * c + i_g * g_g
        h_new = o_g * jnp.tanh(c_new)
        return h_new, c_new
    # TODO(synk): on v6e/v7x the sigmoid/tanh could run in bf16 (~2x EUP
    # throughput); kept f32 so the same code stays accurate on v5e.

    def l1_step(s, h, c):
        row = pl.multiple_of(s * Bblk, 8)
        gates = proj_s[pl.ds(row, Bblk), :] + jnp.dot(
            h.astype(jnp.bfloat16), whh1, preferred_element_type=jnp.float32)
        return gates_to_hc(gates, c)

    def l23_step(h_in, h, c, w, b):
        # combined [x_t ; h_{t-1}] @ [W_ih ; W_hh]: one K=256 MXU push per step
        inp = jnp.concatenate([h_in, h], axis=1).astype(jnp.bfloat16)
        gates = jnp.dot(inp, w, preferred_element_type=jnp.float32) + b
        return gates_to_hc(gates, c)

    # ---- wavefront over the three layers ------------------------------------
    # Iteration s: layer-1 runs time step s, layer-2 runs s-1, layer-3 runs
    # s-2.  All three read only the incoming carry, so their matmuls and
    # activations are independent and overlap in the pipeline.
    def wf_body(s, carry, do1, do2, do3):
        h1, c1, h2, c2, h3, c3 = carry
        if do1:
            n1 = l1_step(s, h1, c1)
        if do2:
            n2 = l23_step(h1, h2, c2, w2, b2)
        if do3:
            n3 = l23_step(h2, h3, c3, w3, b3)
        if do1:
            h1, c1 = n1
        if do2:
            h2, c2 = n2
        if do3:
            h3, c3 = n3
        return (h1, c1, h2, c2, h3, c3)

    z = jnp.zeros((Bblk, GP), jnp.float32)
    carry = (z, z, z, z, z, z)

    if T <= FULL_UNROLL_T:
        # fully unrolled wavefront (T + 2 iterations)
        for s in range(T + 2):
            carry = wf_body(s, carry, s < T, 1 <= s <= T, 2 <= s)
    else:
        # prologue / bounded-unroll steady state / epilogue
        for s in (0, 1):
            carry = wf_body(s, carry, s < T, 1 <= s <= T, 2 <= s)
        carry = lax.fori_loop(
            2, T, lambda s, c: wf_body(s, c, True, True, True), carry, unroll=8)
        for s in (T, T + 1):
            carry = wf_body(s, carry, s < T, 1 <= s <= T, 2 <= s)

    # lane-dense (Bblk, 128) store (unmasked vst); wrapper slices [:, :H3]
    out_ref[...] = carry[4]


# --------------------------------------------------------------------------
# Wrapper
# --------------------------------------------------------------------------
def _round_up(n, m):
    return ((n + m - 1) // m) * m


# PyTorch gate order (i, f, g, o) -> padded 128-lane blocks in (i, f, o, g)
_GATE_ORDER = (0, 1, 3, 2)


def _pad_gates(w, rows_pad, dtype):
    """(d_in, 4H) -> (rows_pad, 4*GATE_PAD): each gate in its own 128-lane
    block, blocks ordered (i, f, o, g); zero rows/lanes beyond the real sizes."""
    GP = GATE_PAD
    d_in, four_h = w.shape
    H = four_h // 4
    out = jnp.zeros((rows_pad, 4 * GP), jnp.float32)
    for pg, blk in enumerate(_GATE_ORDER):
        out = out.at[:d_in, blk * GP:blk * GP + H].set(w[:, pg * H:(pg + 1) * H])
    return out.astype(dtype)


def encoder_forward(x, params, *, size_latent_space, batch_shards=1, eps=1e-5):
    """Pallas forward pass.

    batch_shards=2 shards the batch (and all per-shard work/scratch) across
    TensorCores — use on v7x; keep the default of 1 on v5e/v6e (1 TC/chip).
    """
    B, T, E = x.shape
    L = size_latent_space
    H1, H2, H3 = 3 * L, 2 * L, L
    GP = GATE_PAD
    assert max(H1, H2, H3) <= GP  # TODO(synk): tile gate blocks for hidden > 128

    (gamma, beta,
     wih1, whh1, b1,
     wih2, whh2, b2,
     wih3, whh3, b3) = params

    # ---- BatchNorm1d(T) (training-mode batch stats) + time-major transpose
    #      live in the wrapper: E=32 lanes would run at 1/4 lane utilisation
    #      inside the serial kernel, and a bf16 input halves the x DMA. -------
    xf = x.astype(jnp.float32)
    mean = jnp.mean(xf, axis=(0, 2), keepdims=True)
    var = jnp.mean(jnp.square(xf - mean), axis=(0, 2), keepdims=True)
    xn = (xf - mean) * lax.rsqrt(var + eps)
    xn = (xn * gamma.astype(jnp.float32).reshape(1, T, 1)
          + beta.astype(jnp.float32).reshape(1, T, 1))

    # per-shard, time-major bf16 input: (batch_shards, T*Bblk, E)
    Bblk = _round_up(-(-B // batch_shards), 8)
    BP = Bblk * batch_shards
    x_p = jnp.zeros((BP, T, E), jnp.float32).at[:B].set(xn)
    x_tm = (x_p.reshape(batch_shards, Bblk, T, E)
                .transpose(0, 2, 1, 3)
                .reshape(batch_shards, T * Bblk, E)
                .astype(jnp.bfloat16))

    # ---- weights: 128-lane-padded gate blocks in (i, f, o, g) order ---------
    wih1_p = _pad_gates(wih1, E, jnp.bfloat16)
    whh1_p = _pad_gates(whh1, GP, jnp.bfloat16)
    b1_p = _pad_gates(b1, 1, jnp.float32)
    # layers 2/3: stacked [W_ih ; W_hh] so the per-step projection is a single
    # [h_in ; h] @ W matmul inside the wavefront.
    w2_p = jnp.concatenate([_pad_gates(wih2, GP, jnp.bfloat16),
                            _pad_gates(whh2, GP, jnp.bfloat16)], axis=0)
    b2_p = _pad_gates(b2, 1, jnp.float32)
    w3_p = jnp.concatenate([_pad_gates(wih3, GP, jnp.bfloat16),
                            _pad_gates(whh3, GP, jnp.bfloat16)], axis=0)
    b3_p = _pad_gates(b3, 1, jnp.float32)

    args = (x_tm, wih1_p, whh1_p, b1_p, w2_p, b2_p, w3_p, b3_p)

    def replicated(a):
        zero = (0,) * a.ndim
        return pl.BlockSpec(a.shape, lambda i, _z=zero: _z)
    # TODO(synk): pipeline_mode=pl.Buffered(1) on the replicated weight specs
    # would drop their pointless double-buffering under v7x's 64 MiB VMEM.

    in_specs = ([pl.BlockSpec((1, T * Bblk, E), lambda i: (i, 0, 0))]
                + [replicated(a) for a in args[1:]])
    out_spec = pl.BlockSpec((Bblk, GP), lambda i: (i, 0))

    scratch_shapes = [pltpu.VMEM((T * Bblk, 4 * GP), jnp.float32)]

    io_bytes = sum(a.size * a.dtype.itemsize for a in args) + BP * GP * 4
    scratch_bytes = T * Bblk * 4 * GP * 4
    vmem_limit = int(min(64 << 20,
                         max(16 << 20, 2 * (io_bytes + scratch_bytes) + (4 << 20))))

    mm_flops = (2 * T * BP * 4 * GP * E            # layer-1 hoisted projection
                + 2 * T * BP * 4 * GP * GP         # layer-1 recurrence
                + 2 * 2 * T * BP * 4 * GP * 2 * GP)  # layers 2/3 combined matmuls
    cost = pl.CostEstimate(flops=int(mm_flops),
                           transcendentals=int(3 * T * BP * 5 * GP),
                           bytes_accessed=int(io_bytes))

    kernel = functools.partial(encoder_kernel, T=T, Bblk=Bblk)

    out = pl.pallas_call(
        kernel,
        out_shape=jax.ShapeDtypeStruct((BP, GP), jnp.float32),
        grid_spec=pltpu.PrefetchScalarGridSpec(
            num_scalar_prefetch=0,
            grid=(batch_shards,),
            in_specs=in_specs,
            out_specs=out_spec,
            scratch_shapes=scratch_shapes),
        compiler_params=pltpu.CompilerParams(
            dimension_semantics=("parallel",),
            vmem_limit_bytes=vmem_limit),
        cost_estimate=cost,
    )(*args)
    return out[:B, :H3]


# --------------------------------------------------------------------------
# Pure-JAX reference (for verification)
# --------------------------------------------------------------------------
def encoder_reference(x, params):
    (gamma, beta,
     wih1, whh1, b1,
     wih2, whh2, b2,
     wih3, whh3, b3) = params
    T = x.shape[1]
    g = gamma.reshape(1, T, 1)
    bt = beta.reshape(1, T, 1)
    mean = jnp.mean(x, axis=(0, 2), keepdims=True)
    var = jnp.mean((x - mean) ** 2, axis=(0, 2), keepdims=True)
    seq = (x - mean) / jnp.sqrt(var + 1e-5) * g + bt

    h_T = None
    for wih, whh, b in ((wih1, whh1, b1), (wih2, whh2, b2), (wih3, whh3, b3)):
        H = whh.shape[0]
        Bsz = seq.shape[0]

        def step(carry, x_t, wih=wih, whh=whh, b=b, H=H):
            h, c = carry
            gates = x_t @ wih + h @ whh + b
            i_g = jax.nn.sigmoid(gates[:, 0:H])
            f_g = jax.nn.sigmoid(gates[:, H:2 * H])
            g_g = jnp.tanh(gates[:, 2 * H:3 * H])
            o_g = jax.nn.sigmoid(gates[:, 3 * H:4 * H])
            c = f_g * c + i_g * g_g
            h = o_g * jnp.tanh(c)
            return (h, c), h

        init = (jnp.zeros((Bsz, H), jnp.float32), jnp.zeros((Bsz, H), jnp.float32))
        (h_T, _), ys = lax.scan(step, init, jnp.transpose(seq, (1, 0, 2)))
        seq = jnp.transpose(ys, (1, 0, 2))
    return h_T


# --------------------------------------------------------------------------
# Deterministic parameter init (PyTorch-style uniform(-1/sqrt(H), 1/sqrt(H)))
# --------------------------------------------------------------------------
def init_params(key, T, E, L):
    H1, H2, H3 = 3 * L, 2 * L, L

    def lstm_params(key, d_in, h):
        k = 1.0 / jnp.sqrt(jnp.float32(h))
        k1, k2, k3, k4 = jax.random.split(key, 4)
        wih = jax.random.uniform(k1, (d_in, 4 * h), jnp.float32, -k, k)
        whh = jax.random.uniform(k2, (h, 4 * h), jnp.float32, -k, k)
        b = (jax.random.uniform(k3, (1, 4 * h), jnp.float32, -k, k)
             + jax.random.uniform(k4, (1, 4 * h), jnp.float32, -k, k))
        return wih, whh, b

    k1, k2, k3 = jax.random.split(key, 3)
    gamma = jnp.ones((T,), jnp.float32)    # BatchNorm1d default weight
    beta = jnp.zeros((T,), jnp.float32)    # BatchNorm1d default bias
    wih1, whh1, b1 = lstm_params(k1, E, H1)
    wih2, whh2, b2 = lstm_params(k2, H1, H2)
    wih3, whh3, b3 = lstm_params(k3, H2, H3)
    return (gamma, beta, wih1, whh1, b1, wih2, whh2, b2, wih3, whh3, b3)


# --------------------------------------------------------------------------
if __name__ == "__main__":
    B = 2      # batch
    T = 8      # number_of_tokens_per_datapoint (seq length, batch_first)
    E = 32     # size_of_embeddings
    L = 16     # size_latent_space

    key = jax.random.PRNGKey(0)
    k_x, k_p = jax.random.split(key)
    x = jax.random.normal(k_x, (B, T, E), jnp.float32)
    params = init_params(k_p, T, E, L)

    ref = encoder_reference(x, params)

    # default single-program path (v5e / v6e)
    out = jax.block_until_ready(encoder_forward(x, params, size_latent_space=L))
    assert out.shape == (B, L), out.shape
    err = float(jnp.max(jnp.abs(out - ref)))
    # bf16 MXU operands with f32 accumulation / f32 state vs. pure-f32 reference
    assert jnp.allclose(out, ref, atol=2.5e-2, rtol=2.5e-2), f"max abs diff {err}"

    # batch-sharded grid path (both TensorCores on v7x; still correct on 1-TC chips)
    out2 = jax.block_until_ready(
        encoder_forward(x, params, size_latent_space=L, batch_shards=2))
    assert out2.shape == (B, L), out2.shape
    err2 = float(jnp.max(jnp.abs(out2 - ref)))
    assert jnp.allclose(out2, ref, atol=2.5e-2, rtol=2.5e-2), f"max abs diff {err2}"

    print("KERNEL_OK")
</pallas_src>

<mosaic_0001>
module attributes {stable_mosaic.version = 11 : i64} {
  func.func @encoder_kernel(%arg0: i32, %arg1: memref<1x64x32xbf16, #tpu.memory_space<vmem>>, %arg2: memref<32x512xbf16, #tpu.memory_space<vmem>>, %arg3: memref<128x512xbf16, #tpu.memory_space<vmem>>, %arg4: memref<1x512xf32, #tpu.memory_space<vmem>>, %arg5: memref<256x512xbf16, #tpu.memory_space<vmem>>, %arg6: memref<1x512xf32, #tpu.memory_space<vmem>>, %arg7: memref<256x512xbf16, #tpu.memory_space<vmem>>, %arg8: memref<1x512xf32, #tpu.memory_space<vmem>>, %arg9: memref<8x128xf32, #tpu.memory_space<vmem>>, %arg10: memref<64x512xf32, #tpu.memory_space<vmem>>) attributes {dimension_semantics = [#tpu.dimension_semantics<parallel>], iteration_bounds = array<i64: 1>, scalar_prefetch = 0 : i64, scratch_operands = 1 : i64, tpu.core_type = #tpu.core_type<tc>, window_params = [{transform_indices = @transform_0, window_bounds = array<i64: 1, 64, 32>}, {pipeline_mode = #tpu.pipeline_mode<synchronous>, transform_indices = @transform_1, window_bounds = array<i64: 32, 512>}, {pipeline_mode = #tpu.pipeline_mode<synchronous>, transform_indices = @transform_2, window_bounds = array<i64: 128, 512>}, {pipeline_mode = #tpu.pipeline_mode<synchronous>, transform_indices = @transform_3, window_bounds = array<i64: 1, 512>}, {pipeline_mode = #tpu.pipeline_mode<synchronous>, transform_indices = @transform_4, window_bounds = array<i64: 256, 512>}, {pipeline_mode = #tpu.pipeline_mode<synchronous>, transform_indices = @transform_5, window_bounds = array<i64: 1, 512>}, {pipeline_mode = #tpu.pipeline_mode<synchronous>, transform_indices = @transform_6, window_bounds = array<i64: 256, 512>}, {pipeline_mode = #tpu.pipeline_mode<synchronous>, transform_indices = @transform_7, window_bounds = array<i64: 1, 512>}, {transform_indices = @transform_8, window_bounds = array<i64: 8, 128>}]} {
    %c0 = arith.constant 0 : index
    %c0_0 = arith.constant 0 : index
    %c0_1 = arith.constant 0 : index
    %0 = vector.load %arg1[%c0, %c0_0, %c0_1] : memref<1x64x32xbf16, #tpu.memory_space<vmem>>, vector<1x64x32xbf16>
    %1 = vector.shape_cast %0 : vector<1x64x32xbf16> to vector<64x32xbf16>
    %c0_2 = arith.constant 0 : index
    %c0_3 = arith.constant 0 : index
    %2 = vector.load %arg2[%c0_2, %c0_3] : memref<32x512xbf16, #tpu.memory_space<vmem>>, vector<32x512xbf16>
    %cst = arith.constant dense<0.000000e+00> : vector<64x512xf32>
    %3 = tpu.matmul %1, %2, %cst {dimension_numbers = #tpu.dot_dimension_numbers<[1], [0], [0], [1], [0, 0, 1, 1], [], []>} : vector<64x32xbf16>, vector<32x512xbf16>, vector<64x512xf32> -> vector<64x512xf32>
    %c0_4 = arith.constant 0 : index
    %c0_5 = arith.constant 0 : index
    %4 = vector.load %arg4[%c0_4, %c0_5] : memref<1x512xf32, #tpu.memory_space<vmem>>, vector<1x512xf32>
    %5 = vector.broadcast %4 : vector<1x512xf32> to vector<64x512xf32>
    %6 = arith.addf %3, %5 : vector<64x512xf32>
    %c0_6 = arith.constant 0 : index
    %c0_7 = arith.constant 0 : index
    %7 = vector.load %arg10[%c0_6, %c0_7] : memref<64x512xf32, #tpu.memory_space<vmem>>, vector<64x512xf32>
    tpu.vector_store %arg10[%c0_6, %c0_7], %6 {strides = array<i32>} : memref<64x512xf32, #tpu.memory_space<vmem>>, vector<64x512xf32>,
    %c0_8 = arith.constant 0 : index
    %c0_9 = arith.constant 0 : index
    %8 = vector.load %arg3[%c0_8, %c0_9] : memref<128x512xbf16, #tpu.memory_space<vmem>>, vector<128x512xbf16>
    %c0_10 = arith.constant 0 : index
    %c0_11 = arith.constant 0 : index
    %9 = vector.load %arg5[%c0_10, %c0_11] : memref<256x512xbf16, #tpu.memory_space<vmem>>, vector<256x512xbf16>
    %c0_12 = arith.constant 0 : index
    %c0_13 = arith.constant 0 : index
    %10 = vector.load %arg6[%c0_12, %c0_13] : memref<1x512xf32, #tpu.memory_space<vmem>>, vector<1x512xf32>
    %c0_14 = arith.constant 0 : index
    %c0_15 = arith.constant 0 : index
    %11 = vector.load %arg7[%c0_14, %c0_15] : memref<256x512xbf16, #tpu.memory_space<vmem>>, vector<256x512xbf16>
    %c0_16 = arith.constant 0 : index
    %c0_17 = arith.constant 0 : index
    %12 = vector.load %arg8[%c0_16, %c0_17] : memref<1x512xf32, #tpu.memory_space<vmem>>, vector<1x512xf32>
    %cst_18 = arith.constant 0.000000e+00 : f32
    %13 = vector.broadcast %cst_18 : f32 to vector<8x128xf32>
    %c0_i32 = arith.constant 0 : i32
    %14 = tpu.assume_multiple %c0_i32, 8 : i32
    %15 = arith.index_cast %14 : i32 to index
    %c0_19 = arith.constant 0 : index
    %16 = vector.load %arg10[%15, %c0_19] : memref<64x512xf32, #tpu.memory_space<vmem>>, vector<8x512xf32>
    %17 = arith.truncf %13 : vector<8x128xf32> to vector<8x128xbf16>
    %cst_20 = arith.constant dense<0.000000e+00> : vector<8x512xf32>
    %18 = tpu.matmul %17, %8, %cst_20 {dimension_numbers = #tpu.dot_dimension_numbers<[1], [0], [0], [1], [0, 0, 1, 1], [], []>} : vector<8x128xbf16>, vector<128x512xbf16>, vector<8x512xf32> -> vector<8x512xf32>
    %19 = arith.addf %16, %18 : vector<8x512xf32>
    %20 = vector.extract_strided_slice %19 {offsets = [0, 0], sizes = [8, 384], strides = [1, 1]} : vector<8x512xf32> to vector<8x384xf32>
    %21 = arith.negf %20 : vector<8x384xf32>
    %22 = math.exp %21 : vector<8x384xf32>
    %cst_21 = arith.constant 1.000000e+00 : f32
    %23 = vector.broadcast %cst_21 : f32 to vector<8x384xf32>
    %24 = arith.addf %23, %22 : vector<8x384xf32>
    %25 = arith.divf %23, %24 : vector<8x384xf32>
    %26 = vector.extract_strided_slice %25 {offsets = [0, 0], sizes = [8, 128], strides = [1, 1]} : vector<8x384xf32> to vector<8x128xf32>
    %27 = vector.extract_strided_slice %25 {offsets = [0, 128], sizes = [8, 128], strides = [1, 1]} : vector<8x384xf32> to vector<8x128xf32>
    %28 = vector.extract_strided_slice %25 {offsets = [0, 256], sizes = [8, 128], strides = [1, 1]} : vector<8x384xf32> to vector<8x128xf32>
    %29 = vector.extract_strided_slice %19 {offsets = [0, 384], sizes = [8, 128], strides = [1, 1]} : vector<8x512xf32> to vector<8x128xf32>
    %30 = math.tanh %29 : vector<8x128xf32>
    %31 = arith.mulf %27, %13 : vector<8x128xf32>
    %32 = arith.mulf %26, %30 : vector<8x128xf32>
    %33 = arith.addf %31, %32 : vector<8x128xf32>
    %34 = math.tanh %33 : vector<8x128xf32>
    %35 = arith.mulf %28, %34 : vector<8x128xf32>
    %c8_i32 = arith.constant 8 : i32
    %36 = tpu.assume_multiple %c8_i32, 8 : i32
    %37 = arith.index_cast %36 : i32 to index
    %c0_22 = arith.constant 0 : index
    %38 = vector.load %arg10[%37, %c0_22] : memref<64x512xf32, #tpu.memory_space<vmem>>, vector<8x512xf32>
    %39 = arith.truncf %35 : vector<8x128xf32> to vector<8x128xbf16>
    %cst_23 = arith.constant dense<0.000000e+00> : vector<8x512xf32>
    %40 = tpu.matmul %39, %8, %cst_23 {dimension_numbers = #tpu.dot_dimension_numbers<[1], [0], [0], [1], [0, 0, 1, 1], [], []>} : vector<8x128xbf16>, vector<128x512xbf16>, vector<8x512xf32> -> vector<8x512xf32>
    %41 = arith.addf %38, %40 : vector<8x512xf32>
    %42 = vector.extract_strided_slice %41 {offsets = [0, 0], sizes = [8, 384], strides = [1, 1]} : vector<8x512xf32> to vector<8x384xf32>
    %43 = arith.negf %42 : vector<8x384xf32>
    %44 = math.exp %43 : vector<8x384xf32>
    %cst_24 = arith.constant 1.000000e+00 : f32
    %45 = vector.broadcast %cst_24 : f32 to vector<8x384xf32>
    %46 = arith.addf %45, %44 : vector<8x384xf32>
    %47 = arith.divf %45, %46 : vector<8x384xf32>
    %48 = vector.extract_strided_slice %47 {offsets = [0, 0], sizes = [8, 128], strides = [1, 1]} : vector<8x384xf32> to vector<8x128xf32>
    %49 = vector.extract_strided_slice %47 {offsets = [0, 128], sizes = [8, 128], strides = [1, 1]} : vector<8x384xf32> to vector<8x128xf32>
    %50 = vector.extract_strided_slice %47 {offsets = [0, 256], sizes = [8, 128], strides = [1, 1]} : vector<8x384xf32> to vector<8x128xf32>
    %51 = vector.extract_strided_slice %41 {offsets = [0, 384], sizes = [8, 128], strides = [1, 1]} : vector<8x512xf32> to vector<8x128xf32>
    %52 = math.tanh %51 : vector<8x128xf32>
    %53 = arith.mulf %49, %33 : vector<8x128xf32>
    %54 = arith.mulf %48, %52 : vector<8x128xf32>
    %55 = arith.addf %53, %54 : vector<8x128xf32>
    %56 = math.tanh %55 : vector<8x128xf32>
    %57 = arith.mulf %50, %56 : vector<8x128xf32>
    %58 = tpu.concatenate %35, %13 in 1 : vector<8x128xf32>, vector<8x128xf32> -> vector<8x256xf32>
    %59 = arith.truncf %58 : vector<8x256xf32> to vector<8x256xbf16>
    %cst_25 = arith.constant dense<0.000000e+00> : vector<8x512xf32>
    %60 = tpu.matmul %59, %9, %cst_25 {dimension_numbers = #tpu.dot_dimension_numbers<[1], [0], [0], [1], [0, 0, 1, 1], [], []>} : vector<8x256xbf16>, vector<256x512xbf16>, vector<8x512xf32> -> vector<8x512xf32>
    %61 = vector.broadcast %10 : vector<1x512xf32> to vector<8x512xf32>
    %62 = arith.addf %60, %61 : vector<8x512xf32>
    %63 = vector.extract_strided_slice %62 {offsets = [0, 0], sizes = [8, 384], strides = [1, 1]} : vector<8x512xf32> to vector<8x384xf32>
    %64 = arith.negf %63 : vector<8x384xf32>
    %65 = math.exp %64 : vector<8x384xf32>
    %cst_26 = arith.constant 1.000000e+00 : f32
    %66 = vector.broadcast %cst_26 : f32 to vector<8x384xf32>
    %67 = arith.addf %66, %65 : vector<8x384xf32>
    %68 = arith.divf %66, %67 : vector<8x384xf32>
    %69 = vector.extract_strided_slice %68 {offsets = [0, 0], sizes = [8, 128], strides = [1, 1]} : vector<8x384xf32> to vector<8x128xf32>
    %70 = vector.extract_strided_slice %68 {offsets = [0, 128], sizes = [8, 128], strides = [1, 1]} : vector<8x384xf32> to vector<8x128xf32>
    %71 = vector.extract_strided_slice %68 {offsets = [0, 256], sizes = [8, 128], strides = [1, 1]} : vector<8x384xf32> to vector<8x128xf32>
    %72 = vector.extract_strided_slice %62 {offsets = [0, 384], sizes = [8, 128], strides = [1, 1]} : vector<8x512xf32> to vector<8x128xf32>
    %73 = math.tanh %72 : vector<8x128xf32>
    %74 = arith.mulf %70, %13 : vector<8x128xf32>
    %75 = arith.mulf %69, %73 : vector<8x128xf32>
    %76 = arith.addf %74, %75 : vector<8x128xf32>
    %77 = math.tanh %76 : vector<8x128xf32>
    %78 = arith.mulf %71, %77 : vector<8x128xf32>
    %c16_i32 = arith.constant 16 : i32
    %79 = tpu.assume_multiple %c16_i32, 8 : i32
    %80 = arith.index_cast %79 : i32 to index
    %c0_27 = arith.constant 0 : index
    %81 = vector.load %arg10[%80, %c0_27] : memref<64x512xf32, #tpu.memory_space<vmem>>, vector<8x512xf32>
    %82 = arith.truncf %57 : vector<8x128xf32> to vector<8x128xbf16>
    %cst_28 = arith.constant dense<0.000000e+00> : vector<8x512xf32>
    %83 = tpu.matmul %82, %8, %cst_28 {dimension_numbers = #tpu.dot_dimension_numbers<[1], [0], [0], [1], [0, 0, 1, 1], [], []>} : vector<8x128xbf16>, vector<128x512xbf16>, vector<8x512xf32> -> vector<8x512xf32>
    %84 = arith.addf %81, %83 : vector<8x512xf32>
    %85 = vector.extract_strided_slice %84 {offsets = [0, 0], sizes = [8, 384], strides = [1, 1]} : vector<8x512xf32> to vector<8x384xf32>
    %86 = arith.negf %85 : vector<8x384xf32>
    %87 = math.exp %86 : vector<8x384xf32>
    %cst_29 = arith.constant 1.000000e+00 : f32
    %88 = vector.broadcast %cst_29 : f32 to vector<8x384xf32>
    %89 = arith.addf %88, %87 : vector<8x384xf32>
    %90 = arith.divf %88, %89 : vector<8x384xf32>
    %91 = vector.extract_strided_slice %90 {offsets = [0, 0], sizes = [8, 128], strides = [1, 1]} : vector<8x384xf32> to vector<8x128xf32>
    %92 = vector.extract_strided_slice %90 {offsets = [0, 128], sizes = [8, 128], strides = [1, 1]} : vector<8x384xf32> to vector<8x128xf32>
    %93 = vector.extract_strided_slice %90 {offsets = [0, 256], sizes = [8, 128], strides = [1, 1]} : vector<8x384xf32> to vector<8x128xf32>
    %94 = vector.extract_strided_slice %84 {offsets = [0, 384], sizes = [8, 128], strides = [1, 1]} : vector<8x512xf32> to vector<8x128xf32>
    %95 = math.tanh %94 : vector<8x128xf32>
    %96 = arith.mulf %92, %55 : vector<8x128xf32>
    %97 = arith.mulf %91, %95 : vector<8x128xf32>
    %98 = arith.addf %96, %97 : vector<8x128xf32>
    %99 = math.tanh %98 : vector<8x128xf32>
    %100 = arith.mulf %93, %99 : vector<8x128xf32>
    %101 = tpu.concatenate %57, %78 in 1 : vector<8x128xf32>, vector<8x128xf32> -> vector<8x256xf32>
    %102 = arith.truncf %101 : vector<8x256xf32> to vector<8x256xbf16>
    %cst_30 = arith.constant dense<0.000000e+00> : vector<8x512xf32>
    %103 = tpu.matmul %102, %9, %cst_30 {dimension_numbers = #tpu.dot_dimension_numbers<[1], [0], [0], [1], [0, 0, 1, 1], [], []>} : vector<8x256xbf16>, vector<256x512xbf16>, vector<8x512xf32> -> vector<8x512xf32>
    %104 = vector.broadcast %10 : vector<1x512xf32> to vector<8x512xf32>
    %105 = arith.addf %103, %104 : vector<8x512xf32>
    %106 = vector.extract_strided_slice %105 {offsets = [0, 0], sizes = [8, 384], strides = [1, 1]} : vector<8x512xf32> to vector<8x384xf32>
    %107 = arith.negf %106 : vector<8x384xf32>
    %108 = math.exp %107 : vector<8x384xf32>
    %cst_31 = arith.constant 1.000000e+00 : f32
    %109 = vector.broadcast %cst_31 : f32 to vector<8x384xf32>
    %110 = arith.addf %109, %108 : vector<8x384xf32>
    %111 = arith.divf %109, %110 : vector<8x384xf32>
    %112 = vector.extract_strided_slice %111 {offsets = [0, 0], sizes = [8, 128], strides = [1, 1]} : vector<8x384xf32> to vector<8x128xf32>
    %113 = vector.extract_strided_slice %111 {offsets = [0, 128], sizes = [8, 128], strides = [1, 1]} : vector<8x384xf32> to vector<8x128xf32>
    %114 = vector.extract_strided_slice %111 {offsets = [0, 256], sizes = [8, 128], strides = [1, 1]} : vector<8x384xf32> to vector<8x128xf32>
    %115 = vector.extract_strided_slice %105 {offsets = [0, 384], sizes = [8, 128], strides = [1, 1]} : vector<8x512xf32> to vector<8x128xf32>
    %116 = math.tanh %115 : vector<8x128xf32>
    %117 = arith.mulf %113, %76 : vector<8x128xf32>
    %118 = arith.mulf %112, %116 : vector<8x128xf32>
    %119 = arith.addf %117, %118 : vector<8x128xf32>
    %120 = math.tanh %119 : vector<8x128xf32>
    %121 = arith.mulf %114, %120 : vector<8x128xf32>
    %122 = tpu.concatenate %78, %13 in 1 : vector<8x128xf32>, vector<8x128xf32> -> vector<8x256xf32>
    %123 = arith.truncf %122 : vector<8x256xf32> to vector<8x256xbf16>
    %cst_32 = arith.constant dense<0.000000e+00> : vector<8x512xf32>
    %124 = tpu.matmul %123, %11, %cst_32 {dimension_numbers = #tpu.dot_dimension_numbers<[1], [0], [0], [1], [0, 0, 1, 1], [], []>} : vector<8x256xbf16>, vector<256x512xbf16>, vector<8x512xf32> -> vector<8x512xf32>
    %125 = vector.broadcast %12 : vector<1x512xf32> to vector<8x512xf32>
    %126 = arith.addf %124, %125 : vector<8x512xf32>
    %127 = vector.extract_strided_slice %126 {offsets = [0, 0], sizes = [8, 384], strides = [1, 1]} : vector<8x512xf32> to vector<8x384xf32>
    %128 = arith.negf %127 : vector<8x384xf32>
    %129 = math.exp %128 : vector<8x384xf32>
    %cst_33 = arith.constant 1.000000e+00 : f32
    %130 = vector.broadcast %cst_33 : f32 to vector<8x384xf32>
    %131 = arith.addf %130, %129 : vector<8x384xf32>
    %132 = arith.divf %130, %131 : vector<8x384xf32>
    %133 = vector.extract_strided_slice %132 {offsets = [0, 0], sizes = [8, 128], strides = [1, 1]} : vector<8x384xf32> to vector<8x128xf32>
    %134 = vector.extract_strided_slice %132 {offsets = [0, 128], sizes = [8, 128], strides = [1, 1]} : vector<8x384xf32> to vector<8x128xf32>
    %135 = vector.extract_strided_slice %132 {offsets = [0, 256], sizes = [8, 128], strides = [1, 1]} : vector<8x384xf32> to vector<8x128xf32>
    %136 = vector.extract_strided_slice %126 {offsets = [0, 384], sizes = [8, 128], strides = [1, 1]} : vector<8x512xf32> to vector<8x128xf32>
    %137 = math.tanh %136 : vector<8x128xf32>
    %138 = arith.mulf %134, %13 : vector<8x128xf32>
    %139 = arith.mulf %133, %137 : vector<8x128xf32>
    %140 = arith.addf %138, %139 : vector<8x128xf32>
    %141 = math.tanh %140 : vector<8x128xf32>
    %142 = arith.mulf %135, %141 : vector<8x128xf32>
    %c24_i32 = arith.constant 24 : i32
    %143 = tpu.assume_multiple %c24_i32, 8 : i32
    %144 = arith.index_cast %143 : i32 to index
    %c0_34 = arith.constant 0 : index
    %145 = vector.load %arg10[%144, %c0_34] : memref<64x512xf32, #tpu.memory_space<vmem>>, vector<8x512xf32>
    %146 = arith.truncf %100 : vector<8x128xf32> to vector<8x128xbf16>
    %cst_35 = arith.constant dense<0.000000e+00> : vector<8x512xf32>
    %147 = tpu.matmul %146, %8, %cst_35 {dimension_numbers = #tpu.dot_dimension_numbers<[1], [0], [0], [1], [0, 0, 1, 1], [], []>} : vector<8x128xbf16>, vector<128x512xbf16>, vector<8x512xf32> -> vector<8x512xf32>
    %148 = arith.addf %145, %147 : vector<8x512xf32>
    %149 = vector.extract_strided_slice %148 {offsets = [0, 0], sizes = [8, 384], strides = [1, 1]} : vector<8x512xf32> to vector<8x384xf32>
    %150 = arith.negf %149 : vector<8x384xf32>
    %151 = math.exp %150 : vector<8x384xf32>
    %cst_36 = arith.constant 1.000000e+00 : f32
    %152 = vector.broadcast %cst_36 : f32 to vector<8x384xf32>
    %153 = arith.addf %152, %151 : vector<8x384xf32>
    %154 = arith.divf %152, %153 : vector<8x384xf32>
    %155 = vector.extract_strided_slice %154 {offsets = [0, 0], sizes = [8, 128], strides = [1, 1]} : vector<8x384xf32> to vector<8x128xf32>
    %156 = vector.extract_strided_slice %154 {offsets = [0, 128], sizes = [8, 128], strides = [1, 1]} : vector<8x384xf32> to vector<8x128xf32>
    %157 = vector.extract_strided_slice %154 {offsets = [0, 256], sizes = [8, 128], strides = [1, 1]} : vector<8x384xf32> to vector<8x128xf32>
    %158 = vector.extract_strided_slice %148 {offsets = [0, 384], sizes = [8, 128], strides = [1, 1]} : vector<8x512xf32> to vector<8x128xf32>
    %159 = math.tanh %158 : vector<8x128xf32>
    %160 = arith.mulf %156, %98 : vector<8x128xf32>
    %161 = arith.mulf %155, %159 : vector<8x128xf32>
    %162 = arith.addf %160, %161 : vector<8x128xf32>
    %163 = math.tanh %162 : vector<8x128xf32>
    %164 = arith.mulf %157, %163 : vector<8x128xf32>
    %165 = tpu.concatenate %100, %121 in 1 : vector<8x128xf32>, vector<8x128xf32> -> vector<8x256xf32>
    %166 = arith.truncf %165 : vector<8x256xf32> to vector<8x256xbf16>
    %cst_37 = arith.constant dense<0.000000e+00> : vector<8x512xf32>
    %167 = tpu.matmul %166, %9, %cst_37 {dimension_numbers = #tpu.dot_dimension_numbers<[1], [0], [0], [1], [0, 0, 1, 1], [], []>} : vector<8x256xbf16>, vector<256x512xbf16>, vector<8x512xf32> -> vector<8x512xf32>
    %168 = vector.broadcast %10 : vector<1x512xf32> to vector<8x512xf32>
    %169 = arith.addf %167, %168 : vector<8x512xf32>
    %170 = vector.extract_strided_slice %169 {offsets = [0, 0], sizes = [8, 384], strides = [1, 1]} : vector<8x512xf32> to vector<8x384xf32>
    %171 = arith.negf %170 : vector<8x384xf32>
    %172 = math.exp %171 : vector<8x384xf32>
    %cst_38 = arith.constant 1.000000e+00 : f32
    %173 = vector.broadcast %cst_38 : f32 to vector<8x384xf32>
    %174 = arith.addf %173, %172 : vector<8x384xf32>
    %175 = arith.divf %173, %174 : vector<8x384xf32>
    %176 = vector.extract_strided_slice %175 {offsets = [0, 0], sizes = [8, 128], strides = [1, 1]} : vector<8x384xf32> to vector<8x128xf32>
    %177 = vector.extract_strided_slice %175 {offsets = [0, 128], sizes = [8, 128], strides = [1, 1]} : vector<8x384xf32> to vector<8x128xf32>
    %178 = vector.extract_strided_slice %175 {offsets = [0, 256], sizes = [8, 128], strides = [1, 1]} : vector<8x384xf32> to vector<8x128xf32>
    %179 = vector.extract_strided_slice %169 {offsets = [0, 384], sizes = [8, 128], strides = [1, 1]} : vector<8x512xf32> to vector<8x128xf32>
    %180 = math.tanh %179 : vector<8x128xf32>
    %181 = arith.mulf %177, %119 : vector<8x128xf32>
    %182 = arith.mulf %176, %180 : vector<8x128xf32>
    %183 = arith.addf %181, %182 : vector<8x128xf32>
    %184 = math.tanh %183 : vector<8x128xf32>
    %185 = arith.mulf %178, %184 : vector<8x128xf32>
    %186 = tpu.concatenate %121, %142 in 1 : vector<8x128xf32>, vector<8x128xf32> -> vector<8x256xf32>
    %187 = arith.truncf %186 : vector<8x256xf32> to vector<8x256xbf16>
    %cst_39 = arith.constant dense<0.000000e+00> : vector<8x512xf32>
    %188 = tpu.matmul %187, %11, %cst_39 {dimension_numbers = #tpu.dot_dimension_numbers<[1], [0], [0], [1], [0, 0, 1, 1], [], []>} : vector<8x256xbf16>, vector<256x512xbf16>, vector<8x512xf32> -> vector<8x512xf32>
    %189 = vector.broadcast %12 : vector<1x512xf32> to vector<8x512xf32>
    %190 = arith.addf %188, %189 : vector<8x512xf32>
    %191 = vector.extract_strided_slice %190 {offsets = [0, 0], sizes = [8, 384], strides = [1, 1]} : vector<8x512xf32> to vector<8x384xf32>
    %192 = arith.negf %191 : vector<8x384xf32>
    %193 = math.exp %192 : vector<8x384xf32>
    %cst_40 = arith.constant 1.000000e+00 : f32
    %194 = vector.broadcast %cst_40 : f32 to vector<8x384xf32>
    %195 = arith.addf %194, %193 : vector<8x384xf32>
    %196 = arith.divf %194, %195 : vector<8x384xf32>
    %197 = vector.extract_strided_slice %196 {offsets = [0, 0], sizes = [8, 128], strides = [1, 1]} : vector<8x384xf32> to vector<8x128xf32>
    %198 = vector.extract_strided_slice %196 {offsets = [0, 128], sizes = [8, 128], strides = [1, 1]} : vector<8x384xf32> to vector<8x128xf32>
    %199 = vector.extract_strided_slice %196 {offsets = [0, 256], sizes = [8, 128], strides = [1, 1]} : vector<8x384xf32> to vector<8x128xf32>
    %200 = vector.extract_strided_slice %190 {offsets = [0, 384], sizes = [8, 128], strides = [1, 1]} : vector<8x512xf32> to vector<8x128xf32>
    %201 = math.tanh %200 : vector<8x128xf32>
    %202 = arith.mulf %198, %140 : vector<8x128xf32>
    %203 = arith.mulf %197, %201 : vector<8x128xf32>
    %204 = arith.addf %202, %203 : vector<8x128xf32>
    %205 = math.tanh %204 : vector<8x128xf32>
    %206 = arith.mulf %199, %205 : vector<8x128xf32>
    %c32_i32 = arith.constant 32 : i32
    %207 = tpu.assume_multiple %c32_i32, 8 : i32
    %208 = arith.index_cast %207 : i32 to index
    %c0_41 = arith.constant 0 : index
    %209 = vector.load %arg10[%208, %c0_41] : memref<64x512xf32, #tpu.memory_space<vmem>>, vector<8x512xf32>
    %210 = arith.truncf %164 : vector<8x128xf32> to vector<8x128xbf16>
    %cst_42 = arith.constant dense<0.000000e+00> : vector<8x512xf32>
    %211 = tpu.matmul %210, %8, %cst_42 {dimension_numbers = #tpu.dot_dimension_numbers<[1], [0], [0], [1], [0, 0, 1, 1], [], []>} : vector<8x128xbf16>, vector<128x512xbf16>, vector<8x512xf32> -> vector<8x512xf32>
    %212 = arith.addf %209, %211 : vector<8x512xf32>
    %213 = vector.extract_strided_slice %212 {offsets = [0, 0], sizes = [8, 384], strides = [1, 1]} : vector<8x512xf32> to vector<8x384xf32>
    %214 = arith.negf %213 : vector<8x384xf32>
    %215 = math.exp %214 : vector<8x384xf32>
    %cst_43 = arith.constant 1.000000e+00 : f32
    %216 = vector.broadcast %cst_43 : f32 to vector<8x384xf32>
    %217 = arith.addf %216, %215 : vector<8x384xf32>
    %218 = arith.divf %216, %217 : vector<8x384xf32>
    %219 = vector.extract_strided_slice %218 {offsets = [0, 0], sizes = [8, 128], strides = [1, 1]} : vector<8x384xf32> to vector<8x128xf32>
    %220 = vector.extract_strided_slice %218 {offsets = [0, 128], sizes = [8, 128], strides = [1, 1]} : vector<8x384xf32> to vector<8x128xf32>
    %221 = vector.extract_strided_slice %218 {offsets = [0, 256], sizes = [8, 128], strides = [1, 1]} : vector<8x384xf32> to vector<8x128xf32>
    %222 = vector.extract_strided_slice %212 {offsets = [0, 384], sizes = [8, 128], strides = [1, 1]} : vector<8x512xf32> to vector<8x128xf32>
    %223 = math.tanh %222 : vector<8x128xf32>
    %224 = arith.mulf %220, %162 : vector<8x128xf32>
    %225 = arith.mulf %219, %223 : vector<8x128xf32>
    %226 = arith.addf %224, %225 : vector<8x128xf32>
    %227 = math.tanh %226 : vector<8x128xf32>
    %228 = arith.mulf %221, %227 : vector<8x128xf32>
    %229 = tpu.concatenate %164, %185 in 1 : vector<8x128xf32>, vector<8x128xf32> -> vector<8x256xf32>
    %230 = arith.truncf %229 : vector<8x256xf32> to vector<8x256xbf16>
    %cst_44 = arith.constant dense<0.000000e+00> : vector<8x512xf32>
    %231 = tpu.matmul %230, %9, %cst_44 {dimension_numbers = #tpu.dot_dimension_numbers<[1], [0], [0], [1], [0, 0, 1, 1], [], []>} : vector<8x256xbf16>, vector<256x512xbf16>, vector<8x512xf32> -> vector<8x512xf32>
    %232 = vector.broadcast %10 : vector<1x512xf32> to vector<8x512xf32>
    %233 = arith.addf %231, %232 : vector<8x512xf32>
    %234 = vector.extract_strided_slice %233 {offsets = [0, 0], sizes = [8, 384], strides = [1, 1]} : vector<8x512xf32> to vector<8x384xf32>
    %235 = arith.negf %234 : vector<8x384xf32>
    %236 = math.exp %235 : vector<8x384xf32>
    %cst_45 = arith.constant 1.000000e+00 : f32
    %237 = vector.broadcast %cst_45 : f32 to vector<8x384xf32>
    %238 = arith.addf %237, %236 : vector<8x384xf32>
    %239 = arith.divf %237, %238 : vector<8x384xf32>
    %240 = vector.extract_strided_slice %239 {offsets = [0, 0], sizes = [8, 128], strides = [1, 1]} : vector<8x384xf32> to vector<8x128xf32>
    %241 = vector.extract_strided_slice %239 {offsets = [0, 128], sizes = [8, 128], strides = [1, 1]} : vector<8x384xf32> to vector<8x128xf32>
    %242 = vector.extract_strided_slice %239 {offsets = [0, 256], sizes = [8, 128], strides = [1, 1]} : vector<8x384xf32> to vector<8x128xf32>
    %243 = vector.extract_strided_slice %233 {offsets = [0, 384], sizes = [8, 128], strides = [1, 1]} : vector<8x512xf32> to vector<8x128xf32>
    %244 = math.tanh %243 : vector<8x128xf32>
    %245 = arith.mulf %241, %183 : vector<8x128xf32>
    %246 = arith.mulf %240, %244 : vector<8x128xf32>
    %247 = arith.addf %245, %246 : vector<8x128xf32>
    %248 = math.tanh %247 : vector<8x128xf32>
    %249 = arith.mulf %242, %248 : vector<8x128xf32>
    %250 = tpu.concatenate %185, %206 in 1 : vector<8x128xf32>, vector<8x128xf32> -> vector<8x256xf32>
    %251 = arith.truncf %250 : vector<8x256xf32> to vector<8x256xbf16>
    %cst_46 = arith.constant dense<0.000000e+00> : vector<8x512xf32>
    %252 = tpu.matmul %251, %11, %cst_46 {dimension_numbers = #tpu.dot_dimension_numbers<[1], [0], [0], [1], [0, 0, 1, 1], [], []>} : vector<8x256xbf16>, vector<256x512xbf16>, vector<8x512xf32> -> vector<8x512xf32>
    %253 = vector.broadcast %12 : vector<1x512xf32> to vector<8x512xf32>
    %254 = arith.addf %252, %253 : vector<8x512xf32>
    %255 = vector.extract_strided_slice %254 {offsets = [0, 0], sizes = [8, 384], strides = [1, 1]} : vector<8x512xf32> to vector<8x384xf32>
    %256 = arith.negf %255 : vector<8x384xf32>
    %257 = math.exp %256 : vector<8x384xf32>
    %cst_47 = arith.constant 1.000000e+00 : f32
    %258 = vector.broadcast %cst_47 : f32 to vector<8x384xf32>
    %259 = arith.addf %258, %257 : vector<8x384xf32>
    %260 = arith.divf %258, %259 : vector<8x384xf32>
    %261 = vector.extract_strided_slice %260 {offsets = [0, 0], sizes = [8, 128], strides = [1, 1]} : vector<8x384xf32> to vector<8x128xf32>
    %262 = vector.extract_strided_slice %260 {offsets = [0, 128], sizes = [8, 128], strides = [1, 1]} : vector<8x384xf32> to vector<8x128xf32>
    %263 = vector.extract_strided_slice %260 {offsets = [0, 256], sizes = [8, 128], strides = [1, 1]} : vector<8x384xf32> to vector<8x128xf32>
    %264 = vector.extract_strided_slice %254 {offsets = [0, 384], sizes = [8, 128], strides = [1, 1]} : vector<8x512xf32> to vector<8x128xf32>
    %265 = math.tanh %264 : vector<8x128xf32>
    %266 = arith.mulf %262, %204 : vector<8x128xf32>
    %267 = arith.mulf %261, %265 : vector<8x128xf32>
    %268 = arith.addf %266, %267 : vector<8x128xf32>
    %269 = math.tanh %268 : vector<8x128xf32>
    %270 = arith.mulf %263, %269 : vector<8x128xf32>
    %c40_i32 = arith.constant 40 : i32
    %271 = tpu.assume_multiple %c40_i32, 8 : i32
    %272 = arith.index_cast %271 : i32 to index
    %c0_48 = arith.constant 0 : index
    %273 = vector.load %arg10[%272, %c0_48] : memref<64x512xf32, #tpu.memory_space<vmem>>, vector<8x512xf32>
    %274 = arith.truncf %228 : vector<8x128xf32> to vector<8x128xbf16>
    %cst_49 = arith.constant dense<0.000000e+00> : vector<8x512xf32>
    %275 = tpu.matmul %274, %8, %cst_49 {dimension_numbers = #tpu.dot_dimension_numbers<[1], [0], [0], [1], [0, 0, 1, 1], [], []>} : vector<8x128xbf16>, vector<128x512xbf16>, vector<8x512xf32> -> vector<8x512xf32>
    %276 = arith.addf %273, %275 : vector<8x512xf32>
    %277 = vector.extract_strided_slice %276 {offsets = [0, 0], sizes = [8, 384], strides = [1, 1]} : vector<8x512xf32> to vector<8x384xf32>
    %278 = arith.negf %277 : vector<8x384xf32>
    %279 = math.exp %278 : vector<8x384xf32>
    %cst_50 = arith.constant 1.000000e+00 : f32
    %280 = vector.broadcast %cst_50 : f32 to vector<8x384xf32>
    %281 = arith.addf %280, %279 : vector<8x384xf32>
    %282 = arith.divf %280, %281 : vector<8x384xf32>
    %283 = vector.extract_strided_slice %282 {offsets = [0, 0], sizes = [8, 128], strides = [1, 1]} : vector<8x384xf32> to vector<8x128xf32>
    %284 = vector.extract_strided_slice %282 {offsets = [0, 128], sizes = [8, 128], strides = [1, 1]} : vector<8x384xf32> to vector<8x128xf32>
    %285 = vector.extract_strided_slice %282 {offsets = [0, 256], sizes = [8, 128], strides = [1, 1]} : vector<8x384xf32> to vector<8x128xf32>
    %286 = vector.extract_strided_slice %276 {offsets = [0, 384], sizes = [8, 128], strides = [1, 1]} : vector<8x512xf32> to vector<8x128xf32>
    %287 = math.tanh %286 : vector<8x128xf32>
    %288 = arith.mulf %284, %226 : vector<8x128xf32>
    %289 = arith.mulf %283, %287 : vector<8x128xf32>
    %290 = arith.addf %288, %289 : vector<8x128xf32>
    %291 = math.tanh %290 : vector<8x128xf32>
    %292 = arith.mulf %285, %291 : vector<8x128xf32>
    %293 = tpu.concatenate %228, %249 in 1 : vector<8x128xf32>, vector<8x128xf32> -> vector<8x256xf32>
    %294 = arith.truncf %293 : vector<8x256xf32> to vector<8x256xbf16>
    %cst_51 = arith.constant dense<0.000000e+00> : vector<8x512xf32>
    %295 = tpu.matmul %294, %9, %cst_51 {dimension_numbers = #tpu.dot_dimension_numbers<[1], [0], [0], [1], [0, 0, 1, 1], [], []>} : vector<8x256xbf16>, vector<256x512xbf16>, vector<8x512xf32> -> vector<8x512xf32>
    %296 = vector.broadcast %10 : vector<1x512xf32> to vector<8x512xf32>
    %297 = arith.addf %295, %296 : vector<8x512xf32>
    %298 = vector.extract_strided_slice %297 {offsets = [0, 0], sizes = [8, 384], strides = [1, 1]} : vector<8x512xf32> to vector<8x384xf32>
    %299 = arith.negf %298 : vector<8x384xf32>
    %300 = math.exp %299 : vector<8x384xf32>
    %cst_52 = arith.constant 1.000000e+00 : f32
    %301 = vector.broadcast %cst_52 : f32 to vector<8x384xf32>
    %302 = arith.addf %301, %300 : vector<8x384xf32>
    %303 = arith.divf %301, %302 : vector<8x384xf32>
    %304 = vector.extract_strided_slice %303 {offsets = [0, 0], sizes = [8, 128], strides = [1, 1]} : vector<8x384xf32> to vector<8x128xf32>
    %305 = vector.extract_strided_slice %303 {offsets = [0, 128], sizes = [8, 128], strides = [1, 1]} : vector<8x384xf32> to vector<8x128xf32>
    %306 = vector.extract_strided_slice %303 {offsets = [0, 256], sizes = [8, 128], strides = [1, 1]} : vector<8x384xf32> to vector<8x128xf32>
    %307 = vector.extract_strided_slice %297 {offsets = [0, 384], sizes = [8, 128], strides = [1, 1]} : vector<8x512xf32> to vector<8x128xf32>
    %308 = math.tanh %307 : vector<8x128xf32>
    %309 = arith.mulf %305, %247 : vector<8x128xf32>
    %310 = arith.mulf %304, %308 : vector<8x128xf32>
    %311 = arith.addf %309, %310 : vector<8x128xf32>
    %312 = math.tanh %311 : vector<8x128xf32>
    %313 = arith.mulf %306, %312 : vector<8x128xf32>
    %314 = tpu.concatenate %249, %270 in 1 : vector<8x128xf32>, vector<8x128xf32> -> vector<8x256xf32>
    %315 = arith.truncf %314 : vector<8x256xf32> to vector<8x256xbf16>
    %cst_53 = arith.constant dense<0.000000e+00> : vector<8x512xf32>
    %316 = tpu.matmul %315, %11, %cst_53 {dimension_numbers = #tpu.dot_dimension_numbers<[1], [0], [0], [1], [0, 0, 1, 1], [], []>} : vector<8x256xbf16>, vector<256x512xbf16>, vector<8x512xf32> -> vector<8x512xf32>
    %317 = vector.broadcast %12 : vector<1x512xf32> to vector<8x512xf32>
    %318 = arith.addf %316, %317 : vector<8x512xf32>
    %319 = vector.extract_strided_slice %318 {offsets = [0, 0], sizes = [8, 384], strides = [1, 1]} : vector<8x512xf32> to vector<8x384xf32>
    %320 = arith.negf %319 : vector<8x384xf32>
    %321 = math.exp %320 : vector<8x384xf32>
    %cst_54 = arith.constant 1.000000e+00 : f32
    %322 = vector.broadcast %cst_54 : f32 to vector<8x384xf32>
    %323 = arith.addf %322, %321 : vector<8x384xf32>
    %324 = arith.divf %322, %323 : vector<8x384xf32>
    %325 = vector.extract_strided_slice %324 {offsets = [0, 0], sizes = [8, 128], strides = [1, 1]} : vector<8x384xf32> to vector<8x128xf32>
    %326 = vector.extract_strided_slice %324 {offsets = [0, 128], sizes = [8, 128], strides = [1, 1]} : vector<8x384xf32> to vector<8x128xf32>
    %327 = vector.extract_strided_slice %324 {offsets = [0, 256], sizes = [8, 128], strides = [1, 1]} : vector<8x384xf32> to vector<8x128xf32>
    %328 = vector.extract_strided_slice %318 {offsets = [0, 384], sizes = [8, 128], strides = [1, 1]} : vector<8x512xf32> to vector<8x128xf32>
    %329 = math.tanh %328 : vector<8x128xf32>
    %330 = arith.mulf %326, %268 : vector<8x128xf32>
    %331 = arith.mulf %325, %329 : vector<8x128xf32>
    %332 = arith.addf %330, %331 : vector<8x128xf32>
    %333 = math.tanh %332 : vector<8x128xf32>
    %334 = arith.mulf %327, %333 : vector<8x128xf32>
    %c48_i32 = arith.constant 48 : i32
    %335 = tpu.assume_multiple %c48_i32, 8 : i32
    %336 = arith.index_cast %335 : i32 to index
    %c0_55 = arith.constant 0 : index
    %337 = vector.load %arg10[%336, %c0_55] : memref<64x512xf32, #tpu.memory_space<vmem>>, vector<8x512xf32>
    %338 = arith.truncf %292 : vector<8x128xf32> to vector<8x128xbf16>
    %cst_56 = arith.constant dense<0.000000e+00> : vector<8x512xf32>
    %339 = tpu.matmul %338, %8, %cst_56 {dimension_numbers = #tpu.dot_dimension_numbers<[1], [0], [0], [1], [0, 0, 1, 1], [], []>} : vector<8x128xbf16>, vector<128x512xbf16>, vector<8x512xf32> -> vector<8x512xf32>
    %340 = arith.addf %337, %339 : vector<8x512xf32>
    %341 = vector.extract_strided_slice %340 {offsets = [0, 0], sizes = [8, 384], strides = [1, 1]} : vector<8x512xf32> to vector<8x384xf32>
    %342 = arith.negf %341 : vector<8x384xf32>
    %343 = math.exp %342 : vector<8x384xf32>
    %cst_57 = arith.constant 1.000000e+00 : f32
    %344 = vector.broadcast %cst_57 : f32 to vector<8x384xf32>
    %345 = arith.addf %344, %343 : vector<8x384xf32>
    %346 = arith.divf %344, %345 : vector<8x384xf32>
    %347 = vector.extract_strided_slice %346 {offsets = [0, 0], sizes = [8, 128], strides = [1, 1]} : vector<8x384xf32> to vector<8x128xf32>
    %348 = vector.extract_strided_slice %346 {offsets = [0, 128], sizes = [8, 128], strides = [1, 1]} : vector<8x384xf32> to vector<8x128xf32>
    %349 = vector.extract_strided_slice %346 {offsets = [0, 256], sizes = [8, 128], strides = [1, 1]} : vector<8x384xf32> to vector<8x128xf32>
    %350 = vector.extract_strided_slice %340 {offsets = [0, 384], sizes = [8, 128], strides = [1, 1]} : vector<8x512xf32> to vector<8x128xf32>
    %351 = math.tanh %350 : vector<8x128xf32>
    %352 = arith.mulf %348, %290 : vector<8x128xf32>
    %353 = arith.mulf %347, %351 : vector<8x128xf32>
    %354 = arith.addf %352, %353 : vector<8x128xf32>
    %355 = math.tanh %354 : vector<8x128xf32>
    %356 = arith.mulf %349, %355 : vector<8x128xf32>
    %357 = tpu.concatenate %292, %313 in 1 : vector<8x128xf32>, vector<8x128xf32> -> vector<8x256xf32>
    %358 = arith.truncf %357 : vector<8x256xf32> to vector<8x256xbf16>
    %cst_58 = arith.constant dense<0.000000e+00> : vector<8x512xf32>
    %359 = tpu.matmul %358, %9, %cst_58 {dimension_numbers = #tpu.dot_dimension_numbers<[1], [0], [0], [1], [0, 0, 1, 1], [], []>} : vector<8x256xbf16>, vector<256x512xbf16>, vector<8x512xf32> -> vector<8x512xf32>
    %360 = vector.broadcast %10 : vector<1x512xf32> to vector<8x512xf32>
    %361 = arith.addf %359, %360 : vector<8x512xf32>
    %362 = vector.extract_strided_slice %361 {offsets = [0, 0], sizes = [8, 384], strides = [1, 1]} : vector<8x512xf32> to vector<8x384xf32>
    %363 = arith.negf %362 : vector<8x384xf32>
    %364 = math.exp %363 : vector<8x384xf32>
    %cst_59 = arith.constant 1.000000e+00 : f32
    %365 = vector.broadcast %cst_59 : f32 to vector<8x384xf32>
    %366 = arith.addf %365, %364 : vector<8x384xf32>
    %367 = arith.divf %365, %366 : vector<8x384xf32>
    %368 = vector.extract_strided_slice %367 {offsets = [0, 0], sizes = [8, 128], strides = [1, 1]} : vector<8x384xf32> to vector<8x128xf32>
    %369 = vector.extract_strided_slice %367 {offsets = [0, 128], sizes = [8, 128], strides = [1, 1]} : vector<8x384xf32> to vector<8x128xf32>
    %370 = vector.extract_strided_slice %367 {offsets = [0, 256], sizes = [8, 128], strides = [1, 1]} : vector<8x384xf32> to vector<8x128xf32>
    %371 = vector.extract_strided_slice %361 {offsets = [0, 384], sizes = [8, 128], strides = [1, 1]} : vector<8x512xf32> to vector<8x128xf32>
    %372 = math.tanh %371 : vector<8x128xf32>
    %373 = arith.mulf %369, %311 : vector<8x128xf32>
    %374 = arith.mulf %368, %372 : vector<8x128xf32>
    %375 = arith.addf %373, %374 : vector<8x128xf32>
    %376 = math.tanh %375 : vector<8x128xf32>
    %377 = arith.mulf %370, %376 : vector<8x128xf32>
    %378 = tpu.concatenate %313, %334 in 1 : vector<8x128xf32>, vector<8x128xf32> -> vector<8x256xf32>
    %379 = arith.truncf %378 : vector<8x256xf32> to vector<8x256xbf16>
    %cst_60 = arith.constant dense<0.000000e+00> : vector<8x512xf32>
    %380 = tpu.matmul %379, %11, %cst_60 {dimension_numbers = #tpu.dot_dimension_numbers<[1], [0], [0], [1], [0, 0, 1, 1], [], []>} : vector<8x256xbf16>, vector<256x512xbf16>, vector<8x512xf32> -> vector<8x512xf32>
    %381 = vector.broadcast %12 : vector<1x512xf32> to vector<8x512xf32>
    %382 = arith.addf %380, %381 : vector<8x512xf32>
    %383 = vector.extract_strided_slice %382 {offsets = [0, 0], sizes = [8, 384], strides = [1, 1]} : vector<8x512xf32> to vector<8x384xf32>
    %384 = arith.negf %383 : vector<8x384xf32>
    %385 = math.exp %384 : vector<8x384xf32>
    %cst_61 = arith.constant 1.000000e+00 : f32
    %386 = vector.broadcast %cst_61 : f32 to vector<8x384xf32>
    %387 = arith.addf %386, %385 : vector<8x384xf32>
    %388 = arith.divf %386, %387 : vector<8x384xf32>
    %389 = vector.extract_strided_slice %388 {offsets = [0, 0], sizes = [8, 128], strides = [1, 1]} : vector<8x384xf32> to vector<8x128xf32>
    %390 = vector.extract_strided_slice %388 {offsets = [0, 128], sizes = [8, 128], strides = [1, 1]} : vector<8x384xf32> to vector<8x128xf32>
    %391 = vector.extract_strided_slice %388 {offsets = [0, 256], sizes = [8, 128], strides = [1, 1]} : vector<8x384xf32> to vector<8x128xf32>
    %392 = vector.extract_strided_slice %382 {offsets = [0, 384], sizes = [8, 128], strides = [1, 1]} : vector<8x512xf32> to vector<8x128xf32>
    %393 = math.tanh %392 : vector<8x128xf32>
    %394 = arith.mulf %390, %332 : vector<8x128xf32>
    %395 = arith.mulf %389, %393 : vector<8x128xf32>
    %396 = arith.addf %394, %395 : vector<8x128xf32>
    %397 = math.tanh %396 : vector<8x128xf32>
    %398 = arith.mulf %391, %397 : vector<8x128xf32>
    %c56_i32 = arith.constant 56 : i32
    %399 = tpu.assume_multiple %c56_i32, 8 : i32
    %400 = arith.index_cast %399 : i32 to index
    %c0_62 = arith.constant 0 : index
    %401 = vector.load %arg10[%400, %c0_62] : memref<64x512xf32, #tpu.memory_space<vmem>>, vector<8x512xf32>
    %402 = arith.truncf %356 : vector<8x128xf32> to vector<8x128xbf16>
    %cst_63 = arith.constant dense<0.000000e+00> : vector<8x512xf32>
    %403 = tpu.matmul %402, %8, %cst_63 {dimension_numbers = #tpu.dot_dimension_numbers<[1], [0], [0], [1], [0, 0, 1, 1], [], []>} : vector<8x128xbf16>, vector<128x512xbf16>, vector<8x512xf32> -> vector<8x512xf32>
    %404 = arith.addf %401, %403 : vector<8x512xf32>
    %405 = vector.extract_strided_slice %404 {offsets = [0, 0], sizes = [8, 384], strides = [1, 1]} : vector<8x512xf32> to vector<8x384xf32>
    %406 = arith.negf %405 : vector<8x384xf32>
    %407 = math.exp %406 : vector<8x384xf32>
    %cst_64 = arith.constant 1.000000e+00 : f32
    %408 = vector.broadcast %cst_64 : f32 to vector<8x384xf32>
    %409 = arith.addf %408, %407 : vector<8x384xf32>
    %410 = arith.divf %408, %409 : vector<8x384xf32>
    %411 = vector.extract_strided_slice %410 {offsets = [0, 0], sizes = [8, 128], strides = [1, 1]} : vector<8x384xf32> to vector<8x128xf32>
    %412 = vector.extract_strided_slice %410 {offsets = [0, 128], sizes = [8, 128], strides = [1, 1]} : vector<8x384xf32> to vector<8x128xf32>
    %413 = vector.extract_strided_slice %410 {offsets = [0, 256], sizes = [8, 128], strides = [1, 1]} : vector<8x384xf32> to vector<8x128xf32>
    %414 = vector.extract_strided_slice %404 {offsets = [0, 384], sizes = [8, 128], strides = [1, 1]} : vector<8x512xf32> to vector<8x128xf32>
    %415 = math.tanh %414 : vector<8x128xf32>
    %416 = arith.mulf %412, %354 : vector<8x128xf32>
    %417 = arith.mulf %411, %415 : vector<8x128xf32>
    %418 = arith.addf %416, %417 : vector<8x128xf32>
    %419 = math.tanh %418 : vector<8x128xf32>
    %420 = arith.mulf %413, %419 : vector<8x128xf32>
    %421 = tpu.concatenate %356, %377 in 1 : vector<8x128xf32>, vector<8x128xf32> -> vector<8x256xf32>
    %422 = arith.truncf %421 : vector<8x256xf32> to vector<8x256xbf16>
    %cst_65 = arith.constant dense<0.000000e+00> : vector<8x512xf32>
    %423 = tpu.matmul %422, %9, %cst_65 {dimension_numbers = #tpu.dot_dimension_numbers<[1], [0], [0], [1], [0, 0, 1, 1], [], []>} : vector<8x256xbf16>, vector<256x512xbf16>, vector<8x512xf32> -> vector<8x512xf32>
    %424 = vector.broadcast %10 : vector<1x512xf32> to vector<8x512xf32>
    %425 = arith.addf %423, %424 : vector<8x512xf32>
    %426 = vector.extract_strided_slice %425 {offsets = [0, 0], sizes = [8, 384], strides = [1, 1]} : vector<8x512xf32> to vector<8x384xf32>
    %427 = arith.negf %426 : vector<8x384xf32>
    %428 = math.exp %427 : vector<8x384xf32>
    %cst_66 = arith.constant 1.000000e+00 : f32
    %429 = vector.broadcast %cst_66 : f32 to vector<8x384xf32>
    %430 = arith.addf %429, %428 : vector<8x384xf32>
    %431 = arith.divf %429, %430 : vector<8x384xf32>
    %432 = vector.extract_strided_slice %431 {offsets = [0, 0], sizes = [8, 128], strides = [1, 1]} : vector<8x384xf32> to vector<8x128xf32>
    %433 = vector.extract_strided_slice %431 {offsets = [0, 128], sizes = [8, 128], strides = [1, 1]} : vector<8x384xf32> to vector<8x128xf32>
    %434 = vector.extract_strided_slice %431 {offsets = [0, 256], sizes = [8, 128], strides = [1, 1]} : vector<8x384xf32> to vector<8x128xf32>
    %435 = vector.extract_strided_slice %425 {offsets = [0, 384], sizes = [8, 128], strides = [1, 1]} : vector<8x512xf32> to vector<8x128xf32>
    %436 = math.tanh %435 : vector<8x128xf32>
    %437 = arith.mulf %433, %375 : vector<8x128xf32>
    %438 = arith.mulf %432, %436 : vector<8x128xf32>
    %439 = arith.addf %437, %438 : vector<8x128xf32>
    %440 = math.tanh %439 : vector<8x128xf32>
    %441 = arith.mulf %434, %440 : vector<8x128xf32>
    %442 = tpu.concatenate %377, %398 in 1 : vector<8x128xf32>, vector<8x128xf32> -> vector<8x256xf32>
    %443 = arith.truncf %442 : vector<8x256xf32> to vector<8x256xbf16>
    %cst_67 = arith.constant dense<0.000000e+00> : vector<8x512xf32>
    %444 = tpu.matmul %443, %11, %cst_67 {dimension_numbers = #tpu.dot_dimension_numbers<[1], [0], [0], [1], [0, 0, 1, 1], [], []>} : vector<8x256xbf16>, vector<256x512xbf16>, vector<8x512xf32> -> vector<8x512xf32>
    %445 = vector.broadcast %12 : vector<1x512xf32> to vector<8x512xf32>
    %446 = arith.addf %444, %445 : vector<8x512xf32>
    %447 = vector.extract_strided_slice %446 {offsets = [0, 0], sizes = [8, 384], strides = [1, 1]} : vector<8x512xf32> to vector<8x384xf32>
    %448 = arith.negf %447 : vector<8x384xf32>
    %449 = math.exp %448 : vector<8x384xf32>
    %cst_68 = arith.constant 1.000000e+00 : f32
    %450 = vector.broadcast %cst_68 : f32 to vector<8x384xf32>
    %451 = arith.addf %450, %449 : vector<8x384xf32>
    %452 = arith.divf %450, %451 : vector<8x384xf32>
    %453 = vector.extract_strided_slice %452 {offsets = [0, 0], sizes = [8, 128], strides = [1, 1]} : vector<8x384xf32> to vector<8x128xf32>
    %454 = vector.extract_strided_slice %452 {offsets = [0, 128], sizes = [8, 128], strides = [1, 1]} : vector<8x384xf32> to vector<8x128xf32>
    %455 = vector.extract_strided_slice %452 {offsets = [0, 256], sizes = [8, 128], strides = [1, 1]} : vector<8x384xf32> to vector<8x128xf32>
    %456 = vector.extract_strided_slice %446 {offsets = [0, 384], sizes = [8, 128], strides = [1, 1]} : vector<8x512xf32> to vector<8x128xf32>
    %457 = math.tanh %456 : vector<8x128xf32>
    %458 = arith.mulf %454, %396 : vector<8x128xf32>
    %459 = arith.mulf %453, %457 : vector<8x128xf32>
    %460 = arith.addf %458, %459 : vector<8x128xf32>
    %461 = math.tanh %460 : vector<8x128xf32>
    %462 = arith.mulf %455, %461 : vector<8x128xf32>
    %463 = tpu.concatenate %420, %441 in 1 : vector<8x128xf32>, vector<8x128xf32> -> vector<8x256xf32>
    %464 = arith.truncf %463 : vector<8x256xf32> to vector<8x256xbf16>
    %cst_69 = arith.constant dense<0.000000e+00> : vector<8x512xf32>
    %465 = tpu.matmul %464, %9, %cst_69 {dimension_numbers = #tpu.dot_dimension_numbers<[1], [0], [0], [1], [0, 0, 1, 1], [], []>} : vector<8x256xbf16>, vector<256x512xbf16>, vector<8x512xf32> -> vector<8x512xf32>
    %466 = vector.broadcast %10 : vector<1x512xf32> to vector<8x512xf32>
    %467 = arith.addf %465, %466 : vector<8x512xf32>
    %468 = vector.extract_strided_slice %467 {offsets = [0, 0], sizes = [8, 384], strides = [1, 1]} : vector<8x512xf32> to vector<8x384xf32>
    %469 = arith.negf %468 : vector<8x384xf32>
    %470 = math.exp %469 : vector<8x384xf32>
    %cst_70 = arith.constant 1.000000e+00 : f32
    %471 = vector.broadcast %cst_70 : f32 to vector<8x384xf32>
    %472 = arith.addf %471, %470 : vector<8x384xf32>
    %473 = arith.divf %471, %472 : vector<8x384xf32>
    %474 = vector.extract_strided_slice %473 {offsets = [0, 0], sizes = [8, 128], strides = [1, 1]} : vector<8x384xf32> to vector<8x128xf32>
    %475 = vector.extract_strided_slice %473 {offsets = [0, 128], sizes = [8, 128], strides = [1, 1]} : vector<8x384xf32> to vector<8x128xf32>
    %476 = vector.extract_strided_slice %473 {offsets = [0, 256], sizes = [8, 128], strides = [1, 1]} : vector<8x384xf32> to vector<8x128xf32>
    %477 = vector.extract_strided_slice %467 {offsets = [0, 384], sizes = [8, 128], strides = [1, 1]} : vector<8x512xf32> to vector<8x128xf32>
    %478 = math.tanh %477 : vector<8x128xf32>
    %479 = arith.mulf %475, %439 : vector<8x128xf32>
    %480 = arith.mulf %474, %478 : vector<8x128xf32>
    %481 = arith.addf %479, %480 : vector<8x128xf32>
    %482 = math.tanh %481 : vector<8x128xf32>
    %483 = arith.mulf %476, %482 : vector<8x128xf32>
    %484 = tpu.concatenate %441, %462 in 1 : vector<8x128xf32>, vector<8x128xf32> -> vector<8x256xf32>
    %485 = arith.truncf %484 : vector<8x256xf32> to vector<8x256xbf16>
    %cst_71 = arith.constant dense<0.000000e+00> : vector<8x512xf32>
    %486 = tpu.matmul %485, %11, %cst_71 {dimension_numbers = #tpu.dot_dimension_numbers<[1], [0], [0], [1], [0, 0, 1, 1], [], []>} : vector<8x256xbf16>, vector<256x512xbf16>, vector<8x512xf32> -> vector<8x512xf32>
    %487 = vector.broadcast %12 : vector<1x512xf32> to vector<8x512xf32>
    %488 = arith.addf %486, %487 : vector<8x512xf32>
    %489 = vector.extract_strided_slice %488 {offsets = [0, 0], sizes = [8, 384], strides = [1, 1]} : vector<8x512xf32> to vector<8x384xf32>
    %490 = arith.negf %489 : vector<8x384xf32>
    %491 = math.exp %490 : vector<8x384xf32>
    %cst_72 = arith.constant 1.000000e+00 : f32
    %492 = vector.broadcast %cst_72 : f32 to vector<8x384xf32>
    %493 = arith.addf %492, %491 : vector<8x384xf32>
    %494 = arith.divf %492, %493 : vector<8x384xf32>
    %495 = vector.extract_strided_slice %494 {offsets = [0, 0], sizes = [8, 128], strides = [1, 1]} : vector<8x384xf32> to vector<8x128xf32>
    %496 = vector.extract_strided_slice %494 {offsets = [0, 128], sizes = [8, 128], strides = [1, 1]} : vector<8x384xf32> to vector<8x128xf32>
    %497 = vector.extract_strided_slice %494 {offsets = [0, 256], sizes = [8, 128], strides = [1, 1]} : vector<8x384xf32> to vector<8x128xf32>
    %498 = vector.extract_strided_slice %488 {offsets = [0, 384], sizes = [8, 128], strides = [1, 1]} : vector<8x512xf32> to vector<8x128xf32>
    %499 = math.tanh %498 : vector<8x128xf32>
    %500 = arith.mulf %496, %460 : vector<8x128xf32>
    %501 = arith.mulf %495, %499 : vector<8x128xf32>
    %502 = arith.addf %500, %501 : vector<8x128xf32>
    %503 = math.tanh %502 : vector<8x128xf32>
    %504 = arith.mulf %497, %503 : vector<8x128xf32>
    %505 = tpu.concatenate %483, %504 in 1 : vector<8x128xf32>, vector<8x128xf32> -> vector<8x256xf32>
    %506 = arith.truncf %505 : vector<8x256xf32> to vector<8x256xbf16>
    %cst_73 = arith.constant dense<0.000000e+00> : vector<8x512xf32>
    %507 = tpu.matmul %506, %11, %cst_73 {dimension_numbers = #tpu.dot_dimension_numbers<[1], [0], [0], [1], [0, 0, 1, 1], [], []>} : vector<8x256xbf16>, vector<256x512xbf16>, vector<8x512xf32> -> vector<8x512xf32>
    %508 = vector.broadcast %12 : vector<1x512xf32> to vector<8x512xf32>
    %509 = arith.addf %507, %508 : vector<8x512xf32>
    %510 = vector.extract_strided_slice %509 {offsets = [0, 0], sizes = [8, 384], strides = [1, 1]} : vector<8x512xf32> to vector<8x384xf32>
    %511 = arith.negf %510 : vector<8x384xf32>
    %512 = math.exp %511 : vector<8x384xf32>
    %cst_74 = arith.constant 1.000000e+00 : f32
    %513 = vector.broadcast %cst_74 : f32 to vector<8x384xf32>
    %514 = arith.addf %513, %512 : vector<8x384xf32>
    %515 = arith.divf %513, %514 : vector<8x384xf32>
    %516 = vector.extract_strided_slice %515 {offsets = [0, 0], sizes = [8, 128], strides = [1, 1]} : vector<8x384xf32> to vector<8x128xf32>
    %517 = vector.extract_strided_slice %515 {offsets = [0, 128], sizes = [8, 128], strides = [1, 1]} : vector<8x384xf32> to vector<8x128xf32>
    %518 = vector.extract_strided_slice %515 {offsets = [0, 256], sizes = [8, 128], strides = [1, 1]} : vector<8x384xf32> to vector<8x128xf32>
    %519 = vector.extract_strided_slice %509 {offsets = [0, 384], sizes = [8, 128], strides = [1, 1]} : vector<8x512xf32> to vector<8x128xf32>
    %520 = math.tanh %519 : vector<8x128xf32>
    %521 = arith.mulf %517, %502 : vector<8x128xf32>
    %522 = arith.mulf %516, %520 : vector<8x128xf32>
    %523 = arith.addf %521, %522 : vector<8x128xf32>
    %524 = math.tanh %523 : vector<8x128xf32>
    %525 = arith.mulf %518, %524 : vector<8x128xf32>
    %c0_75 = arith.constant 0 : index
    %c0_76 = arith.constant 0 : index
    %526 = vector.load %arg9[%c0_75, %c0_76] : memref<8x128xf32, #tpu.memory_space<vmem>>, vector<8x128xf32>
    tpu.vector_store %arg9[%c0_75, %c0_76], %525 {strides = array<i32>} : memref<8x128xf32, #tpu.memory_space<vmem>>, vector<8x128xf32>,
    return
  }
  func.func @transform_0(%arg0: i32) -> (i32, i32, i32) {
    %c0_i32 = arith.constant 0 : i32
    %c0_i32_0 = arith.constant 0 : i32
    %c0_i32_1 = arith.constant 0 : i32
    return %arg0, %c0_i32, %c0_i32_0 : i32, i32, i32
  }
  func.func @transform_1(%arg0: i32) -> (i32, i32) {
    %c0_i32 = arith.constant 0 : i32
    %c0_i32_0 = arith.constant 0 : i32
    %c0_i32_1 = arith.constant 0 : i32
    return %c0_i32, %c0_i32_0 : i32, i32
  }
  func.func @transform_2(%arg0: i32) -> (i32, i32) {
    %c0_i32 = arith.constant 0 : i32
    %c0_i32_0 = arith.constant 0 : i32
    %c0_i32_1 = arith.constant 0 : i32
    return %c0_i32, %c0_i32_0 : i32, i32
  }
  func.func @transform_3(%arg0: i32) -> (i32, i32) {
    %c0_i32 = arith.constant 0 : i32
    %c0_i32_0 = arith.constant 0 : i32
    %c0_i32_1 = arith.constant 0 : i32
    return %c0_i32, %c0_i32_0 : i32, i32
  }
  func.func @transform_4(%arg0: i32) -> (i32, i32) {
    %c0_i32 = arith.constant 0 : i32
    %c0_i32_0 = arith.constant 0 : i32
    %c0_i32_1 = arith.constant 0 : i32
    return %c0_i32, %c0_i32_0 : i32, i32
  }
  func.func @transform_5(%arg0: i32) -> (i32, i32) {
    %c0_i32 = arith.constant 0 : i32
    %c0_i32_0 = arith.constant 0 : i32
    %c0_i32_1 = arith.constant 0 : i32
    return %c0_i32, %c0_i32_0 : i32, i32
  }
  func.func @transform_6(%arg0: i32) -> (i32, i32) {
    %c0_i32 = arith.constant 0 : i32
    %c0_i32_0 = arith.constant 0 : i32
    %c0_i32_1 = arith.constant 0 : i32
    return %c0_i32, %c0_i32_0 : i32, i32
  }
  func.func @transform_7(%arg0: i32) -> (i32, i32) {
    %c0_i32 = arith.constant 0 : i32
    %c0_i32_0 = arith.constant 0 : i32
    %c0_i32_1 = arith.constant 0 : i32
    return %c0_i32, %c0_i32_0 : i32, i32
  }
  func.func @transform_8(%arg0: i32) -> (i32, i32) {
    %c0_i32 = arith.constant 0 : i32
    %c0_i32_0 = arith.constant 0 : i32
    return %arg0, %c0_i32 : i32, i32
  }
}

</mosaic_0001>

<llo_original>
// kernel: tpu_custom_call.1
$region0: #{tpu_custom_call.1}
  #allocation0 [shape = 'u32[]', space=smem, size = 0x4, offset = 0x4, fixed_abs, tag = 'smem constant byte address 0x4 - core index']
  #allocation1 [shape = 'u32[144,128]{1,0:T(1,128)}', space=vmem, size = 0x12000, scoped, tag = 'internal scratch']
  #allocation2 [shape = 'f32[64,512]{1,0:T(8,128)}', space=vmem, size = 0x20000, scoped, tag = 'scratch operand']
  %s0 = inlined_call_operand.vmem [shape: bf16[1,64,32], index: 0, kind: input, shape index: {}]
  %s1 = inlined_call_operand.hbm [shape: bf16[32,512], index: 1, kind: input, shape index: {}]
  %s2 = inlined_call_operand.hbm [shape: bf16[128,512], index: 2, kind: input, shape index: {}]
  %s3 = inlined_call_operand.vmem [shape: f32[1,512], index: 3, kind: input, shape index: {}]
  %s4 = inlined_call_operand.hbm [shape: bf16[256,512], index: 4, kind: input, shape index: {}]
  %s5 = inlined_call_operand.vmem [shape: f32[1,512], index: 5, kind: input, shape index: {}]
  %s6 = inlined_call_operand.hbm [shape: bf16[256,512], index: 6, kind: input, shape index: {}]
  %s7 = inlined_call_operand.vmem [shape: f32[1,512], index: 7, kind: input, shape index: {}]
  %s8 = inlined_call_operand.hbm [shape: f32[8,128], index: 8, kind: output, shape index: {}]
  %s9 = sld [smem:[#allocation0]]
  $region58: #{tpu_custom_call.1} parent=0
    _
  %s11 = ssub.s32 1, %s9
  %s12 = scalar_select 0, %s11, %s9
  $region1: #{tpu_custom_call.1} parent=0
    #allocation3 [shape = 'u8[32768]{0}', space=vmem, size = 0x8000, scoped, tag = 'input window, operand 1, single buffered']
    #allocation4 [shape = 's32[1]{0}', space=sflag, size = 0x4, scoped, tag = 'scoped memory for tpu_custom_call.1']
    #allocation5 [shape = 's32[1]{0}', space=sflag, size = 0x4, scoped, tag = 'scoped memory for tpu_custom_call.1']
    #allocation6 [shape = 'u8[131072]{0}', space=vmem, size = 0x20000, scoped, tag = 'input window, operand 2, single buffered']
    #allocation7 [shape = 's32[1]{0}', space=sflag, size = 0x4, scoped, tag = 'scoped memory for tpu_custom_call.1']
    #allocation8 [shape = 'u8[262144]{0}', space=vmem, size = 0x40000, scoped, tag = 'input window, operand 4, single buffered']
    #allocation9 [shape = 'u8[262144]{0}', space=vmem, size = 0x40000, scoped, tag = 'input window, operand 6, single buffered']
    #allocation10 [shape = 's32[1]{0}', space=sflag, size = 0x4, scoped, tag = 'scoped memory for tpu_custom_call.1']
    #allocation11 [shape = 'u8[4096]{0}', space=vmem, size = 0x1000, scoped, tag = 'output window, operand 0, single buffered']
    %13 = vsyncpa [#allocation4], 0
    %14 = vsyncpa [#allocation7], 0
    %15 = vsyncpa [#allocation10], 0
    %16 = vsyncpa [#allocation5], 0
    // Predicated region
    $region2: #{tpu_custom_call.1} parent=1 // pred_check
      _
    $region3: #{tpu_custom_call.1} parent=1 // pred_check_branch
      %18 = sbr.rel (0) target = $region5
    $region4: #{tpu_custom_call.1} parent=1 // pred_region
      _
    $region5: #{tpu_custom_call.1} parent=1 // pred_fallthru
      _
    // Predicated region
    $region6: #{tpu_custom_call.1} parent=1 // pred_check
      _
    $region7: #{tpu_custom_call.1} parent=1 // pred_check_branch
      %20 = sbr.rel (0) target = $region9
    $region8: #{tpu_custom_call.1} parent=1 // pred_region
      %s22 = ssub.s32 1024, 1024
      %23 = vsyncadd [#allocation4], %s22
      %s24 = sshll.u32 [#allocation3], 4
      %s25 = int_to_ptr.vmem [resolvable:$true] %s24
      %30 = dma.hbm_to_vmem [thread:$0]  %s1, 1024, %s25, [#allocation4], 256, 256, 16
    $region9: #{tpu_custom_call.1} parent=1 // pred_fallthru
      _
    // Predicated region
    $region10: #{tpu_custom_call.1} parent=1 // pred_check
      _
    $region11: #{tpu_custom_call.1} parent=1 // pred_check_branch
      %32 = sbr.rel (0) target = $region13
    $region12: #{tpu_custom_call.1} parent=1 // pred_region
      %s34 = ssub.s32 4096, 4096
      %35 = vsyncadd [#allocation7], %s34
      %s36 = sshll.u32 [#allocation6], 4
      %s37 = int_to_ptr.vmem [resolvable:$true] %s36
      %42 = dma.hbm_to_vmem [thread:$0]  %s2, 4096, %s37, [#allocation7], 256, 256, 16
    $region13: #{tpu_custom_call.1} parent=1 // pred_fallthru
      _
    // Predicated region
    $region14: #{tpu_custom_call.1} parent=1 // pred_check
      _
    $region15: #{tpu_custom_call.1} parent=1 // pred_check_branch
      %44 = sbr.rel (0) target = $region17
    $region16: #{tpu_custom_call.1} parent=1 // pred_region
      _
    $region17: #{tpu_custom_call.1} parent=1 // pred_fallthru
      _
    // Predicated region
    $region18: #{tpu_custom_call.1} parent=1 // pred_check
      _
    $region19: #{tpu_custom_call.1} parent=1 // pred_check_branch
      %46 = sbr.rel (0) target = $region21
    $region20: #{tpu_custom_call.1} parent=1 // pred_region
      %s48 = ssub.s32 8192, 8192
      %49 = vsyncadd [#allocation7], %s48
      %s50 = sshll.u32 [#allocation8], 4
      %s51 = int_to_ptr.vmem [resolvable:$true] %s50
      %56 = dma.hbm_to_vmem [thread:$0]  %s4, 8192, %s51, [#allocation7], 256, 256, 16
    $region21: #{tpu_custom_call.1} parent=1 // pred_fallthru
      _
    // Predicated region
    $region22: #{tpu_custom_call.1} parent=1 // pred_check
      _
    $region23: #{tpu_custom_call.1} parent=1 // pred_check_branch
      %58 = sbr.rel (0) target = $region25
    $region24: #{tpu_custom_call.1} parent=1 // pred_region
      _
    $region25: #{tpu_custom_call.1} parent=1 // pred_fallthru
      _
    // Predicated region
    $region26: #{tpu_custom_call.1} parent=1 // pred_check
      _
    $region27: #{tpu_custom_call.1} parent=1 // pred_check_branch
      %60 = sbr.rel (0) target = $region29
    $region28: #{tpu_custom_call.1} parent=1 // pred_region
      %s62 = ssub.s32 8192, 8192
      %63 = vsyncadd [#allocation10], %s62
      %s64 = sshll.u32 [#allocation9], 4
      %s65 = int_to_ptr.vmem [resolvable:$true] %s64
      %70 = dma.hbm_to_vmem [thread:$0]  %s6, 8192, %s65, [#allocation10], 256, 256, 16
    $region29: #{tpu_custom_call.1} parent=1 // pred_fallthru
      _
    // Predicated region
    $region30: #{tpu_custom_call.1} parent=1 // pred_check
      _
    $region31: #{tpu_custom_call.1} parent=1 // pred_check_branch
      %72 = sbr.rel (0) target = $region33
    $region32: #{tpu_custom_call.1} parent=1 // pred_region
      _
    $region33: #{tpu_custom_call.1} parent=1 // pred_fallthru
      _
    // Predicated region
    $region34: #{tpu_custom_call.1} parent=1 // pred_check
      _
    $region35: #{tpu_custom_call.1} parent=1 // pred_check_branch
      %74 = sbr.rel (0) target = $region37
    $region36: #{tpu_custom_call.1} parent=1 // pred_region
      %75 = dma.done [#allocation4], 1024
    $region37: #{tpu_custom_call.1} parent=1 // pred_fallthru
      _
    // Predicated region
    $region38: #{tpu_custom_call.1} parent=1 // pred_check
      _
    $region39: #{tpu_custom_call.1} parent=1 // pred_check_branch
      %77 = sbr.rel (0) target = $region41
    $region40: #{tpu_custom_call.1} parent=1 // pred_region
      %78 = dma.done [#allocation7], 4096
    $region41: #{tpu_custom_call.1} parent=1 // pred_fallthru
      _
    // Predicated region
    $region42: #{tpu_custom_call.1} parent=1 // pred_check
      _
    $region43: #{tpu_custom_call.1} parent=1 // pred_check_branch
      %80 = sbr.rel (0) target = $region45
    $region44: #{tpu_custom_call.1} parent=1 // pred_region
      %81 = dma.done [#allocation7], 8192
    $region45: #{tpu_custom_call.1} parent=1 // pred_fallthru
      _
    // Predicated region
    $region46: #{tpu_custom_call.1} parent=1 // pred_check
      _
    $region47: #{tpu_custom_call.1} parent=1 // pred_check_branch
      %83 = sbr.rel (0) target = $region49
    $region48: #{tpu_custom_call.1} parent=1 // pred_region
      %84 = dma.done [#allocation10], 8192
    $region49: #{tpu_custom_call.1} parent=1 // pred_fallthru
      _
    %v86 = vld [vmem:[%s0] sm:$0xf]
    %v87 = vld [vmem:[%s0 + $0x4] sm:$0xf]
    %v88 = vld [vmem:[%s0 + $0x8] sm:$0xf]
    %v89 = vld [vmem:[%s0 + $0xc] sm:$0xf]
    %v90 = vld [vmem:[%s0 + $0x10] sm:$0xf]
    %v91 = vld [vmem:[%s0 + $0x14] sm:$0xf]
    %v92 = vld [vmem:[%s0 + $0x18] sm:$0xf]
    %v93 = vld [vmem:[%s0 + $0x1c] sm:$0xf]
    %v94 = vld [vmem:[#allocation3] sm:$0xff]
    %v95 = vld [vmem:[#allocation3 + $0x8] sm:$0xff]
    %v96 = vld [vmem:[#allocation3 + $0x10] sm:$0xff]
    %v97 = vld [vmem:[#allocation3 + $0x18] sm:$0xff]
    %v98 = vld [vmem:[#allocation3 + $0x20] sm:$0xff]
    %v99 = vld [vmem:[#allocation3 + $0x28] sm:$0xff]
    %v100 = vld [vmem:[#allocation3 + $0x30] sm:$0xff]
    %v101 = vld [vmem:[#allocation3 + $0x38] sm:$0xff]
    %v102 = vld [vmem:[%s3] sm:$0xf]
    %v104 = vlaneseq
    %v105 = vshrl.u32 %v104, 7
    %v106 = vsub.s32 0, %v105
    %v107 = vrot.slane %v102, %v106
    %v108 = vlaneseq
    %v109 = vshrl.u32 %v108, 7
    %v110 = vsub.s32 1, %v109
    %v111 = vrot.slane %v102, %v110
    %v112 = vlaneseq
    %v113 = vshrl.u32 %v112, 7
    %v114 = vsub.s32 2, %v113
    %v115 = vrot.slane %v102, %v114
    %v116 = vlaneseq
    %v117 = vshrl.u32 %v116, 7
    %v118 = vsub.s32 3, %v117
    %v119 = vrot.slane %v102, %v118
    %v132 = vunpack.c.l.b16 %v86
    %v133 = vunpack.c.l.b16 %v87
    %v134 = vunpack.c.l.b16 %v88
    %v135 = vunpack.c.l.b16 %v89
    %v136 = vunpack.c.l.b16 %v90
    %v137 = vunpack.c.l.b16 %v91
    %v138 = vunpack.c.l.b16 %v92
    %v139 = vunpack.c.l.b16 %v93
    %v140 = vpack.c.b16 %v133, %v132
    %v141 = vpack.c.b16 %v135, %v134
    %v142 = vpack.c.b16 %v137, %v136
    %v143 = vpack.c.b16 %v139, %v138
    %v152 = vunpack.c.l.b16 %v94
    %v153 = vunpack.c.h.b16 %v94
    %v154 = vunpack.c.l.b16 %v95
    %v155 = vunpack.c.h.b16 %v95
    %v156 = vunpack.c.l.b16 %v96
    %v157 = vunpack.c.h.b16 %v96
    %v158 = vunpack.c.l.b16 %v97
    %v159 = vunpack.c.h.b16 %v97
    %v160 = vunpack.c.l.b16 %v98
    %v161 = vunpack.c.h.b16 %v98
    %v162 = vunpack.c.l.b16 %v99
    %v163 = vunpack.c.h.b16 %v99
    %v164 = vunpack.c.l.b16 %v100
    %v165 = vunpack.c.h.b16 %v100
    %v166 = vunpack.c.l.b16 %v101
    %v167 = vunpack.c.h.b16 %v101
    %v168 = vpack.c.b16 %v156, %v152
    %v169 = vpack.c.b16 %v157, %v153
    %v170 = vpack.c.b16 %v158, %v154
    %v171 = vpack.c.b16 %v159, %v155
    %v172 = vpack.c.b16 %v164, %v160
    %v173 = vpack.c.b16 %v165, %v161
    %v174 = vpack.c.b16 %v166, %v162
    %v175 = vpack.c.b16 %v167, %v163
    %vm184 = vcmask 261120
    %v186 = vsel %vm184, %v140, 0
    %v189 = vsel %vm184, %v141, 0
    %v192 = vsel %vm184, %v142, 0
    %v195 = vsel %vm184, %v143, 0
    %197 = vmatprep.subr.bf16.mxu0 0
    %198 = vmatpush1.bf16.msra.mxu0 0
    %199 = vmatprep.subr.bf16.mxu0 0
    %200 = vmatpush1.bf16.msra.mxu0 0
    %201 = vmatprep.subr.bf16.mxu0 0
    %202 = vmatpush1.bf16.msra.mxu0 0
    %203 = vmatprep.subr.bf16.mxu0 0
    %204 = vmatpush1.bf16.msra.mxu0 0
    %205 = vmatprep.subr.bf16.mxu0 0
    %206 = vmatpush1.bf16.msra.mxu0 0
    %207 = vmatprep.subr.bf16.mxu0 0
    %208 = vmatpush1.bf16.msra.mxu0 0
    %209 = vmatprep.subr.bf16.mxu0 %v173
    %210 = vmatpush1.bf16.msra.mxu0 %v172
    %211 = vmatprep.subr.bf16.mxu0 %v169
    %212 = vmatpush1.bf16.msra.mxu0 %v168
    %213 = vmatprep.subr.bf16.mxu0 0
    %214 = vmatpush2.bf16.msra.mxu0 0
    %215 = vmatprep.subr.bf16.mxu0 0
    %216 = vmatpush2.bf16.msra.mxu0 0
    %217 = vmatprep.subr.bf16.mxu0 0
    %218 = vmatpush2.bf16.msra.mxu0 0
    %219 = vmatprep.subr.bf16.mxu0 0
    %220 = vmatpush2.bf16.msra.mxu0 0
    %221 = vmatprep.subr.bf16.mxu0 0
    %222 = vmatpush2.bf16.msra.mxu0 0
    %223 = vmatprep.subr.bf16.mxu0 0
    %224 = vmatpush2.bf16.msra.mxu0 0
    %225 = vmatprep.subr.bf16.mxu0 0
    %226 = vmatpush2.bf16.msra.mxu0 0
    %227 = vmatprep.subr.bf16.mxu0 0
    %228 = vmatpush2.bf16.msra.mxu0 0
    %229 = vmatprep.mubr.bf16.mxu0 0
    %230 = vmatmul.mubr.bf16.gmra.mxu0 %v186
    %v231 = vpop.f32.mrf.mxu0
    %v232 = vadd.f32 %v107, %v231
    %v233 = vpop.f32.mrf.mxu0
    %v234 = vadd.f32 %v111, %v233
    %v235 = vpop.f32.mrf.mxu0
    %v236 = vadd.f32 %v107, %v235
    %v237 = vpop.f32.mrf.mxu0
    %v238 = vadd.f32 %v111, %v237
    %239 = vmatprep.mubr.bf16.mxu0 0
    %240 = vmatmul.mubr.bf16.gmra.mxu0 %v189
    %v241 = vpop.f32.mrf.mxu0
    %v242 = vadd.f32 %v107, %v241
    %v243 = vpop.f32.mrf.mxu0
    %v244 = vadd.f32 %v111, %v243
    %v245 = vpop.f32.mrf.mxu0
    %v246 = vadd.f32 %v107, %v245
    %v247 = vpop.f32.mrf.mxu0
    %v248 = vadd.f32 %v111, %v247
    %249 = vmatprep.mubr.bf16.mxu0 0
    %250 = vmatmul.mubr.bf16.gmra.mxu0 %v192
    %v251 = vpop.f32.mrf.mxu0
    %v252 = vadd.f32 %v107, %v251
    %v253 = vpop.f32.mrf.mxu0
    %v254 = vadd.f32 %v111, %v253
    %v255 = vpop.f32.mrf.mxu0
    %v256 = vadd.f32 %v107, %v255
    %v257 = vpop.f32.mrf.mxu0
    %v258 = vadd.f32 %v111, %v257
    %259 = vmatprep.mubr.bf16.mxu0 0
    %260 = vmatmul.mubr.bf16.gmra.mxu0 %v195
    %v261 = vpop.f32.mrf.mxu0
    %v262 = vadd.f32 %v107, %v261
    %v263 = vpop.f32.mrf.mxu0
    %v264 = vadd.f32 %v111, %v263
    %v265 = vpop.f32.mrf.mxu0
    %v266 = vadd.f32 %v107, %v265
    %v267 = vpop.f32.mrf.mxu0
    %v268 = vadd.f32 %v111, %v267
    %269 = vdwg.mxu0
    %270 = vmatprep.subr.bf16.mxu0 0
    %271 = vmatpush1.bf16.msra.mxu0 0
    %272 = vmatprep.subr.bf16.mxu0 0
    %273 = vmatpush1.bf16.msra.mxu0 0
    %274 = vmatprep.subr.bf16.mxu0 0
    %275 = vmatpush1.bf16.msra.mxu0 0
    %276 = vmatprep.subr.bf16.mxu0 0
    %277 = vmatpush1.bf16.msra.mxu0 0
    %278 = vmatprep.subr.bf16.mxu0 0
    %279 = vmatpush1.bf16.msra.mxu0 0
    %280 = vmatprep.subr.bf16.mxu0 0
    %281 = vmatpush1.bf16.msra.mxu0 0
    %282 = vmatprep.subr.bf16.mxu0 %v175
    %283 = vmatpush1.bf16.msra.mxu0 %v174
    %284 = vmatprep.subr.bf16.mxu0 %v171
    %285 = vmatpush1.bf16.msra.mxu0 %v170
    %286 = vmatprep.subr.bf16.mxu0 0
    %287 = vmatpush2.bf16.msra.mxu0 0
    %288 = vmatprep.subr.bf16.mxu0 0
    %289 = vmatpush2.bf16.msra.mxu0 0
    %290 = vmatprep.subr.bf16.mxu0 0
    %291 = vmatpush2.bf16.msra.mxu0 0
    %292 = vmatprep.subr.bf16.mxu0 0
    %293 = vmatpush2.bf16.msra.mxu0 0
    %294 = vmatprep.subr.bf16.mxu0 0
    %295 = vmatpush2.bf16.msra.mxu0 0
    %296 = vmatprep.subr.bf16.mxu0 0
    %297 = vmatpush2.bf16.msra.mxu0 0
    %298 = vmatprep.subr.bf16.mxu0 0
    %299 = vmatpush2.bf16.msra.mxu0 0
    %300 = vmatprep.subr.bf16.mxu0 0
    %301 = vmatpush2.bf16.msra.mxu0 0
    %302 = vmatprep.mubr.bf16.mxu0 0
    %303 = vmatmul.mubr.bf16.gmra.mxu0 %v186
    %v304 = vpop.f32.mrf.mxu0
    %v305 = vadd.f32 %v115, %v304
    %v306 = vpop.f32.mrf.mxu0
    %v307 = vadd.f32 %v119, %v306
    %v308 = vpop.f32.mrf.mxu0
    %v309 = vadd.f32 %v115, %v308
    %v310 = vpop.f32.mrf.mxu0
    %v311 = vadd.f32 %v119, %v310
    %312 = vmatprep.mubr.bf16.mxu0 0
    %313 = vmatmul.mubr.bf16.gmra.mxu0 %v189
    %v314 = vpop.f32.mrf.mxu0
    %v315 = vadd.f32 %v115, %v314
    %v316 = vpop.f32.mrf.mxu0
    %v317 = vadd.f32 %v119, %v316
    %v318 = vpop.f32.mrf.mxu0
    %v319 = vadd.f32 %v115, %v318
    %v320 = vpop.f32.mrf.mxu0
    %v321 = vadd.f32 %v119, %v320
    %322 = vmatprep.mubr.bf16.mxu0 0
    %323 = vmatmul.mubr.bf16.gmra.mxu0 %v192
    %v324 = vpop.f32.mrf.mxu0
    %v325 = vadd.f32 %v115, %v324
    %v326 = vpop.f32.mrf.mxu0
    %v327 = vadd.f32 %v119, %v326
    %v328 = vpop.f32.mrf.mxu0
    %v329 = vadd.f32 %v115, %v328
    %v330 = vpop.f32.mrf.mxu0
    %v331 = vadd.f32 %v119, %v330
    %332 = vmatprep.mubr.bf16.mxu0 0
    %333 = vmatmul.mubr.bf16.gmra.mxu0 %v195
    %v334 = vpop.f32.mrf.mxu0
    %v335 = vadd.f32 %v115, %v334
    %v336 = vpop.f32.mrf.mxu0
    %v337 = vadd.f32 %v119, %v336
    %v338 = vpop.f32.mrf.mxu0
    %v339 = vadd.f32 %v115, %v338
    %v340 = vpop.f32.mrf.mxu0
    %v341 = vadd.f32 %v119, %v340
    %342 = vdwg.mxu0
    %343 = vst [vmem:[#allocation2] sm:$0xff] %v232
    %344 = vst [vmem:[#allocation2 + $0x8] sm:$0xff] %v234
    %345 = vst [vmem:[#allocation2 + $0x10] sm:$0xff] %v305
    %346 = vst [vmem:[#allocation2 + $0x18] sm:$0xff] %v307
    %347 = vst [vmem:[#allocation2 + $0x20] sm:$0xff] %v236
    %348 = vst [vmem:[#allocation2 + $0x28] sm:$0xff] %v238
    %349 = vst [vmem:[#allocation2 + $0x30] sm:$0xff] %v309
    %350 = vst [vmem:[#allocation2 + $0x38] sm:$0xff] %v311
    %351 = vst [vmem:[#allocation2 + $0x40] sm:$0xff] %v242
    %352 = vst [vmem:[#allocation2 + $0x48] sm:$0xff] %v244
    %353 = vst [vmem:[#allocation2 + $0x50] sm:$0xff] %v315
    %354 = vst [vmem:[#allocation2 + $0x58] sm:$0xff] %v317
    %355 = vst [vmem:[#allocation2 + $0x60] sm:$0xff] %v246
    %356 = vst [vmem:[#allocation2 + $0x68] sm:$0xff] %v248
    %357 = vst [vmem:[#allocation2 + $0x70] sm:$0xff] %v319
    %358 = vst [vmem:[#allocation2 + $0x78] sm:$0xff] %v321
    %359 = vst [vmem:[#allocation2 + $0x80] sm:$0xff] %v252
    %360 = vst [vmem:[#allocation2 + $0x88] sm:$0xff] %v254
    %361 = vst [vmem:[#allocation2 + $0x90] sm:$0xff] %v325
    %362 = vst [vmem:[#allocation2 + $0x98] sm:$0xff] %v327
    %363 = vst [vmem:[#allocation2 + $0xa0] sm:$0xff] %v256
    %364 = vst [vmem:[#allocation2 + $0xa8] sm:$0xff] %v258
    %365 = vst [vmem:[#allocation2 + $0xb0] sm:$0xff] %v329
    %366 = vst [vmem:[#allocation2 + $0xb8] sm:$0xff] %v331
    %367 = vst [vmem:[#allocation2 + $0xc0] sm:$0xff] %v262
    %368 = vst [vmem:[#allocation2 + $0xc8] sm:$0xff] %v264
    %369 = vst [vmem:[#allocation2 + $0xd0] sm:$0xff] %v335
    %370 = vst [vmem:[#allocation2 + $0xd8] sm:$0xff] %v337
    %371 = vst [vmem:[#allocation2 + $0xe0] sm:$0xff] %v266
    %372 = vst [vmem:[#allocation2 + $0xe8] sm:$0xff] %v268
    %373 = vst [vmem:[#allocation2 + $0xf0] sm:$0xff] %v339
    %374 = vst [vmem:[#allocation2 + $0xf8] sm:$0xff] %v341
    %v375 = vld [vmem:[#allocation6] sm:$0xff]
    %v376 = vld [vmem:[#allocation6 + $0x8] sm:$0xff]
    %v377 = vld [vmem:[#allocation6 + $0x10] sm:$0xff]
    %v378 = vld [vmem:[#allocation6 + $0x18] sm:$0xff]
    %v379 = vld [vmem:[#allocation6 + $0x20] sm:$0xff]
    %v380 = vld [vmem:[#allocation6 + $0x28] sm:$0xff]
    %v381 = vld [vmem:[#allocation6 + $0x30] sm:$0xff]
    %v382 = vld [vmem:[#allocation6 + $0x38] sm:$0xff]
    %v383 = vld [vmem:[#allocation6 + $0x40] sm:$0xff]
    %v384 = vld [vmem:[#allocation6 + $0x48] sm:$0xff]
    %v385 = vld [vmem:[#allocation6 + $0x50] sm:$0xff]
    %v386 = vld [vmem:[#allocation6 + $0x58] sm:$0xff]
    %v387 = vld [vmem:[#allocation6 + $0x60] sm:$0xff]
    %v388 = vld [vmem:[#allocation6 + $0x68] sm:$0xff]
    %v389 = vld [vmem:[#allocation6 + $0x70] sm:$0xff]
    %v390 = vld [vmem:[#allocation6 + $0x78] sm:$0xff]
    %v391 = vld [vmem:[#allocation6 + $0x80] sm:$0xff]
    %v392 = vld [vmem:[#allocation6 + $0x88] sm:$0xff]
    %v393 = vld [vmem:[#allocation6 + $0x90] sm:$0xff]
    %v394 = vld [vmem:[#allocation6 + $0x98] sm:$0xff]
    %v395 = vld [vmem:[#allocation6 + $0xa0] sm:$0xff]
    %v396 = vld [vmem:[#allocation6 + $0xa8] sm:$0xff]
    %v397 = vld [vmem:[#allocation6 + $0xb0] sm:$0xff]
    %v398 = vld [vmem:[#allocation6 + $0xb8] sm:$0xff]
    %v399 = vld [vmem:[#allocation6 + $0xc0] sm:$0xff]
    %v400 = vld [vmem:[#allocation6 + $0xc8] sm:$0xff]
    %v401 = vld [vmem:[#allocation6 + $0xd0] sm:$0xff]
    %v402 = vld [vmem:[#allocation6 + $0xd8] sm:$0xff]
    %v403 = vld [vmem:[#allocation6 + $0xe0] sm:$0xff]
    %v404 = vld [vmem:[#allocation6 + $0xe8] sm:$0xff]
    %v405 = vld [vmem:[#allocation6 + $0xf0] sm:$0xff]
    %v406 = vld [vmem:[#allocation6 + $0xf8] sm:$0xff]
    %v407 = vld [vmem:[#allocation8] sm:$0xff]
    %v408 = vld [vmem:[#allocation8 + $0x8] sm:$0xff]
    %v409 = vld [vmem:[#allocation8 + $0x10] sm:$0xff]
    %v410 = vld [vmem:[#allocation8 + $0x18] sm:$0xff]
    %v411 = vld [vmem:[#allocation8 + $0x20] sm:$0xff]
    %v412 = vld [vmem:[#allocation8 + $0x28] sm:$0xff]
    %v413 = vld [vmem:[#allocation8 + $0x30] sm:$0xff]
    %v414 = vld [vmem:[#allocation8 + $0x38] sm:$0xff]
    %v415 = vld [vmem:[#allocation8 + $0x40] sm:$0xff]
    %v416 = vld [vmem:[#allocation8 + $0x48] sm:$0xff]
    %v417 = vld [vmem:[#allocation8 + $0x50] sm:$0xff]
    %v418 = vld [vmem:[#allocation8 + $0x58] sm:$0xff]
    %v419 = vld [vmem:[#allocation8 + $0x60] sm:$0xff]
    %v420 = vld [vmem:[#allocation8 + $0x68] sm:$0xff]
    %v421 = vld [vmem:[#allocation8 + $0x70] sm:$0xff]
    %v422 = vld [vmem:[#allocation8 + $0x78] sm:$0xff]
    %v423 = vld [vmem:[#allocation8 + $0x80] sm:$0xff]
    %v424 = vld [vmem:[#allocation8 + $0x88] sm:$0xff]
    %v425 = vld [vmem:[#allocation8 + $0x90] sm:$0xff]
    %v426 = vld [vmem:[#allocation8 + $0x98] sm:$0xff]
    %v427 = vld [vmem:[#allocation8 + $0xa0] sm:$0xff]
    %v428 = vld [vmem:[#allocation8 + $0xa8] sm:$0xff]
    %v429 = vld [vmem:[#allocation8 + $0xb0] sm:$0xff]
    %v430 = vld [vmem:[#allocation8 + $0xb8] sm:$0xff]
    %v431 = vld [vmem:[#allocation8 + $0xc0] sm:$0xff]
    %v432 = vld [vmem:[#allocation8 + $0xc8] sm:$0xff]
    %v433 = vld [vmem:[#allocation8 + $0xd0] sm:$0xff]
    %v434 = vld [vmem:[#allocation8 + $0xd8] sm:$0xff]
    %v435 = vld [vmem:[#allocation8 + $0xe0] sm:$0xff]
    %v436 = vld [vmem:[#allocation8 + $0xe8] sm:$0xff]
    %v437 = vld [vmem:[#allocation8 + $0xf0] sm:$0xff]
    %v438 = vld [vmem:[#allocation8 + $0xf8] sm:$0xff]
    %v439 = vld [vmem:[#allocation8 + $0x100] sm:$0xff]
    %v440 = vld [vmem:[#allocation8 + $0x108] sm:$0xff]
    %v441 = vld [vmem:[#allocation8 + $0x110] sm:$0xff]
    %v442 = vld [vmem:[#allocation8 + $0x118] sm:$0xff]
    %v443 = vld [vmem:[#allocation8 + $0x120] sm:$0xff]
    %v444 = vld [vmem:[#allocation8 + $0x128] sm:$0xff]
    %v445 = vld [vmem:[#allocation8 + $0x130] sm:$0xff]
    %v446 = vld [vmem:[#allocation8 + $0x138] sm:$0xff]
    %v447 = vld [vmem:[#allocation8 + $0x140] sm:$0xff]
    %v448 = vld [vmem:[#allocation8 + $0x148] sm:$0xff]
    %v449 = vld [vmem:[#allocation8 + $0x150] sm:$0xff]
    %v450 = vld [vmem:[#allocation8 + $0x158] sm:$0xff]
    %v451 = vld [vmem:[#allocation8 + $0x160] sm:$0xff]
    %v452 = vld [vmem:[#allocation8 + $0x168] sm:$0xff]
    %v453 = vld [vmem:[#allocation8 + $0x170] sm:$0xff]
    %v454 = vld [vmem:[#allocation8 + $0x178] sm:$0xff]
    %v455 = vld [vmem:[#allocation8 + $0x180] sm:$0xff]
    %v456 = vld [vmem:[#allocation8 + $0x188] sm:$0xff]
    %v457 = vld [vmem:[#allocation8 + $0x190] sm:$0xff]
    %v458 = vld [vmem:[#allocation8 + $0x198] sm:$0xff]
    %v459 = vld [vmem:[#allocation8 + $0x1a0] sm:$0xff]
    %v460 = vld [vmem:[#allocation8 + $0x1a8] sm:$0xff]
    %v461 = vld [vmem:[#allocation8 + $0x1b0] sm:$0xff]
    %v462 = vld [vmem:[#allocation8 + $0x1b8] sm:$0xff]
    %v463 = vld [vmem:[#allocation8 + $0x1c0] sm:$0xff]
    %v464 = vld [vmem:[#allocation8 + $0x1c8] sm:$0xff]
    %v465 = vld [vmem:[#allocation8 + $0x1d0] sm:$0xff]
    %v466 = vld [vmem:[#allocation8 + $0x1d8] sm:$0xff]
    %v467 = vld [vmem:[#allocation8 + $0x1e0] sm:$0xff]
    %v468 = vld [vmem:[#allocation8 + $0x1e8] sm:$0xff]
    %v469 = vld [vmem:[#allocation8 + $0x1f0] sm:$0xff]
    %v470 = vld [vmem:[#allocation8 + $0x1f8] sm:$0xff]
    %v471 = vld [vmem:[%s5] sm:$0xf]
    %v472 = vld [vmem:[#allocation9] sm:$0xff]
    %v473 = vld [vmem:[#allocation9 + $0x8] sm:$0xff]
    %v474 = vld [vmem:[#allocation9 + $0x10] sm:$0xff]
    %v475 = vld [vmem:[#allocation9 + $0x18] sm:$0xff]
    %v476 = vld [vmem:[#allocation9 + $0x20] sm:$0xff]
    %v477 = vld [vmem:[#allocation9 + $0x28] sm:$0xff]
    %v478 = vld [vmem:[#allocation9 + $0x30] sm:$0xff]
    %v479 = vld [vmem:[#allocation9 + $0x38] sm:$0xff]
    %v480 = vld [vmem:[#allocation9 + $0x40] sm:$0xff]
    %v481 = vld [vmem:[#allocation9 + $0x48] sm:$0xff]
    %v482 = vld [vmem:[#allocation9 + $0x50] sm:$0xff]
    %v483 = vld [vmem:[#allocation9 + $0x58] sm:$0xff]
    %v484 = vld [vmem:[#allocation9 + $0x60] sm:$0xff]
    %v485 = vld [vmem:[#allocation9 + $0x68] sm:$0xff]
    %v486 = vld [vmem:[#allocation9 + $0x70] sm:$0xff]
    %v487 = vld [vmem:[#allocation9 + $0x78] sm:$0xff]
    %v488 = vld [vmem:[#allocation9 + $0x80] sm:$0xff]
    %v489 = vld [vmem:[#allocation9 + $0x88] sm:$0xff]
    %v490 = vld [vmem:[#allocation9 + $0x90] sm:$0xff]
    %v491 = vld [vmem:[#allocation9 + $0x98] sm:$0xff]
    %v492 = vld [vmem:[#allocation9 + $0xa0] sm:$0xff]
    %v493 = vld [vmem:[#allocation9 + $0xa8] sm:$0xff]
    %v494 = vld [vmem:[#allocation9 + $0xb0] sm:$0xff]
    %v495 = vld [vmem:[#allocation9 + $0xb8] sm:$0xff]
    %v496 = vld [vmem:[#allocation9 + $0xc0] sm:$0xff]
    %v497 = vld [vmem:[#allocation9 + $0xc8] sm:$0xff]
    %v498 = vld [vmem:[#allocation9 + $0xd0] sm:$0xff]
    %v499 = vld [vmem:[#allocation9 + $0xd8] sm:$0xff]
    %v500 = vld [vmem:[#allocation9 + $0xe0] sm:$0xff]
    %v501 = vld [vmem:[#allocation9 + $0xe8] sm:$0xff]
    %v502 = vld [vmem:[#allocation9 + $0xf0] sm:$0xff]
    %v503 = vld [vmem:[#allocation9 + $0xf8] sm:$0xff]
    %v504 = vld [vmem:[#allocation9 + $0x100] sm:$0xff]
    %v505 = vld [vmem:[#allocation9 + $0x108] sm:$0xff]
    %v506 = vld [vmem:[#allocation9 + $0x110] sm:$0xff]
    %v507 = vld [vmem:[#allocation9 + $0x118] sm:$0xff]
    %v508 = vld [vmem:[#allocation9 + $0x120] sm:$0xff]
    %v509 = vld [vmem:[#allocation9 + $0x128] sm:$0xff]
    %v510 = vld [vmem:[#allocation9 + $0x130] sm:$0xff]
    %v511 = vld [vmem:[#allocation9 + $0x138] sm:$0xff]
    %v512 = vld [vmem:[#allocation9 + $0x140] sm:$0xff]
    %v513 = vld [vmem:[#allocation9 + $0x148] sm:$0xff]
    %v514 = vld [vmem:[#allocation9 + $0x150] sm:$0xff]
    %v515 = vld [vmem:[#allocation9 + $0x158] sm:$0xff]
    %v516 = vld [vmem:[#allocation9 + $0x160] sm:$0xff]
    %v517 = vld [vmem:[#allocation9 + $0x168] sm:$0xff]
    %v518 = vld [vmem:[#allocation9 + $0x170] sm:$0xff]
    %v519 = vld [vmem:[#allocation9 + $0x178] sm:$0xff]
    %v520 = vld [vmem:[#allocation9 + $0x180] sm:$0xff]
    %v521 = vld [vmem:[#allocation9 + $0x188] sm:$0xff]
    %v522 = vld [vmem:[#allocation9 + $0x190] sm:$0xff]
    %v523 = vld [vmem:[#allocation9 + $0x198] sm:$0xff]
    %v524 = vld [vmem:[#allocation9 + $0x1a0] sm:$0xff]
    %v525 = vld [vmem:[#allocation9 + $0x1a8] sm:$0xff]
    %v526 = vld [vmem:[#allocation9 + $0x1b0] sm:$0xff]
    %v527 = vld [vmem:[#allocation9 + $0x1b8] sm:$0xff]
    %v528 = vld [vmem:[#allocation9 + $0x1c0] sm:$0xff]
    %v529 = vld [vmem:[#allocation9 + $0x1c8] sm:$0xff]
    %v530 = vld [vmem:[#allocation9 + $0x1d0] sm:$0xff]
    %v531 = vld [vmem:[#allocation9 + $0x1d8] sm:$0xff]
    %v532 = vld [vmem:[#allocation9 + $0x1e0] sm:$0xff]
    %v533 = vld [vmem:[#allocation9 + $0x1e8] sm:$0xff]
    %v534 = vld [vmem:[#allocation9 + $0x1f0] sm:$0xff]
    %v535 = vld [vmem:[#allocation9 + $0x1f8] sm:$0xff]
    %v536 = vld [vmem:[%s7] sm:$0xf]
    %s537 = smul.u32 0, 4
    %s538 = smul.addr %s537, 8
    %s539 = scalar_lea.vmem [#allocation2], %s538
    %v540 = vld [vmem:[%s539] sm:$0xff]
    %v541 = vld [vmem:[%s539 + $0x8] sm:$0xff]
    %v542 = vld [vmem:[%s539 + $0x10] sm:$0xff]
    %v543 = vld [vmem:[%s539 + $0x18] sm:$0xff]
    %v576 = vunpack.c.l.b16 %v375
    %v577 = vunpack.c.h.b16 %v375
    %v578 = vunpack.c.l.b16 %v376
    %v579 = vunpack.c.h.b16 %v376
    %v580 = vunpack.c.l.b16 %v377
    %v581 = vunpack.c.h.b16 %v377
    %v582 = vunpack.c.l.b16 %v378
    %v583 = vunpack.c.h.b16 %v378
    %v584 = vunpack.c.l.b16 %v379
    %v585 = vunpack.c.h.b16 %v379
    %v586 = vunpack.c.l.b16 %v380
    %v587 = vunpack.c.h.b16 %v380
    %v588 = vunpack.c.l.b16 %v381
    %v589 = vunpack.c.h.b16 %v381
    %v590 = vunpack.c.l.b16 %v382
    %v591 = vunpack.c.h.b16 %v382
    %v592 = vunpack.c.l.b16 %v383
    %v593 = vunpack.c.h.b16 %v383
    %v594 = vunpack.c.l.b16 %v384
    %v595 = vunpack.c.h.b16 %v384
    %v596 = vunpack.c.l.b16 %v385
    %v597 = vunpack.c.h.b16 %v385
    %v598 = vunpack.c.l.b16 %v386
    %v599 = vunpack.c.h.b16 %v386
    %v600 = vunpack.c.l.b16 %v387
    %v601 = vunpack.c.h.b16 %v387
    %v602 = vunpack.c.l.b16 %v388
    %v603 = vunpack.c.h.b16 %v388
    %v604 = vunpack.c.l.b16 %v389
    %v605 = vunpack.c.h.b16 %v389
    %v606 = vunpack.c.l.b16 %v390
    %v607 = vunpack.c.h.b16 %v390
    %v608 = vunpack.c.l.b16 %v391
    %v609 = vunpack.c.h.b16 %v391
    %v610 = vunpack.c.l.b16 %v392
    %v611 = vunpack.c.h.b16 %v392
    %v612 = vunpack.c.l.b16 %v393
    %v613 = vunpack.c.h.b16 %v393
    %v614 = vunpack.c.l.b16 %v394
    %v615 = vunpack.c.h.b16 %v394
    %v616 = vunpack.c.l.b16 %v395
    %v617 = vunpack.c.h.b16 %v395
    %v618 = vunpack.c.l.b16 %v396
    %v619 = vunpack.c.h.b16 %v396
    %v620 = vunpack.c.l.b16 %v397
    %v621 = vunpack.c.h.b16 %v397
    %v622 = vunpack.c.l.b16 %v398
    %v623 = vunpack.c.h.b16 %v398
    %v624 = vunpack.c.l.b16 %v399
    %v625 = vunpack.c.h.b16 %v399
    %v626 = vunpack.c.l.b16 %v400
    %v627 = vunpack.c.h.b16 %v400
    %v628 = vunpack.c.l.b16 %v401
    %v629 = vunpack.c.h.b16 %v401
    %v630 = vunpack.c.l.b16 %v402
    %v631 = vunpack.c.h.b16 %v402
    %v632 = vunpack.c.l.b16 %v403
    %v633 = vunpack.c.h.b16 %v403
    %v634 = vunpack.c.l.b16 %v404
    %v635 = vunpack.c.h.b16 %v404
    %v636 = vunpack.c.l.b16 %v405
    %v637 = vunpack.c.h.b16 %v405
    %v638 = vunpack.c.l.b16 %v406
    %v639 = vunpack.c.h.b16 %v406
    %v640 = vpack.c.b16 %v580, %v576
    %v641 = vpack.c.b16 %v581, %v577
    %v642 = vpack.c.b16 %v582, %v578
    %v643 = vpack.c.b16 %v583, %v579
    %v644 = vpack.c.b16 %v588, %v584
    %v645 = vpack.c.b16 %v589, %v585
    %v646 = vpack.c.b16 %v590, %v586
    %v647 = vpack.c.b16 %v591, %v587
    %v648 = vpack.c.b16 %v596, %v592
    %v649 = vpack.c.b16 %v597, %v593
    %v650 = vpack.c.b16 %v598, %v594
    %v651 = vpack.c.b16 %v599, %v595
    %v652 = vpack.c.b16 %v604, %v600
    %v653 = vpack.c.b16 %v605, %v601
    %v654 = vpack.c.b16 %v606, %v602
    %v655 = vpack.c.b16 %v607, %v603
    %v656 = vpack.c.b16 %v612, %v608
    %v657 = vpack.c.b16 %v613, %v609
    %v658 = vpack.c.b16 %v614, %v610
    %v659 = vpack.c.b16 %v615, %v611
    %v660 = vpack.c.b16 %v620, %v616
    %v661 = vpack.c.b16 %v621, %v617
    %v662 = vpack.c.b16 %v622, %v618
    %v663 = vpack.c.b16 %v623, %v619
    %v664 = vpack.c.b16 %v628, %v624
    %v665 = vpack.c.b16 %v629, %v625
    %v666 = vpack.c.b16 %v630, %v626
    %v667 = vpack.c.b16 %v631, %v627
    %v668 = vpack.c.b16 %v636, %v632
    %v669 = vpack.c.b16 %v637, %v633
    %v670 = vpack.c.b16 %v638, %v634
    %v671 = vpack.c.b16 %v639, %v635
    %704 = vmatprep.subr.bf16.mxu0 %v669
    %705 = vmatpush1.bf16.msra.mxu0 %v668
    %706 = vmatprep.subr.bf16.mxu0 %v665
    %707 = vmatpush1.bf16.msra.mxu0 %v664
    %708 = vmatprep.subr.bf16.mxu0 %v661
    %709 = vmatpush1.bf16.msra.mxu0 %v660
    %710 = vmatprep.subr.bf16.mxu0 %v657
    %711 = vmatpush1.bf16.msra.mxu0 %v656
    %712 = vmatprep.subr.bf16.mxu0 %v653
    %713 = vmatpush1.bf16.msra.mxu0 %v652
    %714 = vmatprep.subr.bf16.mxu0 %v649
    %715 = vmatpush1.bf16.msra.mxu0 %v648
    %716 = vmatprep.subr.bf16.mxu0 %v645
    %717 = vmatpush1.bf16.msra.mxu0 %v644
    %718 = vmatprep.subr.bf16.mxu0 %v641
    %719 = vmatpush1.bf16.msra.mxu0 %v640
    %720 = vmatprep.subr.bf16.mxu0 0
    %721 = vmatpush2.bf16.msra.mxu0 0
    %722 = vmatprep.subr.bf16.mxu0 0
    %723 = vmatpush2.bf16.msra.mxu0 0
    %724 = vmatprep.subr.bf16.mxu0 0
    %725 = vmatpush2.bf16.msra.mxu0 0
    %726 = vmatprep.subr.bf16.mxu0 0
    %727 = vmatpush2.bf16.msra.mxu0 0
    %728 = vmatprep.subr.bf16.mxu0 0
    %729 = vmatpush2.bf16.msra.mxu0 0
    %730 = vmatprep.subr.bf16.mxu0 0
    %731 = vmatpush2.bf16.msra.mxu0 0
    %732 = vmatprep.subr.bf16.mxu0 0
    %733 = vmatpush2.bf16.msra.mxu0 0
    %734 = vmatprep.subr.bf16.mxu0 0
    %735 = vmatpush2.bf16.msra.mxu0 0
    %736 = vmatprep.mubr.bf16.mxu0 0
    %737 = vmatmul.mubr.bf16.gmra.mxu0 0
    %v738 = vpop.f32.mrf.mxu0
    %v739 = vadd.f32 0.0, %v738
    %v740 = vpop.f32.mrf.mxu0
    %v741 = vadd.f32 0.0, %v740
    %v742 = vpop.f32.mrf.mxu0
    %v743 = vpop.f32.mrf.mxu0
    %744 = vdwg.mxu0
    %745 = vmatprep.subr.bf16.mxu0 %v671
    %746 = vmatpush1.bf16.msra.mxu0 %v670
    %747 = vmatprep.subr.bf16.mxu0 %v667
    %748 = vmatpush1.bf16.msra.mxu0 %v666
    %749 = vmatprep.subr.bf16.mxu0 %v663
    %750 = vmatpush1.bf16.msra.mxu0 %v662
    %751 = vmatprep.subr.bf16.mxu0 %v659
    %752 = vmatpush1.bf16.msra.mxu0 %v658
    %753 = vmatprep.subr.bf16.mxu0 %v655
    %754 = vmatpush1.bf16.msra.mxu0 %v654
    %755 = vmatprep.subr.bf16.mxu0 %v651
    %756 = vmatpush1.bf16.msra.mxu0 %v650
    %757 = vmatprep.subr.bf16.mxu0 %v647
    %758 = vmatpush1.bf16.msra.mxu0 %v646
    %759 = vmatprep.subr.bf16.mxu0 %v643
    %760 = vmatpush1.bf16.msra.mxu0 %v642
    %761 = vmatprep.subr.bf16.mxu0 0
    %762 = vmatpush2.bf16.msra.mxu0 0
    %763 = vmatprep.subr.bf16.mxu0 0
    %764 = vmatpush2.bf16.msra.mxu0 0
    %765 = vmatprep.subr.bf16.mxu0 0
    %766 = vmatpush2.bf16.msra.mxu0 0
    %767 = vmatprep.subr.bf16.mxu0 0
    %768 = vmatpush2.bf16.msra.mxu0 0
    %769 = vmatprep.subr.bf16.mxu0 0
    %770 = vmatpush2.bf16.msra.mxu0 0
    %771 = vmatprep.subr.bf16.mxu0 0
    %772 = vmatpush2.bf16.msra.mxu0 0
    %773 = vmatprep.subr.bf16.mxu0 0
    %774 = vmatpush2.bf16.msra.mxu0 0
    %775 = vmatprep.subr.bf16.mxu0 0
    %776 = vmatpush2.bf16.msra.mxu0 0
    %777 = vmatprep.mubr.bf16.mxu0 0
    %778 = vmatmul.mubr.bf16.gmra.mxu0 0
    %v779 = vpop.f32.mrf.mxu0
    %v780 = vadd.f32 0.0, %v779
    %v781 = vpop.f32.mrf.mxu0
    %v782 = vadd.f32 0.0, %v781
    %v783 = vpop.f32.mrf.mxu0
    %v784 = vpop.f32.mrf.mxu0
    %785 = vdwg.mxu0
    %v786 = vadd.f32 %v540, %v739
    %v787 = vadd.f32 %v541, %v741
    %v788 = vadd.f32 %v542, %v780
    %v789 = vadd.f32 %v543, %v782
    %v790 = vxor.u32 %v786, 2147483648
    %v791 = vxor.u32 %v787, 2147483648
    %v792 = vxor.u32 %v788, 2147483648
    %v793 = vmul.f32 %v790, 1.442695
    %v794 = vpow.pop %v793
    %v795 = vmul.f32 %v791, 1.442695
    %v796 = vpow.pop %v795
    %v797 = vmul.f32 %v792, 1.442695
    %v798 = vpow.pop %v797
    %v799 = vadd.f32 %v794, 1.0
    %v800 = vadd.f32 %v796, 1.0
    %v801 = vadd.f32 %v798, 1.0
    %v802 = vrcp.pop %v799
    %v803 = vmul.f32 1.0, %v802
    %v804 = vrcp.pop %v800
    %v805 = vmul.f32 1.0, %v804
    %v806 = vrcp.pop %v801
    %v807 = vmul.f32 1.0, %v806
    %v808 = vtanh.pop %v789
    %v809 = vmul.f32 %v805, 0.0
    %v810 = vmul.f32 %v803, %v808
    %v811 = vadd.f32 %v809, %v810
    %v812 = vtanh.pop %v811
    %v813 = vmul.f32 %v807, %v812
    %s814 = smul.u32 1, 4
    %s815 = smul.addr %s814, 8
    %s816 = scalar_lea.vmem [#allocation2], %s815
    %v817 = vld [vmem:[%s816] sm:$0xff]
    %v818 = vld [vmem:[%s816 + $0x8] sm:$0xff]
    %v819 = vld [vmem:[%s816 + $0x10] sm:$0xff]
    %v820 = vld [vmem:[%s816 + $0x18] sm:$0xff]
    %v821 = vpack.c.bf16 %v813, %v813
    %822 = vmatprep.subr.bf16.mxu0 %v669
    %823 = vmatpush1.bf16.msra.mxu0 %v668
    %824 = vmatprep.subr.bf16.mxu0 %v665
    %825 = vmatpush1.bf16.msra.mxu0 %v664
    %826 = vmatprep.subr.bf16.mxu0 %v661
    %827 = vmatpush1.bf16.msra.mxu0 %v660
    %828 = vmatprep.subr.bf16.mxu0 %v657
    %829 = vmatpush1.bf16.msra.mxu0 %v656
    %830 = vmatprep.subr.bf16.mxu0 %v653
    %831 = vmatpush1.bf16.msra.mxu0 %v652
    %832 = vmatprep.subr.bf16.mxu0 %v649
    %833 = vmatpush1.bf16.msra.mxu0 %v648
    %834 = vmatprep.subr.bf16.mxu0 %v645
    %835 = vmatpush1.bf16.msra.mxu0 %v644
    %836 = vmatprep.subr.bf16.mxu0 %v641
    %837 = vmatpush1.bf16.msra.mxu0 %v640
    %838 = vmatprep.subr.bf16.mxu0 0
    %839 = vmatpush2.bf16.msra.mxu0 0
    %840 = vmatprep.subr.bf16.mxu0 0
    %841 = vmatpush2.bf16.msra.mxu0 0
    %842 = vmatprep.subr.bf16.mxu0 0
    %843 = vmatpush2.bf16.msra.mxu0 0
    %844 = vmatprep.subr.bf16.mxu0 0
    %845 = vmatpush2.bf16.msra.mxu0 0
    %846 = vmatprep.subr.bf16.mxu0 0
    %847 = vmatpush2.bf16.msra.mxu0 0
    %848 = vmatprep.subr.bf16.mxu0 0
    %849 = vmatpush2.bf16.msra.mxu0 0
    %850 = vmatprep.subr.bf16.mxu0 0
    %851 = vmatpush2.bf16.msra.mxu0 0
    %852 = vmatprep.subr.bf16.mxu0 0
    %853 = vmatpush2.bf16.msra.mxu0 0
    %854 = vmatprep.mubr.bf16.mxu0 0
    %855 = vmatmul.mubr.bf16.gmra.mxu0 %v821
    %v856 = vpop.f32.mrf.mxu0
    %v857 = vadd.f32 0.0, %v856
    %v858 = vpop.f32.mrf.mxu0
    %v859 = vadd.f32 0.0, %v858
    %v860 = vpop.f32.mrf.mxu0
    %v861 = vpop.f32.mrf.mxu0
    %862 = vdwg.mxu0
    %863 = vmatprep.subr.bf16.mxu0 %v671
    %864 = vmatpush1.bf16.msra.mxu0 %v670
    %865 = vmatprep.subr.bf16.mxu0 %v667
    %866 = vmatpush1.bf16.msra.mxu0 %v666
    %867 = vmatprep.subr.bf16.mxu0 %v663
    %868 = vmatpush1.bf16.msra.mxu0 %v662
    %869 = vmatprep.subr.bf16.mxu0 %v659
    %870 = vmatpush1.bf16.msra.mxu0 %v658
    %871 = vmatprep.subr.bf16.mxu0 %v655
    %872 = vmatpush1.bf16.msra.mxu0 %v654
    %873 = vmatprep.subr.bf16.mxu0 %v651
    %874 = vmatpush1.bf16.msra.mxu0 %v650
    %875 = vmatprep.subr.bf16.mxu0 %v647
    %876 = vmatpush1.bf16.msra.mxu0 %v646
    %877 = vmatprep.subr.bf16.mxu0 %v643
    %878 = vmatpush1.bf16.msra.mxu0 %v642
    %879 = vmatprep.subr.bf16.mxu0 0
    %880 = vmatpush2.bf16.msra.mxu0 0
    %881 = vmatprep.subr.bf16.mxu0 0
    %882 = vmatpush2.bf16.msra.mxu0 0
    %883 = vmatprep.subr.bf16.mxu0 0
    %884 = vmatpush2.bf16.msra.mxu0 0
    %885 = vmatprep.subr.bf16.mxu0 0
    %886 = vmatpush2.bf16.msra.mxu0 0
    %887 = vmatprep.subr.bf16.mxu0 0
    %888 = vmatpush2.bf16.msra.mxu0 0
    %889 = vmatprep.subr.bf16.mxu0 0
    %890 = vmatpush2.bf16.msra.mxu0 0
    %891 = vmatprep.subr.bf16.mxu0 0
    %892 = vmatpush2.bf16.msra.mxu0 0
    %893 = vmatprep.subr.bf16.mxu0 0
    %894 = vmatpush2.bf16.msra.mxu0 0
    %895 = vmatprep.mubr.bf16.mxu0 0
    %896 = vmatmul.mubr.bf16.gmra.mxu0 %v821
    %v897 = vpop.f32.mrf.mxu0
    %v898 = vadd.f32 0.0, %v897
    %v899 = vpop.f32.mrf.mxu0
    %v900 = vadd.f32 0.0, %v899
    %v901 = vpop.f32.mrf.mxu0
    %v902 = vpop.f32.mrf.mxu0
    %903 = vdwg.mxu0
    %v904 = vadd.f32 %v817, %v857
    %v905 = vadd.f32 %v818, %v859
    %v906 = vadd.f32 %v819, %v898
    %v907 = vadd.f32 %v820, %v900
    %v908 = vxor.u32 %v904, 2147483648
    %v909 = vxor.u32 %v905, 2147483648
    %v910 = vxor.u32 %v906, 2147483648
    %v911 = vmul.f32 %v908, 1.442695
    %v912 = vpow.pop %v911
    %v913 = vmul.f32 %v909, 1.442695
    %v914 = vpow.pop %v913
    %v915 = vmul.f32 %v910, 1.442695
    %v916 = vpow.pop %v915
    %v917 = vadd.f32 %v912, 1.0
    %v918 = vadd.f32 %v914, 1.0
    %v919 = vadd.f32 %v916, 1.0
    %v920 = vrcp.pop %v917
    %v921 = vmul.f32 1.0, %v920
    %v922 = vrcp.pop %v918
    %v923 = vmul.f32 1.0, %v922
    %v924 = vrcp.pop %v919
    %v925 = vmul.f32 1.0, %v924
    %v926 = vtanh.pop %v907
    %v927 = vmul.f32 %v923, %v811
    %v928 = vmul.f32 %v921, %v926
    %v929 = vadd.f32 %v927, %v928
    %v930 = vtanh.pop %v929
    %v931 = vmul.f32 %v925, %v930
    %v932 = vpack.c.bf16 0.0, 0.0
    %v934 = vlaneseq
    %v935 = vshrl.u32 %v934, 7
    %v936 = vsub.s32 0, %v935
    %v937 = vrot.slane %v471, %v936
    %v938 = vlaneseq
    %v939 = vshrl.u32 %v938, 7
    %v940 = vsub.s32 1, %v939
    %v941 = vrot.slane %v471, %v940
    %v942 = vlaneseq
    %v943 = vshrl.u32 %v942, 7
    %v944 = vsub.s32 2, %v943
    %v945 = vrot.slane %v471, %v944
    %v946 = vlaneseq
    %v947 = vshrl.u32 %v946, 7
    %v948 = vsub.s32 3, %v947
    %v949 = vrot.slane %v471, %v948
    %v1018 = vunpack.c.l.b16 %v407
    %v1019 = vunpack.c.h.b16 %v407
    %v1020 = vunpack.c.l.b16 %v408
    %v1021 = vunpack.c.h.b16 %v408
    %v1022 = vunpack.c.l.b16 %v409
    %v1023 = vunpack.c.h.b16 %v409
    %v1024 = vunpack.c.l.b16 %v410
    %v1025 = vunpack.c.h.b16 %v410
    %v1026 = vunpack.c.l.b16 %v411
    %v1027 = vunpack.c.h.b16 %v411
    %v1028 = vunpack.c.l.b16 %v412
    %v1029 = vunpack.c.h.b16 %v412
    %v1030 = vunpack.c.l.b16 %v413
    %v1031 = vunpack.c.h.b16 %v413
    %v1032 = vunpack.c.l.b16 %v414
    %v1033 = vunpack.c.h.b16 %v414
    %v1034 = vunpack.c.l.b16 %v415
    %v1035 = vunpack.c.h.b16 %v415
    %v1036 = vunpack.c.l.b16 %v416
    %v1037 = vunpack.c.h.b16 %v416
    %v1038 = vunpack.c.l.b16 %v417
    %v1039 = vunpack.c.h.b16 %v417
    %v1040 = vunpack.c.l.b16 %v418
    %v1041 = vunpack.c.h.b16 %v418
    %v1042 = vunpack.c.l.b16 %v419
    %v1043 = vunpack.c.h.b16 %v419
    %v1044 = vunpack.c.l.b16 %v420
    %v1045 = vunpack.c.h.b16 %v420
    %v1046 = vunpack.c.l.b16 %v421
    %v1047 = vunpack.c.h.b16 %v421
    %v1048 = vunpack.c.l.b16 %v422
    %v1049 = vunpack.c.h.b16 %v422
    %v1050 = vunpack.c.l.b16 %v423
    %v1051 = vunpack.c.h.b16 %v423
    %v1052 = vunpack.c.l.b16 %v424
    %v1053 = vunpack.c.h.b16 %v424
    %v1054 = vunpack.c.l.b16 %v425
    %v1055 = vunpack.c.h.b16 %v425
    %v1056 = vunpack.c.l.b16 %v426
    %v1057 = vunpack.c.h.b16 %v426
    %v1058 = vunpack.c.l.b16 %v427
    %v1059 = vunpack.c.h.b16 %v427
    %v1060 = vunpack.c.l.b16 %v428
    %v1061 = vunpack.c.h.b16 %v428
    %v1062 = vunpack.c.l.b16 %v429
    %v1063 = vunpack.c.h.b16 %v429
    %v1064 = vunpack.c.l.b16 %v430
    %v1065 = vunpack.c.h.b16 %v430
    %v1066 = vunpack.c.l.b16 %v431
    %v1067 = vunpack.c.h.b16 %v431
    %v1068 = vunpack.c.l.b16 %v432
    %v1069 = vunpack.c.h.b16 %v432
    %v1070 = vunpack.c.l.b16 %v433
    %v1071 = vunpack.c.h.b16 %v433
    %v1072 = vunpack.c.l.b16 %v434
    %v1073 = vunpack.c.h.b16 %v434
    %v1074 = vunpack.c.l.b16 %v435
    %v1075 = vunpack.c.h.b16 %v435
    %v1076 = vunpack.c.l.b16 %v436
    %v1077 = vunpack.c.h.b16 %v436
    %v1078 = vunpack.c.l.b16 %v437
    %v1079 = vunpack.c.h.b16 %v437
    %v1080 = vunpack.c.l.b16 %v438
    %v1081 = vunpack.c.h.b16 %v438
    %v1082 = vunpack.c.l.b16 %v439
    %v1083 = vunpack.c.h.b16 %v439
    %v1084 = vunpack.c.l.b16 %v440
    %v1085 = vunpack.c.h.b16 %v440
    %v1086 = vunpack.c.l.b16 %v441
    %v1087 = vunpack.c.h.b16 %v441
    %v1088 = vunpack.c.l.b16 %v442
    %v1089 = vunpack.c.h.b16 %v442
    %v1090 = vunpack.c.l.b16 %v443
    %v1091 = vunpack.c.h.b16 %v443
    %v1092 = vunpack.c.l.b16 %v444
    %v1093 = vunpack.c.h.b16 %v444
    %v1094 = vunpack.c.l.b16 %v445
    %v1095 = vunpack.c.h.b16 %v445
    %v1096 = vunpack.c.l.b16 %v446
    %v1097 = vunpack.c.h.b16 %v446
    %v1098 = vunpack.c.l.b16 %v447
    %v1099 = vunpack.c.h.b16 %v447
    %v1100 = vunpack.c.l.b16 %v448
    %v1101 = vunpack.c.h.b16 %v448
    %v1102 = vunpack.c.l.b16 %v449
    %v1103 = vunpack.c.h.b16 %v449
    %v1104 = vunpack.c.l.b16 %v450
    %v1105 = vunpack.c.h.b16 %v450
    %v1106 = vunpack.c.l.b16 %v451
    %v1107 = vunpack.c.h.b16 %v451
    %v1108 = vunpack.c.l.b16 %v452
    %v1109 = vunpack.c.h.b16 %v452
    %v1110 = vunpack.c.l.b16 %v453
    %v1111 = vunpack.c.h.b16 %v453
    %v1112 = vunpack.c.l.b16 %v454
    %v1113 = vunpack.c.h.b16 %v454
    %v1114 = vunpack.c.l.b16 %v455
    %v1115 = vunpack.c.h.b16 %v455
    %v1116 = vunpack.c.l.b16 %v456
    %v1117 = vunpack.c.h.b16 %v456
    %v1118 = vunpack.c.l.b16 %v457
    %v1119 = vunpack.c.h.b16 %v457
    %v1120 = vunpack.c.l.b16 %v458
    %v1121 = vunpack.c.h.b16 %v458
    %v1122 = vunpack.c.l.b16 %v459
    %v1123 = vunpack.c.h.b16 %v459
    %v1124 = vunpack.c.l.b16 %v460
    %v1125 = vunpack.c.h.b16 %v460
    %v1126 = vunpack.c.l.b16 %v461
    %v1127 = vunpack.c.h.b16 %v461
    %v1128 = vunpack.c.l.b16 %v462
    %v1129 = vunpack.c.h.b16 %v462
    %v1130 = vunpack.c.l.b16 %v463
    %v1131 = vunpack.c.h.b16 %v463
    %v1132 = vunpack.c.l.b16 %v464
    %v1133 = vunpack.c.h.b16 %v464
    %v1134 = vunpack.c.l.b16 %v465
    %v1135 = vunpack.c.h.b16 %v465
    %v1136 = vunpack.c.l.b16 %v466
    %v1137 = vunpack.c.h.b16 %v466
    %v1138 = vunpack.c.l.b16 %v467
    %v1139 = vunpack.c.h.b16 %v467
    %v1140 = vunpack.c.l.b16 %v468
    %v1141 = vunpack.c.h.b16 %v468
    %v1142 = vunpack.c.l.b16 %v469
    %v1143 = vunpack.c.h.b16 %v469
    %v1144 = vunpack.c.l.b16 %v470
    %v1145 = vunpack.c.h.b16 %v470
    %v1146 = vpack.c.b16 %v1022, %v1018
    %v1147 = vpack.c.b16 %v1023, %v1019
    %v1148 = vpack.c.b16 %v1024, %v1020
    %v1149 = vpack.c.b16 %v1025, %v1021
    %v1150 = vpack.c.b16 %v1030, %v1026
    %v1151 = vpack.c.b16 %v1031, %v1027
    %v1152 = vpack.c.b16 %v1032, %v1028
    %v1153 = vpack.c.b16 %v1033, %v1029
    %v1154 = vpack.c.b16 %v1038, %v1034
    %v1155 = vpack.c.b16 %v1039, %v1035
    %v1156 = vpack.c.b16 %v1040, %v1036
    %v1157 = vpack.c.b16 %v1041, %v1037
    %v1158 = vpack.c.b16 %v1046, %v1042
    %v1159 = vpack.c.b16 %v1047, %v1043
    %v1160 = vpack.c.b16 %v1048, %v1044
    %v1161 = vpack.c.b16 %v1049, %v1045
    %v1162 = vpack.c.b16 %v1054, %v1050
    %v1163 = vpack.c.b16 %v1055, %v1051
    %v1164 = vpack.c.b16 %v1056, %v1052
    %v1165 = vpack.c.b16 %v1057, %v1053
    %v1166 = vpack.c.b16 %v1062, %v1058
    %v1167 = vpack.c.b16 %v1063, %v1059
    %v1168 = vpack.c.b16 %v1064, %v1060
    %v1169 = vpack.c.b16 %v1065, %v1061
    %v1170 = vpack.c.b16 %v1070, %v1066
    %v1171 = vpack.c.b16 %v1071, %v1067
    %v1172 = vpack.c.b16 %v1072, %v1068
    %v1173 = vpack.c.b16 %v1073, %v1069
    %v1174 = vpack.c.b16 %v1078, %v1074
    %v1175 = vpack.c.b16 %v1079, %v1075
    %v1176 = vpack.c.b16 %v1080, %v1076
    %v1177 = vpack.c.b16 %v1081, %v1077
    %v1178 = vpack.c.b16 %v1086, %v1082
    %v1179 = vpack.c.b16 %v1087, %v1083
    %v1180 = vpack.c.b16 %v1088, %v1084
    %v1181 = vpack.c.b16 %v1089, %v1085
    %v1182 = vpack.c.b16 %v1094, %v1090
    %v1183 = vpack.c.b16 %v1095, %v1091
    %v1184 = vpack.c.b16 %v1096, %v1092
    %v1185 = vpack.c.b16 %v1097, %v1093
    %v1186 = vpack.c.b16 %v1102, %v1098
    %v1187 = vpack.c.b16 %v1103, %v1099
    %v1188 = vpack.c.b16 %v1104, %v1100
    %v1189 = vpack.c.b16 %v1105, %v1101
    %v1190 = vpack.c.b16 %v1110, %v1106
    %v1191 = vpack.c.b16 %v1111, %v1107
    %v1192 = vpack.c.b16 %v1112, %v1108
    %v1193 = vpack.c.b16 %v1113, %v1109
    %v1194 = vpack.c.b16 %v1118, %v1114
    %v1195 = vpack.c.b16 %v1119, %v1115
    %v1196 = vpack.c.b16 %v1120, %v1116
    %v1197 = vpack.c.b16 %v1121, %v1117
    %v1198 = vpack.c.b16 %v1126, %v1122
    %v1199 = vpack.c.b16 %v1127, %v1123
    %v1200 = vpack.c.b16 %v1128, %v1124
    %v1201 = vpack.c.b16 %v1129, %v1125
    %v1202 = vpack.c.b16 %v1134, %v1130
    %v1203 = vpack.c.b16 %v1135, %v1131
    %v1204 = vpack.c.b16 %v1136, %v1132
    %v1205 = vpack.c.b16 %v1137, %v1133
    %v1206 = vpack.c.b16 %v1142, %v1138
    %v1207 = vpack.c.b16 %v1143, %v1139
    %v1208 = vpack.c.b16 %v1144, %v1140
    %v1209 = vpack.c.b16 %v1145, %v1141
    %1274 = vmatprep.subr.bf16.mxu0 %v1175
    %1275 = vmatpush1.bf16.msra.mxu0 %v1174
    %1276 = vmatprep.subr.bf16.mxu0 %v1171
    %1277 = vmatpush1.bf16.msra.mxu0 %v1170
    %1278 = vmatprep.subr.bf16.mxu0 %v1167
    %1279 = vmatpush1.bf16.msra.mxu0 %v1166
    %1280 = vmatprep.subr.bf16.mxu0 %v1163
    %1281 = vmatpush1.bf16.msra.mxu0 %v1162
    %1282 = vmatprep.subr.bf16.mxu0 %v1159
    %1283 = vmatpush1.bf16.msra.mxu0 %v1158
    %1284 = vmatprep.subr.bf16.mxu0 %v1155
    %1285 = vmatpush1.bf16.msra.mxu0 %v1154
    %1286 = vmatprep.subr.bf16.mxu0 %v1151
    %1287 = vmatpush1.bf16.msra.mxu0 %v1150
    %1288 = vmatprep.subr.bf16.mxu0 %v1147
    %1289 = vmatpush1.bf16.msra.mxu0 %v1146
    %1290 = vmatprep.subr.bf16.mxu0 %v1207
    %1291 = vmatpush2.bf16.msra.mxu0 %v1206
    %1292 = vmatprep.subr.bf16.mxu0 %v1203
    %1293 = vmatpush2.bf16.msra.mxu0 %v1202
    %1294 = vmatprep.subr.bf16.mxu0 %v1199
    %1295 = vmatpush2.bf16.msra.mxu0 %v1198
    %1296 = vmatprep.subr.bf16.mxu0 %v1195
    %1297 = vmatpush2.bf16.msra.mxu0 %v1194
    %1298 = vmatprep.subr.bf16.mxu0 %v1191
    %1299 = vmatpush2.bf16.msra.mxu0 %v1190
    %1300 = vmatprep.subr.bf16.mxu0 %v1187
    %1301 = vmatpush2.bf16.msra.mxu0 %v1186
    %1302 = vmatprep.subr.bf16.mxu0 %v1183
    %1303 = vmatpush2.bf16.msra.mxu0 %v1182
    %1304 = vmatprep.subr.bf16.mxu0 %v1179
    %1305 = vmatpush2.bf16.msra.mxu0 %v1178
    %1306 = vmatprep.mubr.bf16.mxu0 %v932
    %1307 = vmatmul.mubr.bf16.gmra.mxu0 %v821
    %v1308 = vpop.f32.mrf.mxu0
    %v1309 = vadd.f32 %v937, %v1308
    %v1310 = vpop.f32.mrf.mxu0
    %v1311 = vadd.f32 %v941, %v1310
    %v1312 = vpop.f32.mrf.mxu0
    %v1313 = vpop.f32.mrf.mxu0
    %1314 = vdwg.mxu0
    %1315 = vmatprep.subr.bf16.mxu0 %v1177
    %1316 = vmatpush1.bf16.msra.mxu0 %v1176
    %1317 = vmatprep.subr.bf16.mxu0 %v1173
    %1318 = vmatpush1.bf16.msra.mxu0 %v1172
    %1319 = vmatprep.subr.bf16.mxu0 %v1169
    %1320 = vmatpush1.bf16.msra.mxu0 %v1168
    %1321 = vmatprep.subr.bf16.mxu0 %v1165
    %1322 = vmatpush1.bf16.msra.mxu0 %v1164
    %1323 = vmatprep.subr.bf16.mxu0 %v1161
    %1324 = vmatpush1.bf16.msra.mxu0 %v1160
    %1325 = vmatprep.subr.bf16.mxu0 %v1157
    %1326 = vmatpush1.bf16.msra.mxu0 %v1156
    %1327 = vmatprep.subr.bf16.mxu0 %v1153
    %1328 = vmatpush1.bf16.msra.mxu0 %v1152
    %1329 = vmatprep.subr.bf16.mxu0 %v1149
    %1330 = vmatpush1.bf16.msra.mxu0 %v1148
    %1331 = vmatprep.subr.bf16.mxu0 %v1209
    %1332 = vmatpush2.bf16.msra.mxu0 %v1208
    %1333 = vmatprep.subr.bf16.mxu0 %v1205
    %1334 = vmatpush2.bf16.msra.mxu0 %v1204
    %1335 = vmatprep.subr.bf16.mxu0 %v1201
    %1336 = vmatpush2.bf16.msra.mxu0 %v1200
    %1337 = vmatprep.subr.bf16.mxu0 %v1197
    %1338 = vmatpush2.bf16.msra.mxu0 %v1196
    %1339 = vmatprep.subr.bf16.mxu0 %v1193
    %1340 = vmatpush2.bf16.msra.mxu0 %v1192
    %1341 = vmatprep.subr.bf16.mxu0 %v1189
    %1342 = vmatpush2.bf16.msra.mxu0 %v1188
    %1343 = vmatprep.subr.bf16.mxu0 %v1185
    %1344 = vmatpush2.bf16.msra.mxu0 %v1184
    %1345 = vmatprep.subr.bf16.mxu0 %v1181
    %1346 = vmatpush2.bf16.msra.mxu0 %v1180
    %1347 = vmatprep.mubr.bf16.mxu0 %v932
    %1348 = vmatmul.mubr.bf16.gmra.mxu0 %v821
    %v1349 = vpop.f32.mrf.mxu0
    %v1350 = vadd.f32 %v945, %v1349
    %v1351 = vpop.f32.mrf.mxu0
    %v1352 = vadd.f32 %v949, %v1351
    %v1353 = vpop.f32.mrf.mxu0
    %v1354 = vpop.f32.mrf.mxu0
    %1355 = vdwg.mxu0
    %v1356 = vxor.u32 %v1309, 2147483648
    %v1357 = vxor.u32 %v1311, 2147483648
    %v1358 = vxor.u32 %v1350, 2147483648
    %v1359 = vmul.f32 %v1356, 1.442695
    %v1360 = vpow.pop %v1359
    %v1361 = vmul.f32 %v1357, 1.442695
    %v1362 = vpow.pop %v1361
    %v1363 = vmul.f32 %v1358, 1.442695
    %v1364 = vpow.pop %v1363
    %v1365 = vadd.f32 %v1360, 1.0
    %v1366 = vadd.f32 %v1362, 1.0
    %v1367 = vadd.f32 %v1364, 1.0
    %v1368 = vrcp.pop %v1365
    %v1369 = vmul.f32 1.0, %v1368
    %v1370 = vrcp.pop %v1366
    %v1371 = vmul.f32 1.0, %v1370
    %v1372 = vrcp.pop %v1367
    %v1373 = vmul.f32 1.0, %v1372
    %v1374 = vtanh.pop %v1352
    %v1375 = vmul.f32 %v1371, 0.0
    %v1376 = vmul.f32 %v1369, %v1374
    %v1377 = vadd.f32 %v1375, %v1376
    %v1378 = vtanh.pop %v1377
    %v1379 = vmul.f32 %v1373, %v1378
    %s1380 = smul.u32 2, 4
    %s1381 = smul.addr %s1380, 8
    %s1382 = scalar_lea.vmem [#allocation2], %s1381
    %v1383 = vld [vmem:[%s1382] sm:$0xff]
    %v1384 = vld [vmem:[%s1382 + $0x8] sm:$0xff]
    %v1385 = vld [vmem:[%s1382 + $0x10] sm:$0xff]
    %v1386 = vld [vmem:[%s1382 + $0x18] sm:$0xff]
    %v1387 = vpack.c.bf16 %v931, %v931
    %1388 = vmatprep.subr.bf16.mxu0 %v669
    %1389 = vmatpush1.bf16.msra.mxu0 %v668
    %1390 = vmatprep.subr.bf16.mxu0 %v665
    %1391 = vmatpush1.bf16.msra.mxu0 %v664
    %1392 = vmatprep.subr.bf16.mxu0 %v661
    %1393 = vmatpush1.bf16.msra.mxu0 %v660
    %1394 = vmatprep.subr.bf16.mxu0 %v657
    %1395 = vmatpush1.bf16.msra.mxu0 %v656
    %1396 = vmatprep.subr.bf16.mxu0 %v653
    %1397 = vmatpush1.bf16.msra.mxu0 %v652
    %1398 = vmatprep.subr.bf16.mxu0 %v649
    %1399 = vmatpush1.bf16.msra.mxu0 %v648
    %1400 = vmatprep.subr.bf16.mxu0 %v645
    %1401 = vmatpush1.bf16.msra.mxu0 %v644
    %1402 = vmatprep.subr.bf16.mxu0 %v641
    %1403 = vmatpush1.bf16.msra.mxu0 %v640
    %1404 = vmatprep.subr.bf16.mxu0 0
    %1405 = vmatpush2.bf16.msra.mxu0 0
    %1406 = vmatprep.subr.bf16.mxu0 0
    %1407 = vmatpush2.bf16.msra.mxu0 0
    %1408 = vmatprep.subr.bf16.mxu0 0
    %1409 = vmatpush2.bf16.msra.mxu0 0
    %1410 = vmatprep.subr.bf16.mxu0 0
    %1411 = vmatpush2.bf16.msra.mxu0 0
    %1412 = vmatprep.subr.bf16.mxu0 0
    %1413 = vmatpush2.bf16.msra.mxu0 0
    %1414 = vmatprep.subr.bf16.mxu0 0
    %1415 = vmatpush2.bf16.msra.mxu0 0
    %1416 = vmatprep.subr.bf16.mxu0 0
    %1417 = vmatpush2.bf16.msra.mxu0 0
    %1418 = vmatprep.subr.bf16.mxu0 0
    %1419 = vmatpush2.bf16.msra.mxu0 0
    %1420 = vmatprep.mubr.bf16.mxu0 0
    %1421 = vmatmul.mubr.bf16.gmra.mxu0 %v1387
    %v1422 = vpop.f32.mrf.mxu0
    %v1423 = vadd.f32 0.0, %v1422
    %v1424 = vpop.f32.mrf.mxu0
    %v1425 = vadd.f32 0.0, %v1424
    %v1426 = vpop.f32.mrf.mxu0
    %v1427 = vpop.f32.mrf.mxu0
    %1428 = vdwg.mxu0
    %1429 = vmatprep.subr.bf16.mxu0 %v671
    %1430 = vmatpush1.bf16.msra.mxu0 %v670
    %1431 = vmatprep.subr.bf16.mxu0 %v667
    %1432 = vmatpush1.bf16.msra.mxu0 %v666
    %1433 = vmatprep.subr.bf16.mxu0 %v663
    %1434 = vmatpush1.bf16.msra.mxu0 %v662
    %1435 = vmatprep.subr.bf16.mxu0 %v659
    %1436 = vmatpush1.bf16.msra.mxu0 %v658
    %1437 = vmatprep.subr.bf16.mxu0 %v655
    %1438 = vmatpush1.bf16.msra.mxu0 %v654
    %1439 = vmatprep.subr.bf16.mxu0 %v651
    %1440 = vmatpush1.bf16.msra.mxu0 %v650
    %1441 = vmatprep.subr.bf16.mxu0 %v647
    %1442 = vmatpush1.bf16.msra.mxu0 %v646
    %1443 = vmatprep.subr.bf16.mxu0 %v643
    %1444 = vmatpush1.bf16.msra.mxu0 %v642
    %1445 = vmatprep.subr.bf16.mxu0 0
    %1446 = vmatpush2.bf16.msra.mxu0 0
    %1447 = vmatprep.subr.bf16.mxu0 0
    %1448 = vmatpush2.bf16.msra.mxu0 0
    %1449 = vmatprep.subr.bf16.mxu0 0
    %1450 = vmatpush2.bf16.msra.mxu0 0
    %1451 = vmatprep.subr.bf16.mxu0 0
    %1452 = vmatpush2.bf16.msra.mxu0 0
    %1453 = vmatprep.subr.bf16.mxu0 0
    %1454 = vmatpush2.bf16.msra.mxu0 0
    %1455 = vmatprep.subr.bf16.mxu0 0
    %1456 = vmatpush2.bf16.msra.mxu0 0
    %1457 = vmatprep.subr.bf16.mxu0 0
    %1458 = vmatpush2.bf16.msra.mxu0 0
    %1459 = vmatprep.subr.bf16.mxu0 0
    %1460 = vmatpush2.bf16.msra.mxu0 0
    %1461 = vmatprep.mubr.bf16.mxu0 0
    %1462 = vmatmul.mubr.bf16.gmra.mxu0 %v1387
    %v1463 = vpop.f32.mrf.mxu0
    %v1464 = vadd.f32 0.0, %v1463
    %v1465 = vpop.f32.mrf.mxu0
    %v1466 = vadd.f32 0.0, %v1465
    %v1467 = vpop.f32.mrf.mxu0
    %v1468 = vpop.f32.mrf.mxu0
    %1469 = vdwg.mxu0
    %v1470 = vadd.f32 %v1383, %v1423
    %v1471 = vadd.f32 %v1384, %v1425
    %v1472 = vadd.f32 %v1385, %v1464
    %v1473 = vadd.f32 %v1386, %v1466
    %v1474 = vxor.u32 %v1470, 2147483648
    %v1475 = vxor.u32 %v1471, 2147483648
    %v1476 = vxor.u32 %v1472, 2147483648
    %v1477 = vmul.f32 %v1474, 1.442695
    %v1478 = vpow.pop %v1477
    %v1479 = vmul.f32 %v1475, 1.442695
    %v1480 = vpow.pop %v1479
    %v1481 = vmul.f32 %v1476, 1.442695
    %v1482 = vpow.pop %v1481
    %v1483 = vadd.f32 %v1478, 1.0
    %v1484 = vadd.f32 %v1480, 1.0
    %v1485 = vadd.f32 %v1482, 1.0
    %v1486 = vrcp.pop %v1483
    %v1487 = vmul.f32 1.0, %v1486
    %v1488 = vrcp.pop %v1484
    %v1489 = vmul.f32 1.0, %v1488
    %v1490 = vrcp.pop %v1485
    %v1491 = vmul.f32 1.0, %v1490
    %v1492 = vtanh.pop %v1473
    %v1493 = vmul.f32 %v1489, %v929
    %v1494 = vmul.f32 %v1487, %v1492
    %v1495 = vadd.f32 %v1493, %v1494
    %v1496 = vtanh.pop %v1495
    %v1497 = vmul.f32 %v1491, %v1496
    %v1498 = vpack.c.bf16 %v1379, %v1379
    %1499 = vmatprep.subr.bf16.mxu0 %v1175
    %1500 = vmatpush1.bf16.msra.mxu0 %v1174
    %1501 = vmatprep.subr.bf16.mxu0 %v1171
    %1502 = vmatpush1.bf16.msra.mxu0 %v1170
    %1503 = vmatprep.subr.bf16.mxu0 %v1167
    %1504 = vmatpush1.bf16.msra.mxu0 %v1166
    %1505 = vmatprep.subr.bf16.mxu0 %v1163
    %1506 = vmatpush1.bf16.msra.mxu0 %v1162
    %1507 = vmatprep.subr.bf16.mxu0 %v1159
    %1508 = vmatpush1.bf16.msra.mxu0 %v1158
    %1509 = vmatprep.subr.bf16.mxu0 %v1155
    %1510 = vmatpush1.bf16.msra.mxu0 %v1154
    %1511 = vmatprep.subr.bf16.mxu0 %v1151
    %1512 = vmatpush1.bf16.msra.mxu0 %v1150
    %1513 = vmatprep.subr.bf16.mxu0 %v1147
    %1514 = vmatpush1.bf16.msra.mxu0 %v1146
    %1515 = vmatprep.subr.bf16.mxu0 %v1207
    %1516 = vmatpush2.bf16.msra.mxu0 %v1206
    %1517 = vmatprep.subr.bf16.mxu0 %v1203
    %1518 = vmatpush2.bf16.msra.mxu0 %v1202
    %1519 = vmatprep.subr.bf16.mxu0 %v1199
    %1520 = vmatpush2.bf16.msra.mxu0 %v1198
    %1521 = vmatprep.subr.bf16.mxu0 %v1195
    %1522 = vmatpush2.bf16.msra.mxu0 %v1194
    %1523 = vmatprep.subr.bf16.mxu0 %v1191
    %1524 = vmatpush2.bf16.msra.mxu0 %v1190
    %1525 = vmatprep.subr.bf16.mxu0 %v1187
    %1526 = vmatpush2.bf16.msra.mxu0 %v1186
    %1527 = vmatprep.subr.bf16.mxu0 %v1183
    %1528 = vmatpush2.bf16.msra.mxu0 %v1182
    %1529 = vmatprep.subr.bf16.mxu0 %v1179
    %1530 = vmatpush2.bf16.msra.mxu0 %v1178
    %1531 = vmatprep.mubr.bf16.mxu0 %v1498
    %1532 = vmatmul.mubr.bf16.gmra.mxu0 %v1387
    %v1533 = vpop.f32.mrf.mxu0
    %v1534 = vadd.f32 %v937, %v1533
    %v1535 = vpop.f32.mrf.mxu0
    %v1536 = vadd.f32 %v941, %v1535
    %v1537 = vpop.f32.mrf.mxu0
    %v1538 = vpop.f32.mrf.mxu0
    %1539 = vdwg.mxu0
    %1540 = vmatprep.subr.bf16.mxu0 %v1177
    %1541 = vmatpush1.bf16.msra.mxu0 %v1176
    %1542 = vmatprep.subr.bf16.mxu0 %v1173
    %1543 = vmatpush1.bf16.msra.mxu0 %v1172
    %1544 = vmatprep.subr.bf16.mxu0 %v1169
    %1545 = vmatpush1.bf16.msra.mxu0 %v1168
    %1546 = vmatprep.subr.bf16.mxu0 %v1165
    %1547 = vmatpush1.bf16.msra.mxu0 %v1164
    %1548 = vmatprep.subr.bf16.mxu0 %v1161
    %1549 = vmatpush1.bf16.msra.mxu0 %v1160
    %1550 = vmatprep.subr.bf16.mxu0 %v1157
    %1551 = vmatpush1.bf16.msra.mxu0 %v1156
    %1552 = vmatprep.subr.bf16.mxu0 %v1153
    %1553 = vmatpush1.bf16.msra.mxu0 %v1152
    %1554 = vmatprep.subr.bf16.mxu0 %v1149
    %1555 = vmatpush1.bf16.msra.mxu0 %v1148
    %1556 = vmatprep.subr.bf16.mxu0 %v1209
    %1557 = vmatpush2.bf16.msra.mxu0 %v1208
    %1558 = vmatprep.subr.bf16.mxu0 %v1205
    %1559 = vmatpush2.bf16.msra.mxu0 %v1204
    %1560 = vmatprep.subr.bf16.mxu0 %v1201
    %1561 = vmatpush2.bf16.msra.mxu0 %v1200
    %1562 = vmatprep.subr.bf16.mxu0 %v1197
    %1563 = vmatpush2.bf16.msra.mxu0 %v1196
    %1564 = vmatprep.subr.bf16.mxu0 %v1193
    %1565 = vmatpush2.bf16.msra.mxu0 %v1192
    %1566 = vmatprep.subr.bf16.mxu0 %v1189
    %1567 = vmatpush2.bf16.msra.mxu0 %v1188
    %1568 = vmatprep.subr.bf16.mxu0 %v1185
    %1569 = vmatpush2.bf16.msra.mxu0 %v1184
    %1570 = vmatprep.subr.bf16.mxu0 %v1181
    %1571 = vmatpush2.bf16.msra.mxu0 %v1180
    %1572 = vmatprep.mubr.bf16.mxu0 %v1498
    %1573 = vmatmul.mubr.bf16.gmra.mxu0 %v1387
    %v1574 = vpop.f32.mrf.mxu0
    %v1575 = vadd.f32 %v945, %v1574
    %v1576 = vpop.f32.mrf.mxu0
    %v1577 = vadd.f32 %v949, %v1576
    %v1578 = vpop.f32.mrf.mxu0
    %v1579 = vpop.f32.mrf.mxu0
    %1580 = vdwg.mxu0
    %v1581 = vxor.u32 %v1534, 2147483648
    %v1582 = vxor.u32 %v1536, 2147483648
    %v1583 = vxor.u32 %v1575, 2147483648
    %v1584 = vmul.f32 %v1581, 1.442695
    %v1585 = vpow.pop %v1584
    %v1586 = vmul.f32 %v1582, 1.442695
    %v1587 = vpow.pop %v1586
    %v1588 = vmul.f32 %v1583, 1.442695
    %v1589 = vpow.pop %v1588
    %v1590 = vadd.f32 %v1585, 1.0
    %v1591 = vadd.f32 %v1587, 1.0
    %v1592 = vadd.f32 %v1589, 1.0
    %v1593 = vrcp.pop %v1590
    %v1594 = vmul.f32 1.0, %v1593
    %v1595 = vrcp.pop %v1591
    %v1596 = vmul.f32 1.0, %v1595
    %v1597 = vrcp.pop %v1592
    %v1598 = vmul.f32 1.0, %v1597
    %v1599 = vtanh.pop %v1577
    %v1600 = vmul.f32 %v1596, %v1377
    %v1601 = vmul.f32 %v1594, %v1599
    %v1602 = vadd.f32 %v1600, %v1601
    %v1603 = vtanh.pop %v1602
    %v1604 = vmul.f32 %v1598, %v1603
    %v1606 = vlaneseq
    %v1607 = vshrl.u32 %v1606, 7
    %v1608 = vsub.s32 0, %v1607
    %v1609 = vrot.slane %v536, %v1608
    %v1610 = vlaneseq
    %v1611 = vshrl.u32 %v1610, 7
    %v1612 = vsub.s32 1, %v1611
    %v1613 = vrot.slane %v536, %v1612
    %v1614 = vlaneseq
    %v1615 = vshrl.u32 %v1614, 7
    %v1616 = vsub.s32 2, %v1615
    %v1617 = vrot.slane %v536, %v1616
    %v1618 = vlaneseq
    %v1619 = vshrl.u32 %v1618, 7
    %v1620 = vsub.s32 3, %v1619
    %v1621 = vrot.slane %v536, %v1620
    %v1690 = vunpack.c.l.b16 %v472
    %v1691 = vunpack.c.h.b16 %v472
    %v1692 = vunpack.c.l.b16 %v473
    %v1693 = vunpack.c.h.b16 %v473
    %v1694 = vunpack.c.l.b16 %v474
    %v1695 = vunpack.c.h.b16 %v474
    %v1696 = vunpack.c.l.b16 %v475
    %v1697 = vunpack.c.h.b16 %v475
    %v1698 = vunpack.c.l.b16 %v476
    %v1699 = vunpack.c.h.b16 %v476
    %v1700 = vunpack.c.l.b16 %v477
    %v1701 = vunpack.c.h.b16 %v477
    %v1702 = vunpack.c.l.b16 %v478
    %v1703 = vunpack.c.h.b16 %v478
    %v1704 = vunpack.c.l.b16 %v479
    %v1705 = vunpack.c.h.b16 %v479
    %v1706 = vunpack.c.l.b16 %v480
    %v1707 = vunpack.c.h.b16 %v480
    %v1708 = vunpack.c.l.b16 %v481
    %v1709 = vunpack.c.h.b16 %v481
    %v1710 = vunpack.c.l.b16 %v482
    %v1711 = vunpack.c.h.b16 %v482
    %v1712 = vunpack.c.l.b16 %v483
    %v1713 = vunpack.c.h.b16 %v483
    %v1714 = vunpack.c.l.b16 %v484
    %v1715 = vunpack.c.h.b16 %v484
    %v1716 = vunpack.c.l.b16 %v485
    %v1717 = vunpack.c.h.b16 %v485
    %v1718 = vunpack.c.l.b16 %v486
    %v1719 = vunpack.c.h.b16 %v486
    %v1720 = vunpack.c.l.b16 %v487
    %v1721 = vunpack.c.h.b16 %v487
    %v1722 = vunpack.c.l.b16 %v488
    %v1723 = vunpack.c.h.b16 %v488
    %v1724 = vunpack.c.l.b16 %v489
    %v1725 = vunpack.c.h.b16 %v489
    %v1726 = vunpack.c.l.b16 %v490
    %v1727 = vunpack.c.h.b16 %v490
    %v1728 = vunpack.c.l.b16 %v491
    %v1729 = vunpack.c.h.b16 %v491
    %v1730 = vunpack.c.l.b16 %v492
    %v1731 = vunpack.c.h.b16 %v492
    %v1732 = vunpack.c.l.b16 %v493
    %v1733 = vunpack.c.h.b16 %v493
    %v1734 = vunpack.c.l.b16 %v494
    %v1735 = vunpack.c.h.b16 %v494
    %v1736 = vunpack.c.l.b16 %v495
    %v1737 = vunpack.c.h.b16 %v495
    %v1738 = vunpack.c.l.b16 %v496
    %v1739 = vunpack.c.h.b16 %v496
    %v1740 = vunpack.c.l.b16 %v497
    %v1741 = vunpack.c.h.b16 %v497
    %v1742 = vunpack.c.l.b16 %v498
    %v1743 = vunpack.c.h.b16 %v498
    %v1744 = vunpack.c.l.b16 %v499
    %v1745 = vunpack.c.h.b16 %v499
    %v1746 = vunpack.c.l.b16 %v500
    %v1747 = vunpack.c.h.b16 %v500
    %v1748 = vunpack.c.l.b16 %v501
    %v1749 = vunpack.c.h.b16 %v501
    %v1750 = vunpack.c.l.b16 %v502
    %v1751 = vunpack.c.h.b16 %v502
    %v1752 = vunpack.c.l.b16 %v503
    %v1753 = vunpack.c.h.b16 %v503
    %v1754 = vunpack.c.l.b16 %v504
    %v1755 = vunpack.c.h.b16 %v504
    %v1756 = vunpack.c.l.b16 %v505
    %v1757 = vunpack.c.h.b16 %v505
    %v1758 = vunpack.c.l.b16 %v506
    %v1759 = vunpack.c.h.b16 %v506
    %v1760 = vunpack.c.l.b16 %v507
    %v1761 = vunpack.c.h.b16 %v507
    %v1762 = vunpack.c.l.b16 %v508
    %v1763 = vunpack.c.h.b16 %v508
    %v1764 = vunpack.c.l.b16 %v509
    %v1765 = vunpack.c.h.b16 %v509
    %v1766 = vunpack.c.l.b16 %v510
    %v1767 = vunpack.c.h.b16 %v510
    %v1768 = vunpack.c.l.b16 %v511
    %v1769 = vunpack.c.h.b16 %v511
    %v1770 = vunpack.c.l.b16 %v512
    %v1771 = vunpack.c.h.b16 %v512
    %v1772 = vunpack.c.l.b16 %v513
    %v1773 = vunpack.c.h.b16 %v513
    %v1774 = vunpack.c.l.b16 %v514
    %v1775 = vunpack.c.h.b16 %v514
    %v1776 = vunpack.c.l.b16 %v515
    %v1777 = vunpack.c.h.b16 %v515
    %v1778 = vunpack.c.l.b16 %v516
    %v1779 = vunpack.c.h.b16 %v516
    %v1780 = vunpack.c.l.b16 %v517
    %v1781 = vunpack.c.h.b16 %v517
    %v1782 = vunpack.c.l.b16 %v518
    %v1783 = vunpack.c.h.b16 %v518
    %v1784 = vunpack.c.l.b16 %v519
    %v1785 = vunpack.c.h.b16 %v519
    %v1786 = vunpack.c.l.b16 %v520
    %v1787 = vunpack.c.h.b16 %v520
    %v1788 = vunpack.c.l.b16 %v521
    %v1789 = vunpack.c.h.b16 %v521
    %v1790 = vunpack.c.l.b16 %v522
    %v1791 = vunpack.c.h.b16 %v522
    %v1792 = vunpack.c.l.b16 %v523
    %v1793 = vunpack.c.h.b16 %v523
    %v1794 = vunpack.c.l.b16 %v524
    %v1795 = vunpack.c.h.b16 %v524
    %v1796 = vunpack.c.l.b16 %v525
    %v1797 = vunpack.c.h.b16 %v525
    %v1798 = vunpack.c.l.b16 %v526
    %v1799 = vunpack.c.h.b16 %v526
    %v1800 = vunpack.c.l.b16 %v527
    %v1801 = vunpack.c.h.b16 %v527
    %v1802 = vunpack.c.l.b16 %v528
    %v1803 = vunpack.c.h.b16 %v528
    %v1804 = vunpack.c.l.b16 %v529
    %v1805 = vunpack.c.h.b16 %v529
    %v1806 = vunpack.c.l.b16 %v530
    %v1807 = vunpack.c.h.b16 %v530
    %v1808 = vunpack.c.l.b16 %v531
    %v1809 = vunpack.c.h.b16 %v531
    %v1810 = vunpack.c.l.b16 %v532
    %v1811 = vunpack.c.h.b16 %v532
    %v1812 = vunpack.c.l.b16 %v533
    %v1813 = vunpack.c.h.b16 %v533
    %v1814 = vunpack.c.l.b16 %v534
    %v1815 = vunpack.c.h.b16 %v534
    %v1816 = vunpack.c.l.b16 %v535
    %v1817 = vunpack.c.h.b16 %v535
    %v1818 = vpack.c.b16 %v1694, %v1690
    %v1819 = vpack.c.b16 %v1695, %v1691
    %v1820 = vpack.c.b16 %v1696, %v1692
    %v1821 = vpack.c.b16 %v1697, %v1693
    %v1822 = vpack.c.b16 %v1702, %v1698
    %v1823 = vpack.c.b16 %v1703, %v1699
    %v1824 = vpack.c.b16 %v1704, %v1700
    %v1825 = vpack.c.b16 %v1705, %v1701
    %v1826 = vpack.c.b16 %v1710, %v1706
    %v1827 = vpack.c.b16 %v1711, %v1707
    %v1828 = vpack.c.b16 %v1712, %v1708
    %v1829 = vpack.c.b16 %v1713, %v1709
    %v1830 = vpack.c.b16 %v1718, %v1714
    %v1831 = vpack.c.b16 %v1719, %v1715
    %v1832 = vpack.c.b16 %v1720, %v1716
    %v1833 = vpack.c.b16 %v1721, %v1717
    %v1834 = vpack.c.b16 %v1726, %v1722
    %v1835 = vpack.c.b16 %v1727, %v1723
    %v1836 = vpack.c.b16 %v1728, %v1724
    %v1837 = vpack.c.b16 %v1729, %v1725
    %v1838 = vpack.c.b16 %v1734, %v1730
    %v1839 = vpack.c.b16 %v1735, %v1731
    %v1840 = vpack.c.b16 %v1736, %v1732
    %v1841 = vpack.c.b16 %v1737, %v1733
    %v1842 = vpack.c.b16 %v1742, %v1738
    %v1843 = vpack.c.b16 %v1743, %v1739
    %v1844 = vpack.c.b16 %v1744, %v1740
    %v1845 = vpack.c.b16 %v1745, %v1741
    %v1846 = vpack.c.b16 %v1750, %v1746
    %v1847 = vpack.c.b16 %v1751, %v1747
    %v1848 = vpack.c.b16 %v1752, %v1748
    %v1849 = vpack.c.b16 %v1753, %v1749
    %v1850 = vpack.c.b16 %v1758, %v1754
    %v1851 = vpack.c.b16 %v1759, %v1755
    %v1852 = vpack.c.b16 %v1760, %v1756
    %v1853 = vpack.c.b16 %v1761, %v1757
    %v1854 = vpack.c.b16 %v1766, %v1762
    %v1855 = vpack.c.b16 %v1767, %v1763
    %v1856 = vpack.c.b16 %v1768, %v1764
    %v1857 = vpack.c.b16 %v1769, %v1765
    %v1858 = vpack.c.b16 %v1774, %v1770
    %v1859 = vpack.c.b16 %v1775, %v1771
    %v1860 = vpack.c.b16 %v1776, %v1772
    %v1861 = vpack.c.b16 %v1777, %v1773
    %v1862 = vpack.c.b16 %v1782, %v1778
    %v1863 = vpack.c.b16 %v1783, %v1779
    %v1864 = vpack.c.b16 %v1784, %v1780
    %v1865 = vpack.c.b16 %v1785, %v1781
    %v1866 = vpack.c.b16 %v1790, %v1786
    %v1867 = vpack.c.b16 %v1791, %v1787
    %v1868 = vpack.c.b16 %v1792, %v1788
    %v1869 = vpack.c.b16 %v1793, %v1789
    %v1870 = vpack.c.b16 %v1798, %v1794
    %v1871 = vpack.c.b16 %v1799, %v1795
    %v1872 = vpack.c.b16 %v1800, %v1796
    %v1873 = vpack.c.b16 %v1801, %v1797
    %v1874 = vpack.c.b16 %v1806, %v1802
    %v1875 = vpack.c.b16 %v1807, %v1803
    %v1876 = vpack.c.b16 %v1808, %v1804
    %v1877 = vpack.c.b16 %v1809, %v1805
    %v1878 = vpack.c.b16 %v1814, %v1810
    %v1879 = vpack.c.b16 %v1815, %v1811
    %v1880 = vpack.c.b16 %v1816, %v1812
    %v1881 = vpack.c.b16 %v1817, %v1813
    %1946 = vmatprep.subr.bf16.mxu0 %v1847
    %1947 = vmatpush1.bf16.msra.mxu0 %v1846
    %1948 = vmatprep.subr.bf16.mxu0 %v1843
    %1949 = vmatpush1.bf16.msra.mxu0 %v1842
    %1950 = vmatprep.subr.bf16.mxu0 %v1839
    %1951 = vmatpush1.bf16.msra.mxu0 %v1838
    %1952 = vmatprep.subr.bf16.mxu0 %v1835
    %1953 = vmatpush1.bf16.msra.mxu0 %v1834
    %1954 = vmatprep.subr.bf16.mxu0 %v1831
    %1955 = vmatpush1.bf16.msra.mxu0 %v1830
    %1956 = vmatprep.subr.bf16.mxu0 %v1827
    %1957 = vmatpush1.bf16.msra.mxu0 %v1826
    %1958 = vmatprep.subr.bf16.mxu0 %v1823
    %1959 = vmatpush1.bf16.msra.mxu0 %v1822
    %1960 = vmatprep.subr.bf16.mxu0 %v1819
    %1961 = vmatpush1.bf16.msra.mxu0 %v1818
    %1962 = vmatprep.subr.bf16.mxu0 %v1879
    %1963 = vmatpush2.bf16.msra.mxu0 %v1878
    %1964 = vmatprep.subr.bf16.mxu0 %v1875
    %1965 = vmatpush2.bf16.msra.mxu0 %v1874
    %1966 = vmatprep.subr.bf16.mxu0 %v1871
    %1967 = vmatpush2.bf16.msra.mxu0 %v1870
    %1968 = vmatprep.subr.bf16.mxu0 %v1867
    %1969 = vmatpush2.bf16.msra.mxu0 %v1866
    %1970 = vmatprep.subr.bf16.mxu0 %v1863
    %1971 = vmatpush2.bf16.msra.mxu0 %v1862
    %1972 = vmatprep.subr.bf16.mxu0 %v1859
    %1973 = vmatpush2.bf16.msra.mxu0 %v1858
    %1974 = vmatprep.subr.bf16.mxu0 %v1855
    %1975 = vmatpush2.bf16.msra.mxu0 %v1854
    %1976 = vmatprep.subr.bf16.mxu0 %v1851
    %1977 = vmatpush2.bf16.msra.mxu0 %v1850
    %1978 = vmatprep.mubr.bf16.mxu0 %v932
    %1979 = vmatmul.mubr.bf16.gmra.mxu0 %v1498
    %v1980 = vpop.f32.mrf.mxu0
    %v1981 = vadd.f32 %v1609, %v1980
    %v1982 = vpop.f32.mrf.mxu0
    %v1983 = vadd.f32 %v1613, %v1982
    %v1984 = vpop.f32.mrf.mxu0
    %v1985 = vpop.f32.mrf.mxu0
    %1986 = vdwg.mxu0
    %1987 = vmatprep.subr.bf16.mxu0 %v1849
    %1988 = vmatpush1.bf16.msra.mxu0 %v1848
    %1989 = vmatprep.subr.bf16.mxu0 %v1845
    %1990 = vmatpush1.bf16.msra.mxu0 %v1844
    %1991 = vmatprep.subr.bf16.mxu0 %v1841
    %1992 = vmatpush1.bf16.msra.mxu0 %v1840
    %1993 = vmatprep.subr.bf16.mxu0 %v1837
    %1994 = vmatpush1.bf16.msra.mxu0 %v1836
    %1995 = vmatprep.subr.bf16.mxu0 %v1833
    %1996 = vmatpush1.bf16.msra.mxu0 %v1832
    %1997 = vmatprep.subr.bf16.mxu0 %v1829
    %1998 = vmatpush1.bf16.msra.mxu0 %v1828
    %1999 = vmatprep.subr.bf16.mxu0 %v1825
    %2000 = vmatpush1.bf16.msra.mxu0 %v1824
    %2001 = vmatprep.subr.bf16.mxu0 %v1821
    %2002 = vmatpush1.bf16.msra.mxu0 %v1820
    %2003 = vmatprep.subr.bf16.mxu0 %v1881
    %2004 = vmatpush2.bf16.msra.mxu0 %v1880
    %2005 = vmatprep.subr.bf16.mxu0 %v1877
    %2006 = vmatpush2.bf16.msra.mxu0 %v1876
    %2007 = vmatprep.subr.bf16.mxu0 %v1873
    %2008 = vmatpush2.bf16.msra.mxu0 %v1872
    %2009 = vmatprep.subr.bf16.mxu0 %v1869
    %2010 = vmatpush2.bf16.msra.mxu0 %v1868
    %2011 = vmatprep.subr.bf16.mxu0 %v1865
    %2012 = vmatpush2.bf16.msra.mxu0 %v1864
    %2013 = vmatprep.subr.bf16.mxu0 %v1861
    %2014 = vmatpush2.bf16.msra.mxu0 %v1860
    %2015 = vmatprep.subr.bf16.mxu0 %v1857
    %2016 = vmatpush2.bf16.msra.mxu0 %v1856
    %2017 = vmatprep.subr.bf16.mxu0 %v1853
    %2018 = vmatpush2.bf16.msra.mxu0 %v1852
    %2019 = vmatprep.mubr.bf16.mxu0 %v932
    %2020 = vmatmul.mubr.bf16.gmra.mxu0 %v1498
    %v2021 = vpop.f32.mrf.mxu0
    %v2022 = vadd.f32 %v1617, %v2021
    %v2023 = vpop.f32.mrf.mxu0
    %v2024 = vadd.f32 %v1621, %v2023
    %v2025 = vpop.f32.mrf.mxu0
    %v2026 = vpop.f32.mrf.mxu0
    %2027 = vdwg.mxu0
    %v2028 = vxor.u32 %v1981, 2147483648
    %v2029 = vxor.u32 %v1983, 2147483648
    %v2030 = vxor.u32 %v2022, 2147483648
    %v2031 = vmul.f32 %v2028, 1.442695
    %v2032 = vpow.pop %v2031
    %v2033 = vmul.f32 %v2029, 1.442695
    %v2034 = vpow.pop %v2033
    %v2035 = vmul.f32 %v2030, 1.442695
    %v2036 = vpow.pop %v2035
    %v2037 = vadd.f32 %v2032, 1.0
    %v2038 = vadd.f32 %v2034, 1.0
    %v2039 = vadd.f32 %v2036, 1.0
    %v2040 = vrcp.pop %v2037
    %v2041 = vmul.f32 1.0, %v2040
    %v2042 = vrcp.pop %v2038
    %v2043 = vmul.f32 1.0, %v2042
    %v2044 = vrcp.pop %v2039
    %v2045 = vmul.f32 1.0, %v2044
    %v2046 = vtanh.pop %v2024
    %v2047 = vmul.f32 %v2043, 0.0
    %v2048 = vmul.f32 %v2041, %v2046
    %v2049 = vadd.f32 %v2047, %v2048
    %v2050 = vtanh.pop %v2049
    %v2051 = vmul.f32 %v2045, %v2050
    %s2052 = smul.u32 3, 4
    %s2053 = smul.addr %s2052, 8
    %s2054 = scalar_lea.vmem [#allocation2], %s2053
    %v2055 = vld [vmem:[%s2054] sm:$0xff]
    %v2056 = vld [vmem:[%s2054 + $0x8] sm:$0xff]
    %v2057 = vld [vmem:[%s2054 + $0x10] sm:$0xff]
    %v2058 = vld [vmem:[%s2054 + $0x18] sm:$0xff]
    %v2059 = vpack.c.bf16 %v1497, %v1497
    %2060 = vmatprep.subr.bf16.mxu0 %v669
    %2061 = vmatpush1.bf16.msra.mxu0 %v668
    %2062 = vmatprep.subr.bf16.mxu0 %v665
    %2063 = vmatpush1.bf16.msra.mxu0 %v664
    %2064 = vmatprep.subr.bf16.mxu0 %v661
    %2065 = vmatpush1.bf16.msra.mxu0 %v660
    %2066 = vmatprep.subr.bf16.mxu0 %v657
    %2067 = vmatpush1.bf16.msra.mxu0 %v656
    %2068 = vmatprep.subr.bf16.mxu0 %v653
    %2069 = vmatpush1.bf16.msra.mxu0 %v652
    %2070 = vmatprep.subr.bf16.mxu0 %v649
    %2071 = vmatpush1.bf16.msra.mxu0 %v648
    %2072 = vmatprep.subr.bf16.mxu0 %v645
    %2073 = vmatpush1.bf16.msra.mxu0 %v644
    %2074 = vmatprep.subr.bf16.mxu0 %v641
    %2075 = vmatpush1.bf16.msra.mxu0 %v640
    %2076 = vmatprep.subr.bf16.mxu0 0
    %2077 = vmatpush2.bf16.msra.mxu0 0
    %2078 = vmatprep.subr.bf16.mxu0 0
    %2079 = vmatpush2.bf16.msra.mxu0 0
    %2080 = vmatprep.subr.bf16.mxu0 0
    %2081 = vmatpush2.bf16.msra.mxu0 0
    %2082 = vmatprep.subr.bf16.mxu0 0
    %2083 = vmatpush2.bf16.msra.mxu0 0
    %2084 = vmatprep.subr.bf16.mxu0 0
    %2085 = vmatpush2.bf16.msra.mxu0 0
    %2086 = vmatprep.subr.bf16.mxu0 0
    %2087 = vmatpush2.bf16.msra.mxu0 0
    %2088 = vmatprep.subr.bf16.mxu0 0
    %2089 = vmatpush2.bf16.msra.mxu0 0
    %2090 = vmatprep.subr.bf16.mxu0 0
    %2091 = vmatpush2.bf16.msra.mxu0 0
    %2092 = vmatprep.mubr.bf16.mxu0 0
    %2093 = vmatmul.mubr.bf16.gmra.mxu0 %v2059
    %v2094 = vpop.f32.mrf.mxu0
    %v2095 = vadd.f32 0.0, %v2094
    %v2096 = vpop.f32.mrf.mxu0
    %v2097 = vadd.f32 0.0, %v2096
    %v2098 = vpop.f32.mrf.mxu0
    %v2099 = vpop.f32.mrf.mxu0
    %2100 = vdwg.mxu0
    %2101 = vmatprep.subr.bf16.mxu0 %v671
    %2102 = vmatpush1.bf16.msra.mxu0 %v670
    %2103 = vmatprep.subr.bf16.mxu0 %v667
    %2104 = vmatpush1.bf16.msra.mxu0 %v666
    %2105 = vmatprep.subr.bf16.mxu0 %v663
    %2106 = vmatpush1.bf16.msra.mxu0 %v662
    %2107 = vmatprep.subr.bf16.mxu0 %v659
    %2108 = vmatpush1.bf16.msra.mxu0 %v658
    %2109 = vmatprep.subr.bf16.mxu0 %v655
    %2110 = vmatpush1.bf16.msra.mxu0 %v654
    %2111 = vmatprep.subr.bf16.mxu0 %v651
    %2112 = vmatpush1.bf16.msra.mxu0 %v650
    %2113 = vmatprep.subr.bf16.mxu0 %v647
    %2114 = vmatpush1.bf16.msra.mxu0 %v646
    %2115 = vmatprep.subr.bf16.mxu0 %v643
    %2116 = vmatpush1.bf16.msra.mxu0 %v642
    %2117 = vmatprep.subr.bf16.mxu0 0
    %2118 = vmatpush2.bf16.msra.mxu0 0
    %2119 = vmatprep.subr.bf16.mxu0 0
    %2120 = vmatpush2.bf16.msra.mxu0 0
    %2121 = vmatprep.subr.bf16.mxu0 0
    %2122 = vmatpush2.bf16.msra.mxu0 0
    %2123 = vmatprep.subr.bf16.mxu0 0
    %2124 = vmatpush2.bf16.msra.mxu0 0
    %2125 = vmatprep.subr.bf16.mxu0 0
    %2126 = vmatpush2.bf16.msra.mxu0 0
    %2127 = vmatprep.subr.bf16.mxu0 0
    %2128 = vmatpush2.bf16.msra.mxu0 0
    %2129 = vmatprep.subr.bf16.mxu0 0
    %2130 = vmatpush2.bf16.msra.mxu0 0
    %2131 = vmatprep.subr.bf16.mxu0 0
    %2132 = vmatpush2.bf16.msra.mxu0 0
    %2133 = vmatprep.mubr.bf16.mxu0 0
    %2134 = vmatmul.mubr.bf16.gmra.mxu0 %v2059
    %v2135 = vpop.f32.mrf.mxu0
    %v2136 = vadd.f32 0.0, %v2135
    %v2137 = vpop.f32.mrf.mxu0
    %v2138 = vadd.f32 0.0, %v2137
    %v2139 = vpop.f32.mrf.mxu0
    %v2140 = vpop.f32.mrf.mxu0
    %2141 = vdwg.mxu0
    %v2142 = vadd.f32 %v2055, %v2095
    %v2143 = vadd.f32 %v2056, %v2097
    %v2144 = vadd.f32 %v2057, %v2136
    %v2145 = vadd.f32 %v2058, %v2138
    %v2146 = vxor.u32 %v2142, 2147483648
    %v2147 = vxor.u32 %v2143, 2147483648
    %v2148 = vxor.u32 %v2144, 2147483648
    %v2149 = vmul.f32 %v2146, 1.442695
    %v2150 = vpow.pop %v2149
    %v2151 = vmul.f32 %v2147, 1.442695
    %v2152 = vpow.pop %v2151
    %v2153 = vmul.f32 %v2148, 1.442695
    %v2154 = vpow.pop %v2153
    %v2155 = vadd.f32 %v2150, 1.0
    %v2156 = vadd.f32 %v2152, 1.0
    %v2157 = vadd.f32 %v2154, 1.0
    %v2158 = vrcp.pop %v2155
    %v2159 = vmul.f32 1.0, %v2158
    %v2160 = vrcp.pop %v2156
    %v2161 = vmul.f32 1.0, %v2160
    %v2162 = vrcp.pop %v2157
    %v2163 = vmul.f32 1.0, %v2162
    %v2164 = vtanh.pop %v2145
    %v2165 = vmul.f32 %v2161, %v1495
    %v2166 = vmul.f32 %v2159, %v2164
    %v2167 = vadd.f32 %v2165, %v2166
    %v2168 = vtanh.pop %v2167
    %v2169 = vmul.f32 %v2163, %v2168
    %v2170 = vpack.c.bf16 %v1604, %v1604
    %2171 = vmatprep.subr.bf16.mxu0 %v1175
    %2172 = vmatpush1.bf16.msra.mxu0 %v1174
    %2173 = vmatprep.subr.bf16.mxu0 %v1171
    %2174 = vmatpush1.bf16.msra.mxu0 %v1170
    %2175 = vmatprep.subr.bf16.mxu0 %v1167
    %2176 = vmatpush1.bf16.msra.mxu0 %v1166
    %2177 = vmatprep.subr.bf16.mxu0 %v1163
    %2178 = vmatpush1.bf16.msra.mxu0 %v1162
    %2179 = vmatprep.subr.bf16.mxu0 %v1159
    %2180 = vmatpush1.bf16.msra.mxu0 %v1158
    %2181 = vmatprep.subr.bf16.mxu0 %v1155
    %2182 = vmatpush1.bf16.msra.mxu0 %v1154
    %2183 = vmatprep.subr.bf16.mxu0 %v1151
    %2184 = vmatpush1.bf16.msra.mxu0 %v1150
    %2185 = vmatprep.subr.bf16.mxu0 %v1147
    %2186 = vmatpush1.bf16.msra.mxu0 %v1146
    %2187 = vmatprep.subr.bf16.mxu0 %v1207
    %2188 = vmatpush2.bf16.msra.mxu0 %v1206
    %2189 = vmatprep.subr.bf16.mxu0 %v1203
    %2190 = vmatpush2.bf16.msra.mxu0 %v1202
    %2191 = vmatprep.subr.bf16.mxu0 %v1199
    %2192 = vmatpush2.bf16.msra.mxu0 %v1198
    %2193 = vmatprep.subr.bf16.mxu0 %v1195
    %2194 = vmatpush2.bf16.msra.mxu0 %v1194
    %2195 = vmatprep.subr.bf16.mxu0 %v1191
    %2196 = vmatpush2.bf16.msra.mxu0 %v1190
    %2197 = vmatprep.subr.bf16.mxu0 %v1187
    %2198 = vmatpush2.bf16.msra.mxu0 %v1186
    %2199 = vmatprep.subr.bf16.mxu0 %v1183
    %2200 = vmatpush2.bf16.msra.mxu0 %v1182
    %2201 = vmatprep.subr.bf16.mxu0 %v1179
    %2202 = vmatpush2.bf16.msra.mxu0 %v1178
    %2203 = vmatprep.mubr.bf16.mxu0 %v2170
    %2204 = vmatmul.mubr.bf16.gmra.mxu0 %v2059
    %v2205 = vpop.f32.mrf.mxu0
    %v2206 = vadd.f32 %v937, %v2205
    %v2207 = vpop.f32.mrf.mxu0
    %v2208 = vadd.f32 %v941, %v2207
    %v2209 = vpop.f32.mrf.mxu0
    %v2210 = vpop.f32.mrf.mxu0
    %2211 = vdwg.mxu0
    %2212 = vmatprep.subr.bf16.mxu0 %v1177
    %2213 = vmatpush1.bf16.msra.mxu0 %v1176
    %2214 = vmatprep.subr.bf16.mxu0 %v1173
    %2215 = vmatpush1.bf16.msra.mxu0 %v1172
    %2216 = vmatprep.subr.bf16.mxu0 %v1169
    %2217 = vmatpush1.bf16.msra.mxu0 %v1168
    %2218 = vmatprep.subr.bf16.mxu0 %v1165
    %2219 = vmatpush1.bf16.msra.mxu0 %v1164
    %2220 = vmatprep.subr.bf16.mxu0 %v1161
    %2221 = vmatpush1.bf16.msra.mxu0 %v1160
    %2222 = vmatprep.subr.bf16.mxu0 %v1157
    %2223 = vmatpush1.bf16.msra.mxu0 %v1156
    %2224 = vmatprep.subr.bf16.mxu0 %v1153
    %2225 = vmatpush1.bf16.msra.mxu0 %v1152
    %2226 = vmatprep.subr.bf16.mxu0 %v1149
    %2227 = vmatpush1.bf16.msra.mxu0 %v1148
    %2228 = vmatprep.subr.bf16.mxu0 %v1209
    %2229 = vmatpush2.bf16.msra.mxu0 %v1208
    %2230 = vmatprep.subr.bf16.mxu0 %v1205
    %2231 = vmatpush2.bf16.msra.mxu0 %v1204
    %2232 = vmatprep.subr.bf16.mxu0 %v1201
    %2233 = vmatpush2.bf16.msra.mxu0 %v1200
    %2234 = vmatprep.subr.bf16.mxu0 %v1197
    %2235 = vmatpush2.bf16.msra.mxu0 %v1196
    %2236 = vmatprep.subr.bf16.mxu0 %v1193
    %2237 = vmatpush2.bf16.msra.mxu0 %v1192
    %2238 = vmatprep.subr.bf16.mxu0 %v1189
    %2239 = vmatpush2.bf16.msra.mxu0 %v1188
    %2240 = vmatprep.subr.bf16.mxu0 %v1185
    %2241 = vmatpush2.bf16.msra.mxu0 %v1184
    %2242 = vmatprep.subr.bf16.mxu0 %v1181
    %2243 = vmatpush2.bf16.msra.mxu0 %v1180
    %2244 = vmatprep.mubr.bf16.mxu0 %v2170
    %2245 = vmatmul.mubr.bf16.gmra.mxu0 %v2059
    %v2246 = vpop.f32.mrf.mxu0
    %v2247 = vadd.f32 %v945, %v2246
    %v2248 = vpop.f32.mrf.mxu0
    %v2249 = vadd.f32 %v949, %v2248
    %v2250 = vpop.f32.mrf.mxu0
    %v2251 = vpop.f32.mrf.mxu0
    %2252 = vdwg.mxu0
    %v2253 = vxor.u32 %v2206, 2147483648
    %v2254 = vxor.u32 %v2208, 2147483648
    %v2255 = vxor.u32 %v2247, 2147483648
    %v2256 = vmul.f32 %v2253, 1.442695
    %v2257 = vpow.pop %v2256
    %v2258 = vmul.f32 %v2254, 1.442695
    %v2259 = vpow.pop %v2258
    %v2260 = vmul.f32 %v2255, 1.442695
    %v2261 = vpow.pop %v2260
    %v2262 = vadd.f32 %v2257, 1.0
    %v2263 = vadd.f32 %v2259, 1.0
    %v2264 = vadd.f32 %v2261, 1.0
    %v2265 = vrcp.pop %v2262
    %v2266 = vmul.f32 1.0, %v2265
    %v2267 = vrcp.pop %v2263
    %v2268 = vmul.f32 1.0, %v2267
    %v2269 = vrcp.pop %v2264
    %v2270 = vmul.f32 1.0, %v2269
    %v2271 = vtanh.pop %v2249
    %v2272 = vmul.f32 %v2268, %v1602
    %v2273 = vmul.f32 %v2266, %v2271
    %v2274 = vadd.f32 %v2272, %v2273
    %v2275 = vtanh.pop %v2274
    %v2276 = vmul.f32 %v2270, %v2275
    %v2277 = vpack.c.bf16 %v2051, %v2051
    %2278 = vmatprep.subr.bf16.mxu0 %v1847
    %2279 = vmatpush1.bf16.msra.mxu0 %v1846
    %2280 = vmatprep.subr.bf16.mxu0 %v1843
    %2281 = vmatpush1.bf16.msra.mxu0 %v1842
    %2282 = vmatprep.subr.bf16.mxu0 %v1839
    %2283 = vmatpush1.bf16.msra.mxu0 %v1838
    %2284 = vmatprep.subr.bf16.mxu0 %v1835
    %2285 = vmatpush1.bf16.msra.mxu0 %v1834
    %2286 = vmatprep.subr.bf16.mxu0 %v1831
    %2287 = vmatpush1.bf16.msra.mxu0 %v1830
    %2288 = vmatprep.subr.bf16.mxu0 %v1827
    %2289 = vmatpush1.bf16.msra.mxu0 %v1826
    %2290 = vmatprep.subr.bf16.mxu0 %v1823
    %2291 = vmatpush1.bf16.msra.mxu0 %v1822
    %2292 = vmatprep.subr.bf16.mxu0 %v1819
    %2293 = vmatpush1.bf16.msra.mxu0 %v1818
    %2294 = vmatprep.subr.bf16.mxu0 %v1879
    %2295 = vmatpush2.bf16.msra.mxu0 %v1878
    %2296 = vmatprep.subr.bf16.mxu0 %v1875
    %2297 = vmatpush2.bf16.msra.mxu0 %v1874
    %2298 = vmatprep.subr.bf16.mxu0 %v1871
    %2299 = vmatpush2.bf16.msra.mxu0 %v1870
    %2300 = vmatprep.subr.bf16.mxu0 %v1867
    %2301 = vmatpush2.bf16.msra.mxu0 %v1866
    %2302 = vmatprep.subr.bf16.mxu0 %v1863
    %2303 = vmatpush2.bf16.msra.mxu0 %v1862
    %2304 = vmatprep.subr.bf16.mxu0 %v1859
    %2305 = vmatpush2.bf16.msra.mxu0 %v1858
    %2306 = vmatprep.subr.bf16.mxu0 %v1855
    %2307 = vmatpush2.bf16.msra.mxu0 %v1854
    %2308 = vmatprep.subr.bf16.mxu0 %v1851
    %2309 = vmatpush2.bf16.msra.mxu0 %v1850
    %2310 = vmatprep.mubr.bf16.mxu0 %v2277
    %2311 = vmatmul.mubr.bf16.gmra.mxu0 %v2170
    %v2312 = vpop.f32.mrf.mxu0
    %v2313 = vadd.f32 %v1609, %v2312
    %v2314 = vpop.f32.mrf.mxu0
    %v2315 = vadd.f32 %v1613, %v2314
    %v2316 = vpop.f32.mrf.mxu0
    %v2317 = vpop.f32.mrf.mxu0
    %2318 = vdwg.mxu0
    %2319 = vmatprep.subr.bf16.mxu0 %v1849
    %2320 = vmatpush1.bf16.msra.mxu0 %v1848
    %2321 = vmatprep.subr.bf16.mxu0 %v1845
    %2322 = vmatpush1.bf16.msra.mxu0 %v1844
    %2323 = vmatprep.subr.bf16.mxu0 %v1841
    %2324 = vmatpush1.bf16.msra.mxu0 %v1840
    %2325 = vmatprep.subr.bf16.mxu0 %v1837
    %2326 = vmatpush1.bf16.msra.mxu0 %v1836
    %2327 = vmatprep.subr.bf16.mxu0 %v1833
    %2328 = vmatpush1.bf16.msra.mxu0 %v1832
    %2329 = vmatprep.subr.bf16.mxu0 %v1829
    %2330 = vmatpush1.bf16.msra.mxu0 %v1828
    %2331 = vmatprep.subr.bf16.mxu0 %v1825
    %2332 = vmatpush1.bf16.msra.mxu0 %v1824
    %2333 = vmatprep.subr.bf16.mxu0 %v1821
    %2334 = vmatpush1.bf16.msra.mxu0 %v1820
    %2335 = vmatprep.subr.bf16.mxu0 %v1881
    %2336 = vmatpush2.bf16.msra.mxu0 %v1880
    %2337 = vmatprep.subr.bf16.mxu0 %v1877
    %2338 = vmatpush2.bf16.msra.mxu0 %v1876
    %2339 = vmatprep.subr.bf16.mxu0 %v1873
    %2340 = vmatpush2.bf16.msra.mxu0 %v1872
    %2341 = vmatprep.subr.bf16.mxu0 %v1869
    %2342 = vmatpush2.bf16.msra.mxu0 %v1868
    %2343 = vmatprep.subr.bf16.mxu0 %v1865
    %2344 = vmatpush2.bf16.msra.mxu0 %v1864
    %2345 = vmatprep.subr.bf16.mxu0 %v1861
    %2346 = vmatpush2.bf16.msra.mxu0 %v1860
    %2347 = vmatprep.subr.bf16.mxu0 %v1857
    %2348 = vmatpush2.bf16.msra.mxu0 %v1856
    %2349 = vmatprep.subr.bf16.mxu0 %v1853
    %2350 = vmatpush2.bf16.msra.mxu0 %v1852
    %2351 = vmatprep.mubr.bf16.mxu0 %v2277
    %2352 = vmatmul.mubr.bf16.gmra.mxu0 %v2170
    %v2353 = vpop.f32.mrf.mxu0
    %v2354 = vadd.f32 %v1617, %v2353
    %v2355 = vpop.f32.mrf.mxu0
    %v2356 = vadd.f32 %v1621, %v2355
    %v2357 = vpop.f32.mrf.mxu0
    %v2358 = vpop.f32.mrf.mxu0
    %2359 = vdwg.mxu0
    %v2360 = vxor.u32 %v2313, 2147483648
    %v2361 = vxor.u32 %v2315, 2147483648
    %v2362 = vxor.u32 %v2354, 2147483648
    %v2363 = vmul.f32 %v2360, 1.442695
    %v2364 = vpow.pop %v2363
    %v2365 = vmul.f32 %v2361, 1.442695
    %v2366 = vpow.pop %v2365
    %v2367 = vmul.f32 %v2362, 1.442695
    %v2368 = vpow.pop %v2367
    %v2369 = vadd.f32 %v2364, 1.0
    %v2370 = vadd.f32 %v2366, 1.0
    %v2371 = vadd.f32 %v2368, 1.0
    %v2372 = vrcp.pop %v2369
    %v2373 = vmul.f32 1.0, %v2372
    %v2374 = vrcp.pop %v2370
    %v2375 = vmul.f32 1.0, %v2374
    %v2376 = vrcp.pop %v2371
    %v2377 = vmul.f32 1.0, %v2376
    %v2378 = vtanh.pop %v2356
    %v2379 = vmul.f32 %v2375, %v2049
    %v2380 = vmul.f32 %v2373, %v2378
    %v2381 = vadd.f32 %v2379, %v2380
    %v2382 = vtanh.pop %v2381
    %v2383 = vmul.f32 %v2377, %v2382
    %s2384 = smul.u32 4, 4
    %s2385 = smul.addr %s2384, 8
    %s2386 = scalar_lea.vmem [#allocation2], %s2385
    %v2387 = vld [vmem:[%s2386] sm:$0xff]
    %v2388 = vld [vmem:[%s2386 + $0x8] sm:$0xff]
    %v2389 = vld [vmem:[%s2386 + $0x10] sm:$0xff]
    %v2390 = vld [vmem:[%s2386 + $0x18] sm:$0xff]
    %v2391 = vpack.c.bf16 %v2169, %v2169
    %2392 = vmatprep.subr.bf16.mxu0 %v669
    %2393 = vmatpush1.bf16.msra.mxu0 %v668
    %2394 = vmatprep.subr.bf16.mxu0 %v665
    %2395 = vmatpush1.bf16.msra.mxu0 %v664
    %2396 = vmatprep.subr.bf16.mxu0 %v661
    %2397 = vmatpush1.bf16.msra.mxu0 %v660
    %2398 = vmatprep.subr.bf16.mxu0 %v657
    %2399 = vmatpush1.bf16.msra.mxu0 %v656
    %2400 = vmatprep.subr.bf16.mxu0 %v653
    %2401 = vmatpush1.bf16.msra.mxu0 %v652
    %2402 = vmatprep.subr.bf16.mxu0 %v649
    %2403 = vmatpush1.bf16.msra.mxu0 %v648
    %2404 = vmatprep.subr.bf16.mxu0 %v645
    %2405 = vmatpush1.bf16.msra.mxu0 %v644
    %2406 = vmatprep.subr.bf16.mxu0 %v641
    %2407 = vmatpush1.bf16.msra.mxu0 %v640
    %2408 = vmatprep.subr.bf16.mxu0 0
    %2409 = vmatpush2.bf16.msra.mxu0 0
    %2410 = vmatprep.subr.bf16.mxu0 0
    %2411 = vmatpush2.bf16.msra.mxu0 0
    %2412 = vmatprep.subr.bf16.mxu0 0
    %2413 = vmatpush2.bf16.msra.mxu0 0
    %2414 = vmatprep.subr.bf16.mxu0 0
    %2415 = vmatpush2.bf16.msra.mxu0 0
    %2416 = vmatprep.subr.bf16.mxu0 0
    %2417 = vmatpush2.bf16.msra.mxu0 0
    %2418 = vmatprep.subr.bf16.mxu0 0
    %2419 = vmatpush2.bf16.msra.mxu0 0
    %2420 = vmatprep.subr.bf16.mxu0 0
    %2421 = vmatpush2.bf16.msra.mxu0 0
    %2422 = vmatprep.subr.bf16.mxu0 0
    %2423 = vmatpush2.bf16.msra.mxu0 0
    %2424 = vmatprep.mubr.bf16.mxu0 0
    %2425 = vmatmul.mubr.bf16.gmra.mxu0 %v2391
    %v2426 = vpop.f32.mrf.mxu0
    %v2427 = vadd.f32 0.0, %v2426
    %v2428 = vpop.f32.mrf.mxu0
    %v2429 = vadd.f32 0.0, %v2428
    %v2430 = vpop.f32.mrf.mxu0
    %v2431 = vpop.f32.mrf.mxu0
    %2432 = vdwg.mxu0
    %2433 = vmatprep.subr.bf16.mxu0 %v671
    %2434 = vmatpush1.bf16.msra.mxu0 %v670
    %2435 = vmatprep.subr.bf16.mxu0 %v667
    %2436 = vmatpush1.bf16.msra.mxu0 %v666
    %2437 = vmatprep.subr.bf16.mxu0 %v663
    %2438 = vmatpush1.bf16.msra.mxu0 %v662
    %2439 = vmatprep.subr.bf16.mxu0 %v659
    %2440 = vmatpush1.bf16.msra.mxu0 %v658
    %2441 = vmatprep.subr.bf16.mxu0 %v655
    %2442 = vmatpush1.bf16.msra.mxu0 %v654
    %2443 = vmatprep.subr.bf16.mxu0 %v651
    %2444 = vmatpush1.bf16.msra.mxu0 %v650
    %2445 = vmatprep.subr.bf16.mxu0 %v647
    %2446 = vmatpush1.bf16.msra.mxu0 %v646
    %2447 = vmatprep.subr.bf16.mxu0 %v643
    %2448 = vmatpush1.bf16.msra.mxu0 %v642
    %2449 = vmatprep.subr.bf16.mxu0 0
    %2450 = vmatpush2.bf16.msra.mxu0 0
    %2451 = vmatprep.subr.bf16.mxu0 0
    %2452 = vmatpush2.bf16.msra.mxu0 0
    %2453 = vmatprep.subr.bf16.mxu0 0
    %2454 = vmatpush2.bf16.msra.mxu0 0
    %2455 = vmatprep.subr.bf16.mxu0 0
    %2456 = vmatpush2.bf16.msra.mxu0 0
    %2457 = vmatprep.subr.bf16.mxu0 0
    %2458 = vmatpush2.bf16.msra.mxu0 0
    %2459 = vmatprep.subr.bf16.mxu0 0
    %2460 = vmatpush2.bf16.msra.mxu0 0
    %2461 = vmatprep.subr.bf16.mxu0 0
    %2462 = vmatpush2.bf16.msra.mxu0 0
    %2463 = vmatprep.subr.bf16.mxu0 0
    %2464 = vmatpush2.bf16.msra.mxu0 0
    %2465 = vmatprep.mubr.bf16.mxu0 0
    %2466 = vmatmul.mubr.bf16.gmra.mxu0 %v2391
    %v2467 = vpop.f32.mrf.mxu0
    %v2468 = vadd.f32 0.0, %v2467
    %v2469 = vpop.f32.mrf.mxu0
    %v2470 = vadd.f32 0.0, %v2469
    %v2471 = vpop.f32.mrf.mxu0
    %v2472 = vpop.f32.mrf.mxu0
    %2473 = vdwg.mxu0
    %v2474 = vadd.f32 %v2387, %v2427
    %v2475 = vadd.f32 %v2388, %v2429
    %v2476 = vadd.f32 %v2389, %v2468
    %v2477 = vadd.f32 %v2390, %v2470
    %v2478 = vxor.u32 %v2474, 2147483648
    %v2479 = vxor.u32 %v2475, 2147483648
    %v2480 = vxor.u32 %v2476, 2147483648
    %v2481 = vmul.f32 %v2478, 1.442695
    %v2482 = vpow.pop %v2481
    %v2483 = vmul.f32 %v2479, 1.442695
    %v2484 = vpow.pop %v2483
    %v2485 = vmul.f32 %v2480, 1.442695
    %v2486 = vpow.pop %v2485
    %v2487 = vadd.f32 %v2482, 1.0
    %v2488 = vadd.f32 %v2484, 1.0
    %v2489 = vadd.f32 %v2486, 1.0
    %v2490 = vrcp.pop %v2487
    %v2491 = vmul.f32 1.0, %v2490
    %v2492 = vrcp.pop %v2488
    %v2493 = vmul.f32 1.0, %v2492
    %v2494 = vrcp.pop %v2489
    %v2495 = vmul.f32 1.0, %v2494
    %v2496 = vtanh.pop %v2477
    %v2497 = vmul.f32 %v2493, %v2167
    %v2498 = vmul.f32 %v2491, %v2496
    %v2499 = vadd.f32 %v2497, %v2498
    %v2500 = vtanh.pop %v2499
    %v2501 = vmul.f32 %v2495, %v2500
    %v2502 = vpack.c.bf16 %v2276, %v2276
    %2503 = vmatprep.subr.bf16.mxu0 %v1175
    %2504 = vmatpush1.bf16.msra.mxu0 %v1174
    %2505 = vmatprep.subr.bf16.mxu0 %v1171
    %2506 = vmatpush1.bf16.msra.mxu0 %v1170
    %2507 = vmatprep.subr.bf16.mxu0 %v1167
    %2508 = vmatpush1.bf16.msra.mxu0 %v1166
    %2509 = vmatprep.subr.bf16.mxu0 %v1163
    %2510 = vmatpush1.bf16.msra.mxu0 %v1162
    %2511 = vmatprep.subr.bf16.mxu0 %v1159
    %2512 = vmatpush1.bf16.msra.mxu0 %v1158
    %2513 = vmatprep.subr.bf16.mxu0 %v1155
    %2514 = vmatpush1.bf16.msra.mxu0 %v1154
    %2515 = vmatprep.subr.bf16.mxu0 %v1151
    %2516 = vmatpush1.bf16.msra.mxu0 %v1150
    %2517 = vmatprep.subr.bf16.mxu0 %v1147
    %2518 = vmatpush1.bf16.msra.mxu0 %v1146
    %2519 = vmatprep.subr.bf16.mxu0 %v1207
    %2520 = vmatpush2.bf16.msra.mxu0 %v1206
    %2521 = vmatprep.subr.bf16.mxu0 %v1203
    %2522 = vmatpush2.bf16.msra.mxu0 %v1202
    %2523 = vmatprep.subr.bf16.mxu0 %v1199
    %2524 = vmatpush2.bf16.msra.mxu0 %v1198
    %2525 = vmatprep.subr.bf16.mxu0 %v1195
    %2526 = vmatpush2.bf16.msra.mxu0 %v1194
    %2527 = vmatprep.subr.bf16.mxu0 %v1191
    %2528 = vmatpush2.bf16.msra.mxu0 %v1190
    %2529 = vmatprep.subr.bf16.mxu0 %v1187
    %2530 = vmatpush2.bf16.msra.mxu0 %v1186
    %2531 = vmatprep.subr.bf16.mxu0 %v1183
    %2532 = vmatpush2.bf16.msra.mxu0 %v1182
    %2533 = vmatprep.subr.bf16.mxu0 %v1179
    %2534 = vmatpush2.bf16.msra.mxu0 %v1178
    %2535 = vmatprep.mubr.bf16.mxu0 %v2502
    %2536 = vmatmul.mubr.bf16.gmra.mxu0 %v2391
    %v2537 = vpop.f32.mrf.mxu0
    %v2538 = vadd.f32 %v937, %v2537
    %v2539 = vpop.f32.mrf.mxu0
    %v2540 = vadd.f32 %v941, %v2539
    %v2541 = vpop.f32.mrf.mxu0
    %v2542 = vpop.f32.mrf.mxu0
    %2543 = vdwg.mxu0
    %2544 = vmatprep.subr.bf16.mxu0 %v1177
    %2545 = vmatpush1.bf16.msra.mxu0 %v1176
    %2546 = vmatprep.subr.bf16.mxu0 %v1173
    %2547 = vmatpush1.bf16.msra.mxu0 %v1172
    %2548 = vmatprep.subr.bf16.mxu0 %v1169
    %2549 = vmatpush1.bf16.msra.mxu0 %v1168
    %2550 = vmatprep.subr.bf16.mxu0 %v1165
    %2551 = vmatpush1.bf16.msra.mxu0 %v1164
    %2552 = vmatprep.subr.bf16.mxu0 %v1161
    %2553 = vmatpush1.bf16.msra.mxu0 %v1160
    %2554 = vmatprep.subr.bf16.mxu0 %v1157
    %2555 = vmatpush1.bf16.msra.mxu0 %v1156
    %2556 = vmatprep.subr.bf16.mxu0 %v1153
    %2557 = vmatpush1.bf16.msra.mxu0 %v1152
    %2558 = vmatprep.subr.bf16.mxu0 %v1149
    %2559 = vmatpush1.bf16.msra.mxu0 %v1148
    %2560 = vmatprep.subr.bf16.mxu0 %v1209
    %2561 = vmatpush2.bf16.msra.mxu0 %v1208
    %2562 = vmatprep.subr.bf16.mxu0 %v1205
    %2563 = vmatpush2.bf16.msra.mxu0 %v1204
    %2564 = vmatprep.subr.bf16.mxu0 %v1201
    %2565 = vmatpush2.bf16.msra.mxu0 %v1200
    %2566 = vmatprep.subr.bf16.mxu0 %v1197
    %2567 = vmatpush2.bf16.msra.mxu0 %v1196
    %2568 = vmatprep.subr.bf16.mxu0 %v1193
    %2569 = vmatpush2.bf16.msra.mxu0 %v1192
    %2570 = vmatprep.subr.bf16.mxu0 %v1189
    %2571 = vmatpush2.bf16.msra.mxu0 %v1188
    %2572 = vmatprep.subr.bf16.mxu0 %v1185
    %2573 = vmatpush2.bf16.msra.mxu0 %v1184
    %2574 = vmatprep.subr.bf16.mxu0 %v1181
    %2575 = vmatpush2.bf16.msra.mxu0 %v1180
    %2576 = vmatprep.mubr.bf16.mxu0 %v2502
    %2577 = vmatmul.mubr.bf16.gmra.mxu0 %v2391
    %v2578 = vpop.f32.mrf.mxu0
    %v2579 = vadd.f32 %v945, %v2578
    %v2580 = vpop.f32.mrf.mxu0
    %v2581 = vadd.f32 %v949, %v2580
    %v2582 = vpop.f32.mrf.mxu0
    %v2583 = vpop.f32.mrf.mxu0
    %2584 = vdwg.mxu0
    %v2585 = vxor.u32 %v2538, 2147483648
    %v2586 = vxor.u32 %v2540, 2147483648
    %v2587 = vxor.u32 %v2579, 2147483648
    %v2588 = vmul.f32 %v2585, 1.442695
    %v2589 = vpow.pop %v2588
    %v2590 = vmul.f32 %v2586, 1.442695
    %v2591 = vpow.pop %v2590
    %v2592 = vmul.f32 %v2587, 1.442695
    %v2593 = vpow.pop %v2592
    %v2594 = vadd.f32 %v2589, 1.0
    %v2595 = vadd.f32 %v2591, 1.0
    %v2596 = vadd.f32 %v2593, 1.0
    %v2597 = vrcp.pop %v2594
    %v2598 = vmul.f32 1.0, %v2597
    %v2599 = vrcp.pop %v2595
    %v2600 = vmul.f32 1.0, %v2599
    %v2601 = vrcp.pop %v2596
    %v2602 = vmul.f32 1.0, %v2601
    %v2603 = vtanh.pop %v2581
    %v2604 = vmul.f32 %v2600, %v2274
    %v2605 = vmul.f32 %v2598, %v2603
    %v2606 = vadd.f32 %v2604, %v2605
    %v2607 = vtanh.pop %v2606
    %v2608 = vmul.f32 %v2602, %v2607
    %v2609 = vpack.c.bf16 %v2383, %v2383
    %2610 = vmatprep.subr.bf16.mxu0 %v1847
    %2611 = vmatpush1.bf16.msra.mxu0 %v1846
    %2612 = vmatprep.subr.bf16.mxu0 %v1843
    %2613 = vmatpush1.bf16.msra.mxu0 %v1842
    %2614 = vmatprep.subr.bf16.mxu0 %v1839
    %2615 = vmatpush1.bf16.msra.mxu0 %v1838
    %2616 = vmatprep.subr.bf16.mxu0 %v1835
    %2617 = vmatpush1.bf16.msra.mxu0 %v1834
    %2618 = vmatprep.subr.bf16.mxu0 %v1831
    %2619 = vmatpush1.bf16.msra.mxu0 %v1830
    %2620 = vmatprep.subr.bf16.mxu0 %v1827
    %2621 = vmatpush1.bf16.msra.mxu0 %v1826
    %2622 = vmatprep.subr.bf16.mxu0 %v1823
    %2623 = vmatpush1.bf16.msra.mxu0 %v1822
    %2624 = vmatprep.subr.bf16.mxu0 %v1819
    %2625 = vmatpush1.bf16.msra.mxu0 %v1818
    %2626 = vmatprep.subr.bf16.mxu0 %v1879
    %2627 = vmatpush2.bf16.msra.mxu0 %v1878
    %2628 = vmatprep.subr.bf16.mxu0 %v1875
    %2629 = vmatpush2.bf16.msra.mxu0 %v1874
    %2630 = vmatprep.subr.bf16.mxu0 %v1871
    %2631 = vmatpush2.bf16.msra.mxu0 %v1870
    %2632 = vmatprep.subr.bf16.mxu0 %v1867
    %2633 = vmatpush2.bf16.msra.mxu0 %v1866
    %2634 = vmatprep.subr.bf16.mxu0 %v1863
    %2635 = vmatpush2.bf16.msra.mxu0 %v1862
    %2636 = vmatprep.subr.bf16.mxu0 %v1859
    %2637 = vmatpush2.bf16.msra.mxu0 %v1858
    %2638 = vmatprep.subr.bf16.mxu0 %v1855
    %2639 = vmatpush2.bf16.msra.mxu0 %v1854
    %2640 = vmatprep.subr.bf16.mxu0 %v1851
    %2641 = vmatpush2.bf16.msra.mxu0 %v1850
    %2642 = vmatprep.mubr.bf16.mxu0 %v2609
    %2643 = vmatmul.mubr.bf16.gmra.mxu0 %v2502
    %v2644 = vpop.f32.mrf.mxu0
    %v2645 = vadd.f32 %v1609, %v2644
    %v2646 = vpop.f32.mrf.mxu0
    %v2647 = vadd.f32 %v1613, %v2646
    %v2648 = vpop.f32.mrf.mxu0
    %v2649 = vpop.f32.mrf.mxu0
    %2650 = vdwg.mxu0
    %2651 = vmatprep.subr.bf16.mxu0 %v1849
    %2652 = vmatpush1.bf16.msra.mxu0 %v1848
    %2653 = vmatprep.subr.bf16.mxu0 %v1845
    %2654 = vmatpush1.bf16.msra.mxu0 %v1844
    %2655 = vmatprep.subr.bf16.mxu0 %v1841
    %2656 = vmatpush1.bf16.msra.mxu0 %v1840
    %2657 = vmatprep.subr.bf16.mxu0 %v1837
    %2658 = vmatpush1.bf16.msra.mxu0 %v1836
    %2659 = vmatprep.subr.bf16.mxu0 %v1833
    %2660 = vmatpush1.bf16.msra.mxu0 %v1832
    %2661 = vmatprep.subr.bf16.mxu0 %v1829
    %2662 = vmatpush1.bf16.msra.mxu0 %v1828
    %2663 = vmatprep.subr.bf16.mxu0 %v1825
    %2664 = vmatpush1.bf16.msra.mxu0 %v1824
    %2665 = vmatprep.subr.bf16.mxu0 %v1821
    %2666 = vmatpush1.bf16.msra.mxu0 %v1820
    %2667 = vmatprep.subr.bf16.mxu0 %v1881
    %2668 = vmatpush2.bf16.msra.mxu0 %v1880
    %2669 = vmatprep.subr.bf16.mxu0 %v1877
    %2670 = vmatpush2.bf16.msra.mxu0 %v1876
    %2671 = vmatprep.subr.bf16.mxu0 %v1873
    %2672 = vmatpush2.bf16.msra.mxu0 %v1872
    %2673 = vmatprep.subr.bf16.mxu0 %v1869
    %2674 = vmatpush2.bf16.msra.mxu0 %v1868
    %2675 = vmatprep.subr.bf16.mxu0 %v1865
    %2676 = vmatpush2.bf16.msra.mxu0 %v1864
    %2677 = vmatprep.subr.bf16.mxu0 %v1861
    %2678 = vmatpush2.bf16.msra.mxu0 %v1860
    %2679 = vmatprep.subr.bf16.mxu0 %v1857
    %2680 = vmatpush2.bf16.msra.mxu0 %v1856
    %2681 = vmatprep.subr.bf16.mxu0 %v1853
    %2682 = vmatpush2.bf16.msra.mxu0 %v1852
    %2683 = vmatprep.mubr.bf16.mxu0 %v2609
    %2684 = vmatmul.mubr.bf16.gmra.mxu0 %v2502
    %v2685 = vpop.f32.mrf.mxu0
    %v2686 = vadd.f32 %v1617, %v2685
    %v2687 = vpop.f32.mrf.mxu0
    %v2688 = vadd.f32 %v1621, %v2687
    %v2689 = vpop.f32.mrf.mxu0
    %v2690 = vpop.f32.mrf.mxu0
    %2691 = vdwg.mxu0
    %v2692 = vxor.u32 %v2645, 2147483648
    %v2693 = vxor.u32 %v2647, 2147483648
    %v2694 = vxor.u32 %v2686, 2147483648
    %v2695 = vmul.f32 %v2692, 1.442695
    %v2696 = vpow.pop %v2695
    %v2697 = vmul.f32 %v2693, 1.442695
    %v2698 = vpow.pop %v2697
    %v2699 = vmul.f32 %v2694, 1.442695
    %v2700 = vpow.pop %v2699
    %v2701 = vadd.f32 %v2696, 1.0
    %v2702 = vadd.f32 %v2698, 1.0
    %v2703 = vadd.f32 %v2700, 1.0
    %v2704 = vrcp.pop %v2701
    %v2705 = vmul.f32 1.0, %v2704
    %v2706 = vrcp.pop %v2702
    %v2707 = vmul.f32 1.0, %v2706
    %v2708 = vrcp.pop %v2703
    %v2709 = vmul.f32 1.0, %v2708
    %v2710 = vtanh.pop %v2688
    %v2711 = vmul.f32 %v2707, %v2381
    %v2712 = vmul.f32 %v2705, %v2710
    %v2713 = vadd.f32 %v2711, %v2712
    %v2714 = vtanh.pop %v2713
    %v2715 = vmul.f32 %v2709, %v2714
    %s2716 = smul.u32 5, 4
    %s2717 = smul.addr %s2716, 8
    %s2718 = scalar_lea.vmem [#allocation2], %s2717
    %v2719 = vld [vmem:[%s2718] sm:$0xff]
    %v2720 = vld [vmem:[%s2718 + $0x8] sm:$0xff]
    %v2721 = vld [vmem:[%s2718 + $0x10] sm:$0xff]
    %v2722 = vld [vmem:[%s2718 + $0x18] sm:$0xff]
    %v2723 = vpack.c.bf16 %v2501, %v2501
    %2724 = vmatprep.subr.bf16.mxu0 %v669
    %2725 = vmatpush1.bf16.msra.mxu0 %v668
    %2726 = vmatprep.subr.bf16.mxu0 %v665
    %2727 = vmatpush1.bf16.msra.mxu0 %v664
    %2728 = vmatprep.subr.bf16.mxu0 %v661
    %2729 = vmatpush1.bf16.msra.mxu0 %v660
    %2730 = vmatprep.subr.bf16.mxu0 %v657
    %2731 = vmatpush1.bf16.msra.mxu0 %v656
    %2732 = vmatprep.subr.bf16.mxu0 %v653
    %2733 = vmatpush1.bf16.msra.mxu0 %v652
    %2734 = vmatprep.subr.bf16.mxu0 %v649
    %2735 = vmatpush1.bf16.msra.mxu0 %v648
    %2736 = vmatprep.subr.bf16.mxu0 %v645
    %2737 = vmatpush1.bf16.msra.mxu0 %v644
    %2738 = vmatprep.subr.bf16.mxu0 %v641
    %2739 = vmatpush1.bf16.msra.mxu0 %v640
    %2740 = vmatprep.subr.bf16.mxu0 0
    %2741 = vmatpush2.bf16.msra.mxu0 0
    %2742 = vmatprep.subr.bf16.mxu0 0
    %2743 = vmatpush2.bf16.msra.mxu0 0
    %2744 = vmatprep.subr.bf16.mxu0 0
    %2745 = vmatpush2.bf16.msra.mxu0 0
    %2746 = vmatprep.subr.bf16.mxu0 0
    %2747 = vmatpush2.bf16.msra.mxu0 0
    %2748 = vmatprep.subr.bf16.mxu0 0
    %2749 = vmatpush2.bf16.msra.mxu0 0
    %2750 = vmatprep.subr.bf16.mxu0 0
    %2751 = vmatpush2.bf16.msra.mxu0 0
    %2752 = vmatprep.subr.bf16.mxu0 0
    %2753 = vmatpush2.bf16.msra.mxu0 0
    %2754 = vmatprep.subr.bf16.mxu0 0
    %2755 = vmatpush2.bf16.msra.mxu0 0
    %2756 = vmatprep.mubr.bf16.mxu0 0
    %2757 = vmatmul.mubr.bf16.gmra.mxu0 %v2723
    %v2758 = vpop.f32.mrf.mxu0
    %v2759 = vadd.f32 0.0, %v2758
    %v2760 = vpop.f32.mrf.mxu0
    %v2761 = vadd.f32 0.0, %v2760
    %v2762 = vpop.f32.mrf.mxu0
    %v2763 = vpop.f32.mrf.mxu0
    %2764 = vdwg.mxu0
    %2765 = vmatprep.subr.bf16.mxu0 %v671
    %2766 = vmatpush1.bf16.msra.mxu0 %v670
    %2767 = vmatprep.subr.bf16.mxu0 %v667
    %2768 = vmatpush1.bf16.msra.mxu0 %v666
    %2769 = vmatprep.subr.bf16.mxu0 %v663
    %2770 = vmatpush1.bf16.msra.mxu0 %v662
    %2771 = vmatprep.subr.bf16.mxu0 %v659
    %2772 = vmatpush1.bf16.msra.mxu0 %v658
    %2773 = vmatprep.subr.bf16.mxu0 %v655
    %2774 = vmatpush1.bf16.msra.mxu0 %v654
    %2775 = vmatprep.subr.bf16.mxu0 %v651
    %2776 = vmatpush1.bf16.msra.mxu0 %v650
    %2777 = vmatprep.subr.bf16.mxu0 %v647
    %2778 = vmatpush1.bf16.msra.mxu0 %v646
    %2779 = vmatprep.subr.bf16.mxu0 %v643
    %2780 = vmatpush1.bf16.msra.mxu0 %v642
    %2781 = vmatprep.subr.bf16.mxu0 0
    %2782 = vmatpush2.bf16.msra.mxu0 0
    %2783 = vmatprep.subr.bf16.mxu0 0
    %2784 = vmatpush2.bf16.msra.mxu0 0
    %2785 = vmatprep.subr.bf16.mxu0 0
    %2786 = vmatpush2.bf16.msra.mxu0 0
    %2787 = vmatprep.subr.bf16.mxu0 0
    %2788 = vmatpush2.bf16.msra.mxu0 0
    %2789 = vmatprep.subr.bf16.mxu0 0
    %2790 = vmatpush2.bf16.msra.mxu0 0
    %2791 = vmatprep.subr.bf16.mxu0 0
    %2792 = vmatpush2.bf16.msra.mxu0 0
    %2793 = vmatprep.subr.bf16.mxu0 0
    %2794 = vmatpush2.bf16.msra.mxu0 0
    %2795 = vmatprep.subr.bf16.mxu0 0
    %2796 = vmatpush2.bf16.msra.mxu0 0
    %2797 = vmatprep.mubr.bf16.mxu0 0
    %2798 = vmatmul.mubr.bf16.gmra.mxu0 %v2723
    %v2799 = vpop.f32.mrf.mxu0
    %v2800 = vadd.f32 0.0, %v2799
    %v2801 = vpop.f32.mrf.mxu0
    %v2802 = vadd.f32 0.0, %v2801
    %v2803 = vpop.f32.mrf.mxu0
    %v2804 = vpop.f32.mrf.mxu0
    %2805 = vdwg.mxu0
    %v2806 = vadd.f32 %v2719, %v2759
    %v2807 = vadd.f32 %v2720, %v2761
    %v2808 = vadd.f32 %v2721, %v2800
    %v2809 = vadd.f32 %v2722, %v2802
    %v2810 = vxor.u32 %v2806, 2147483648
    %v2811 = vxor.u32 %v2807, 2147483648
    %v2812 = vxor.u32 %v2808, 2147483648
    %v2813 = vmul.f32 %v2810, 1.442695
    %v2814 = vpow.pop %v2813
    %v2815 = vmul.f32 %v2811, 1.442695
    %v2816 = vpow.pop %v2815
    %v2817 = vmul.f32 %v2812, 1.442695
    %v2818 = vpow.pop %v2817
    %v2819 = vadd.f32 %v2814, 1.0
    %v2820 = vadd.f32 %v2816, 1.0
    %v2821 = vadd.f32 %v2818, 1.0
    %v2822 = vrcp.pop %v2819
    %v2823 = vmul.f32 1.0, %v2822
    %v2824 = vrcp.pop %v2820
    %v2825 = vmul.f32 1.0, %v2824
    %v2826 = vrcp.pop %v2821
    %v2827 = vmul.f32 1.0, %v2826
    %v2828 = vtanh.pop %v2809
    %v2829 = vmul.f32 %v2825, %v2499
    %v2830 = vmul.f32 %v2823, %v2828
    %v2831 = vadd.f32 %v2829, %v2830
    %v2832 = vtanh.pop %v2831
    %v2833 = vmul.f32 %v2827, %v2832
    %v2834 = vpack.c.bf16 %v2608, %v2608
    %2835 = vmatprep.subr.bf16.mxu0 %v1175
    %2836 = vmatpush1.bf16.msra.mxu0 %v1174
    %2837 = vmatprep.subr.bf16.mxu0 %v1171
    %2838 = vmatpush1.bf16.msra.mxu0 %v1170
    %2839 = vmatprep.subr.bf16.mxu0 %v1167
    %2840 = vmatpush1.bf16.msra.mxu0 %v1166
    %2841 = vmatprep.subr.bf16.mxu0 %v1163
    %2842 = vmatpush1.bf16.msra.mxu0 %v1162
    %2843 = vmatprep.subr.bf16.mxu0 %v1159
    %2844 = vmatpush1.bf16.msra.mxu0 %v1158
    %2845 = vmatprep.subr.bf16.mxu0 %v1155
    %2846 = vmatpush1.bf16.msra.mxu0 %v1154
    %2847 = vmatprep.subr.bf16.mxu0 %v1151
    %2848 = vmatpush1.bf16.msra.mxu0 %v1150
    %2849 = vmatprep.subr.bf16.mxu0 %v1147
    %2850 = vmatpush1.bf16.msra.mxu0 %v1146
    %2851 = vmatprep.subr.bf16.mxu0 %v1207
    %2852 = vmatpush2.bf16.msra.mxu0 %v1206
    %2853 = vmatprep.subr.bf16.mxu0 %v1203
    %2854 = vmatpush2.bf16.msra.mxu0 %v1202
    %2855 = vmatprep.subr.bf16.mxu0 %v1199
    %2856 = vmatpush2.bf16.msra.mxu0 %v1198
    %2857 = vmatprep.subr.bf16.mxu0 %v1195
    %2858 = vmatpush2.bf16.msra.mxu0 %v1194
    %2859 = vmatprep.subr.bf16.mxu0 %v1191
    %2860 = vmatpush2.bf16.msra.mxu0 %v1190
    %2861 = vmatprep.subr.bf16.mxu0 %v1187
    %2862 = vmatpush2.bf16.msra.mxu0 %v1186
    %2863 = vmatprep.subr.bf16.mxu0 %v1183
    %2864 = vmatpush2.bf16.msra.mxu0 %v1182
    %2865 = vmatprep.subr.bf16.mxu0 %v1179
    %2866 = vmatpush2.bf16.msra.mxu0 %v1178
    %2867 = vmatprep.mubr.bf16.mxu0 %v2834
    %2868 = vmatmul.mubr.bf16.gmra.mxu0 %v2723
    %v2869 = vpop.f32.mrf.mxu0
    %v2870 = vadd.f32 %v937, %v2869
    %v2871 = vpop.f32.mrf.mxu0
    %v2872 = vadd.f32 %v941, %v2871
    %v2873 = vpop.f32.mrf.mxu0
    %v2874 = vpop.f32.mrf.mxu0
    %2875 = vdwg.mxu0
    %2876 = vmatprep.subr.bf16.mxu0 %v1177
    %2877 = vmatpush1.bf16.msra.mxu0 %v1176
    %2878 = vmatprep.subr.bf16.mxu0 %v1173
    %2879 = vmatpush1.bf16.msra.mxu0 %v1172
    %2880 = vmatprep.subr.bf16.mxu0 %v1169
    %2881 = vmatpush1.bf16.msra.mxu0 %v1168
    %2882 = vmatprep.subr.bf16.mxu0 %v1165
    %2883 = vmatpush1.bf16.msra.mxu0 %v1164
    %2884 = vmatprep.subr.bf16.mxu0 %v1161
    %2885 = vmatpush1.bf16.msra.mxu0 %v1160
    %2886 = vmatprep.subr.bf16.mxu0 %v1157
    %2887 = vmatpush1.bf16.msra.mxu0 %v1156
    %2888 = vmatprep.subr.bf16.mxu0 %v1153
    %2889 = vmatpush1.bf16.msra.mxu0 %v1152
    %2890 = vmatprep.subr.bf16.mxu0 %v1149
    %2891 = vmatpush1.bf16.msra.mxu0 %v1148
    %2892 = vmatprep.subr.bf16.mxu0 %v1209
    %2893 = vmatpush2.bf16.msra.mxu0 %v1208
    %2894 = vmatprep.subr.bf16.mxu0 %v1205
    %2895 = vmatpush2.bf16.msra.mxu0 %v1204
    %2896 = vmatprep.subr.bf16.mxu0 %v1201
    %2897 = vmatpush2.bf16.msra.mxu0 %v1200
    %2898 = vmatprep.subr.bf16.mxu0 %v1197
    %2899 = vmatpush2.bf16.msra.mxu0 %v1196
    %2900 = vmatprep.subr.bf16.mxu0 %v1193
    %2901 = vmatpush2.bf16.msra.mxu0 %v1192
    %2902 = vmatprep.subr.bf16.mxu0 %v1189
    %2903 = vmatpush2.bf16.msra.mxu0 %v1188
    %2904 = vmatprep.subr.bf16.mxu0 %v1185
    %2905 = vmatpush2.bf16.msra.mxu0 %v1184
    %2906 = vmatprep.subr.bf16.mxu0 %v1181
    %2907 = vmatpush2.bf16.msra.mxu0 %v1180
    %2908 = vmatprep.mubr.bf16.mxu0 %v2834
    %2909 = vmatmul.mubr.bf16.gmra.mxu0 %v2723
    %v2910 = vpop.f32.mrf.mxu0
    %v2911 = vadd.f32 %v945, %v2910
    %v2912 = vpop.f32.mrf.mxu0
    %v2913 = vadd.f32 %v949, %v2912
    %v2914 = vpop.f32.mrf.mxu0
    %v2915 = vpop.f32.mrf.mxu0
    %2916 = vdwg.mxu0
    %v2917 = vxor.u32 %v2870, 2147483648
    %v2918 = vxor.u32 %v2872, 2147483648
    %v2919 = vxor.u32 %v2911, 2147483648
    %v2920 = vmul.f32 %v2917, 1.442695
    %v2921 = vpow.pop %v2920
    %v2922 = vmul.f32 %v2918, 1.442695
    %v2923 = vpow.pop %v2922
    %v2924 = vmul.f32 %v2919, 1.442695
    %v2925 = vpow.pop %v2924
    %v2926 = vadd.f32 %v2921, 1.0
    %v2927 = vadd.f32 %v2923, 1.0
    %v2928 = vadd.f32 %v2925, 1.0
    %v2929 = vrcp.pop %v2926
    %v2930 = vmul.f32 1.0, %v2929
    %v2931 = vrcp.pop %v2927
    %v2932 = vmul.f32 1.0, %v2931
    %v2933 = vrcp.pop %v2928
    %v2934 = vmul.f32 1.0, %v2933
    %v2935 = vtanh.pop %v2913
    %v2936 = vmul.f32 %v2932, %v2606
    %v2937 = vmul.f32 %v2930, %v2935
    %v2938 = vadd.f32 %v2936, %v2937
    %v2939 = vtanh.pop %v2938
    %v2940 = vmul.f32 %v2934, %v2939
    %v2941 = vpack.c.bf16 %v2715, %v2715
    %2942 = vmatprep.subr.bf16.mxu0 %v1847
    %2943 = vmatpush1.bf16.msra.mxu0 %v1846
    %2944 = vmatprep.subr.bf16.mxu0 %v1843
    %2945 = vmatpush1.bf16.msra.mxu0 %v1842
    %2946 = vmatprep.subr.bf16.mxu0 %v1839
    %2947 = vmatpush1.bf16.msra.mxu0 %v1838
    %2948 = vmatprep.subr.bf16.mxu0 %v1835
    %2949 = vmatpush1.bf16.msra.mxu0 %v1834
    %2950 = vmatprep.subr.bf16.mxu0 %v1831
    %2951 = vmatpush1.bf16.msra.mxu0 %v1830
    %2952 = vmatprep.subr.bf16.mxu0 %v1827
    %2953 = vmatpush1.bf16.msra.mxu0 %v1826
    %2954 = vmatprep.subr.bf16.mxu0 %v1823
    %2955 = vmatpush1.bf16.msra.mxu0 %v1822
    %2956 = vmatprep.subr.bf16.mxu0 %v1819
    %2957 = vmatpush1.bf16.msra.mxu0 %v1818
    %2958 = vmatprep.subr.bf16.mxu0 %v1879
    %2959 = vmatpush2.bf16.msra.mxu0 %v1878
    %2960 = vmatprep.subr.bf16.mxu0 %v1875
    %2961 = vmatpush2.bf16.msra.mxu0 %v1874
    %2962 = vmatprep.subr.bf16.mxu0 %v1871
    %2963 = vmatpush2.bf16.msra.mxu0 %v1870
    %2964 = vmatprep.subr.bf16.mxu0 %v1867
    %2965 = vmatpush2.bf16.msra.mxu0 %v1866
    %2966 = vmatprep.subr.bf16.mxu0 %v1863
    %2967 = vmatpush2.bf16.msra.mxu0 %v1862
    %2968 = vmatprep.subr.bf16.mxu0 %v1859
    %2969 = vmatpush2.bf16.msra.mxu0 %v1858
    %2970 = vmatprep.subr.bf16.mxu0 %v1855
    %2971 = vmatpush2.bf16.msra.mxu0 %v1854
    %2972 = vmatprep.subr.bf16.mxu0 %v1851
    %2973 = vmatpush2.bf16.msra.mxu0 %v1850
    %2974 = vmatprep.mubr.bf16.mxu0 %v2941
    %2975 = vmatmul.mubr.bf16.gmra.mxu0 %v2834
    %v2976 = vpop.f32.mrf.mxu0
    %v2977 = vadd.f32 %v1609, %v2976
    %v2978 = vpop.f32.mrf.mxu0
    %v2979 = vadd.f32 %v1613, %v2978
    %v2980 = vpop.f32.mrf.mxu0
    %v2981 = vpop.f32.mrf.mxu0
    %2982 = vdwg.mxu0
    %2983 = vmatprep.subr.bf16.mxu0 %v1849
    %2984 = vmatpush1.bf16.msra.mxu0 %v1848
    %2985 = vmatprep.subr.bf16.mxu0 %v1845
    %2986 = vmatpush1.bf16.msra.mxu0 %v1844
    %2987 = vmatprep.subr.bf16.mxu0 %v1841
    %2988 = vmatpush1.bf16.msra.mxu0 %v1840
    %2989 = vmatprep.subr.bf16.mxu0 %v1837
    %2990 = vmatpush1.bf16.msra.mxu0 %v1836
    %2991 = vmatprep.subr.bf16.mxu0 %v1833
    %2992 = vmatpush1.bf16.msra.mxu0 %v1832
    %2993 = vmatprep.subr.bf16.mxu0 %v1829
    %2994 = vmatpush1.bf16.msra.mxu0 %v1828
    %2995 = vmatprep.subr.bf16.mxu0 %v1825
    %2996 = vmatpush1.bf16.msra.mxu0 %v1824
    %2997 = vmatprep.subr.bf16.mxu0 %v1821
    %2998 = vmatpush1.bf16.msra.mxu0 %v1820
    %2999 = vmatprep.subr.bf16.mxu0 %v1881
    %3000 = vmatpush2.bf16.msra.mxu0 %v1880
    %3001 = vmatprep.subr.bf16.mxu0 %v1877
    %3002 = vmatpush2.bf16.msra.mxu0 %v1876
    %3003 = vmatprep.subr.bf16.mxu0 %v1873
    %3004 = vmatpush2.bf16.msra.mxu0 %v1872
    %3005 = vmatprep.subr.bf16.mxu0 %v1869
    %3006 = vmatpush2.bf16.msra.mxu0 %v1868
    %3007 = vmatprep.subr.bf16.mxu0 %v1865
    %3008 = vmatpush2.bf16.msra.mxu0 %v1864
    %3009 = vmatprep.subr.bf16.mxu0 %v1861
    %3010 = vmatpush2.bf16.msra.mxu0 %v1860
    %3011 = vmatprep.subr.bf16.mxu0 %v1857
    %3012 = vmatpush2.bf16.msra.mxu0 %v1856
    %3013 = vmatprep.subr.bf16.mxu0 %v1853
    %3014 = vmatpush2.bf16.msra.mxu0 %v1852
    %3015 = vmatprep.mubr.bf16.mxu0 %v2941
    %3016 = vmatmul.mubr.bf16.gmra.mxu0 %v2834
    %v3017 = vpop.f32.mrf.mxu0
    %v3018 = vadd.f32 %v1617, %v3017
    %v3019 = vpop.f32.mrf.mxu0
    %v3020 = vadd.f32 %v1621, %v3019
    %v3021 = vpop.f32.mrf.mxu0
    %v3022 = vpop.f32.mrf.mxu0
    %3023 = vdwg.mxu0
    %v3024 = vxor.u32 %v2977, 2147483648
    %v3025 = vxor.u32 %v2979, 2147483648
    %v3026 = vxor.u32 %v3018, 2147483648
    %v3027 = vmul.f32 %v3024, 1.442695
    %v3028 = vpow.pop %v3027
    %v3029 = vmul.f32 %v3025, 1.442695
    %v3030 = vpow.pop %v3029
    %v3031 = vmul.f32 %v3026, 1.442695
    %v3032 = vpow.pop %v3031
    %v3033 = vadd.f32 %v3028, 1.0
    %v3034 = vadd.f32 %v3030, 1.0
    %v3035 = vadd.f32 %v3032, 1.0
    %v3036 = vrcp.pop %v3033
    %v3037 = vmul.f32 1.0, %v3036
    %v3038 = vrcp.pop %v3034
    %v3039 = vmul.f32 1.0, %v3038
    %v3040 = vrcp.pop %v3035
    %v3041 = vmul.f32 1.0, %v3040
    %v3042 = vtanh.pop %v3020
    %v3043 = vmul.f32 %v3039, %v2713
    %v3044 = vmul.f32 %v3037, %v3042
    %v3045 = vadd.f32 %v3043, %v3044
    %v3046 = vtanh.pop %v3045
    %v3047 = vmul.f32 %v3041, %v3046
    %s3048 = smul.u32 6, 4
    %s3049 = smul.addr %s3048, 8
    %s3050 = scalar_lea.vmem [#allocation2], %s3049
    %v3051 = vld [vmem:[%s3050] sm:$0xff]
    %v3052 = vld [vmem:[%s3050 + $0x8] sm:$0xff]
    %v3053 = vld [vmem:[%s3050 + $0x10] sm:$0xff]
    %v3054 = vld [vmem:[%s3050 + $0x18] sm:$0xff]
    %v3055 = vpack.c.bf16 %v2833, %v2833
    %3056 = vmatprep.subr.bf16.mxu0 %v669
    %3057 = vmatpush1.bf16.msra.mxu0 %v668
    %3058 = vmatprep.subr.bf16.mxu0 %v665
    %3059 = vmatpush1.bf16.msra.mxu0 %v664
    %3060 = vmatprep.subr.bf16.mxu0 %v661
    %3061 = vmatpush1.bf16.msra.mxu0 %v660
    %3062 = vmatprep.subr.bf16.mxu0 %v657
    %3063 = vmatpush1.bf16.msra.mxu0 %v656
    %3064 = vmatprep.subr.bf16.mxu0 %v653
    %3065 = vmatpush1.bf16.msra.mxu0 %v652
    %3066 = vmatprep.subr.bf16.mxu0 %v649
    %3067 = vmatpush1.bf16.msra.mxu0 %v648
    %3068 = vmatprep.subr.bf16.mxu0 %v645
    %3069 = vmatpush1.bf16.msra.mxu0 %v644
    %3070 = vmatprep.subr.bf16.mxu0 %v641
    %3071 = vmatpush1.bf16.msra.mxu0 %v640
    %3072 = vmatprep.subr.bf16.mxu0 0
    %3073 = vmatpush2.bf16.msra.mxu0 0
    %3074 = vmatprep.subr.bf16.mxu0 0
    %3075 = vmatpush2.bf16.msra.mxu0 0
    %3076 = vmatprep.subr.bf16.mxu0 0
    %3077 = vmatpush2.bf16.msra.mxu0 0
    %3078 = vmatprep.subr.bf16.mxu0 0
    %3079 = vmatpush2.bf16.msra.mxu0 0
    %3080 = vmatprep.subr.bf16.mxu0 0
    %3081 = vmatpush2.bf16.msra.mxu0 0
    %3082 = vmatprep.subr.bf16.mxu0 0
    %3083 = vmatpush2.bf16.msra.mxu0 0
    %3084 = vmatprep.subr.bf16.mxu0 0
    %3085 = vmatpush2.bf16.msra.mxu0 0
    %3086 = vmatprep.subr.bf16.mxu0 0
    %3087 = vmatpush2.bf16.msra.mxu0 0
    %3088 = vmatprep.mubr.bf16.mxu0 0
    %3089 = vmatmul.mubr.bf16.gmra.mxu0 %v3055
    %v3090 = vpop.f32.mrf.mxu0
    %v3091 = vadd.f32 0.0, %v3090
    %v3092 = vpop.f32.mrf.mxu0
    %v3093 = vadd.f32 0.0, %v3092
    %v3094 = vpop.f32.mrf.mxu0
    %v3095 = vpop.f32.mrf.mxu0
    %3096 = vdwg.mxu0
    %3097 = vmatprep.subr.bf16.mxu0 %v671
    %3098 = vmatpush1.bf16.msra.mxu0 %v670
    %3099 = vmatprep.subr.bf16.mxu0 %v667
    %3100 = vmatpush1.bf16.msra.mxu0 %v666
    %3101 = vmatprep.subr.bf16.mxu0 %v663
    %3102 = vmatpush1.bf16.msra.mxu0 %v662
    %3103 = vmatprep.subr.bf16.mxu0 %v659
    %3104 = vmatpush1.bf16.msra.mxu0 %v658
    %3105 = vmatprep.subr.bf16.mxu0 %v655
    %3106 = vmatpush1.bf16.msra.mxu0 %v654
    %3107 = vmatprep.subr.bf16.mxu0 %v651
    %3108 = vmatpush1.bf16.msra.mxu0 %v650
    %3109 = vmatprep.subr.bf16.mxu0 %v647
    %3110 = vmatpush1.bf16.msra.mxu0 %v646
    %3111 = vmatprep.subr.bf16.mxu0 %v643
    %3112 = vmatpush1.bf16.msra.mxu0 %v642
    %3113 = vmatprep.subr.bf16.mxu0 0
    %3114 = vmatpush2.bf16.msra.mxu0 0
    %3115 = vmatprep.subr.bf16.mxu0 0
    %3116 = vmatpush2.bf16.msra.mxu0 0
    %3117 = vmatprep.subr.bf16.mxu0 0
    %3118 = vmatpush2.bf16.msra.mxu0 0
    %3119 = vmatprep.subr.bf16.mxu0 0
    %3120 = vmatpush2.bf16.msra.mxu0 0
    %3121 = vmatprep.subr.bf16.mxu0 0
    %3122 = vmatpush2.bf16.msra.mxu0 0
    %3123 = vmatprep.subr.bf16.mxu0 0
    %3124 = vmatpush2.bf16.msra.mxu0 0
    %3125 = vmatprep.subr.bf16.mxu0 0
    %3126 = vmatpush2.bf16.msra.mxu0 0
    %3127 = vmatprep.subr.bf16.mxu0 0
    %3128 = vmatpush2.bf16.msra.mxu0 0
    %3129 = vmatprep.mubr.bf16.mxu0 0
    %3130 = vmatmul.mubr.bf16.gmra.mxu0 %v3055
    %v3131 = vpop.f32.mrf.mxu0
    %v3132 = vadd.f32 0.0, %v3131
    %v3133 = vpop.f32.mrf.mxu0
    %v3134 = vadd.f32 0.0, %v3133
    %v3135 = vpop.f32.mrf.mxu0
    %v3136 = vpop.f32.mrf.mxu0
    %3137 = vdwg.mxu0
    %v3138 = vadd.f32 %v3051, %v3091
    %v3139 = vadd.f32 %v3052, %v3093
    %v3140 = vadd.f32 %v3053, %v3132
    %v3141 = vadd.f32 %v3054, %v3134
    %v3142 = vxor.u32 %v3138, 2147483648
    %v3143 = vxor.u32 %v3139, 2147483648
    %v3144 = vxor.u32 %v3140, 2147483648
    %v3145 = vmul.f32 %v3142, 1.442695
    %v3146 = vpow.pop %v3145
    %v3147 = vmul.f32 %v3143, 1.442695
    %v3148 = vpow.pop %v3147
    %v3149 = vmul.f32 %v3144, 1.442695
    %v3150 = vpow.pop %v3149
    %v3151 = vadd.f32 %v3146, 1.0
    %v3152 = vadd.f32 %v3148, 1.0
    %v3153 = vadd.f32 %v3150, 1.0
    %v3154 = vrcp.pop %v3151
    %v3155 = vmul.f32 1.0, %v3154
    %v3156 = vrcp.pop %v3152
    %v3157 = vmul.f32 1.0, %v3156
    %v3158 = vrcp.pop %v3153
    %v3159 = vmul.f32 1.0, %v3158
    %v3160 = vtanh.pop %v3141
    %v3161 = vmul.f32 %v3157, %v2831
    %v3162 = vmul.f32 %v3155, %v3160
    %v3163 = vadd.f32 %v3161, %v3162
    %v3164 = vtanh.pop %v3163
    %v3165 = vmul.f32 %v3159, %v3164
    %v3166 = vpack.c.bf16 %v2940, %v2940
    %3167 = vmatprep.subr.bf16.mxu0 %v1175
    %3168 = vmatpush1.bf16.msra.mxu0 %v1174
    %3169 = vmatprep.subr.bf16.mxu0 %v1171
    %3170 = vmatpush1.bf16.msra.mxu0 %v1170
    %3171 = vmatprep.subr.bf16.mxu0 %v1167
    %3172 = vmatpush1.bf16.msra.mxu0 %v1166
    %3173 = vmatprep.subr.bf16.mxu0 %v1163
    %3174 = vmatpush1.bf16.msra.mxu0 %v1162
    %3175 = vmatprep.subr.bf16.mxu0 %v1159
    %3176 = vmatpush1.bf16.msra.mxu0 %v1158
    %3177 = vmatprep.subr.bf16.mxu0 %v1155
    %3178 = vmatpush1.bf16.msra.mxu0 %v1154
    %3179 = vmatprep.subr.bf16.mxu0 %v1151
    %3180 = vmatpush1.bf16.msra.mxu0 %v1150
    %3181 = vmatprep.subr.bf16.mxu0 %v1147
    %3182 = vmatpush1.bf16.msra.mxu0 %v1146
    %3183 = vmatprep.subr.bf16.mxu0 %v1207
    %3184 = vmatpush2.bf16.msra.mxu0 %v1206
    %3185 = vmatprep.subr.bf16.mxu0 %v1203
    %3186 = vmatpush2.bf16.msra.mxu0 %v1202
    %3187 = vmatprep.subr.bf16.mxu0 %v1199
    %3188 = vmatpush2.bf16.msra.mxu0 %v1198
    %3189 = vmatprep.subr.bf16.mxu0 %v1195
    %3190 = vmatpush2.bf16.msra.mxu0 %v1194
    %3191 = vmatprep.subr.bf16.mxu0 %v1191
    %3192 = vmatpush2.bf16.msra.mxu0 %v1190
    %3193 = vmatprep.subr.bf16.mxu0 %v1187
    %3194 = vmatpush2.bf16.msra.mxu0 %v1186
    %3195 = vmatprep.subr.bf16.mxu0 %v1183
    %3196 = vmatpush2.bf16.msra.mxu0 %v1182
    %3197 = vmatprep.subr.bf16.mxu0 %v1179
    %3198 = vmatpush2.bf16.msra.mxu0 %v1178
    %3199 = vmatprep.mubr.bf16.mxu0 %v3166
    %3200 = vmatmul.mubr.bf16.gmra.mxu0 %v3055
    %v3201 = vpop.f32.mrf.mxu0
    %v3202 = vadd.f32 %v937, %v3201
    %v3203 = vpop.f32.mrf.mxu0
    %v3204 = vadd.f32 %v941, %v3203
    %v3205 = vpop.f32.mrf.mxu0
    %v3206 = vpop.f32.mrf.mxu0
    %3207 = vdwg.mxu0
    %3208 = vmatprep.subr.bf16.mxu0 %v1177
    %3209 = vmatpush1.bf16.msra.mxu0 %v1176
    %3210 = vmatprep.subr.bf16.mxu0 %v1173
    %3211 = vmatpush1.bf16.msra.mxu0 %v1172
    %3212 = vmatprep.subr.bf16.mxu0 %v1169
    %3213 = vmatpush1.bf16.msra.mxu0 %v1168
    %3214 = vmatprep.subr.bf16.mxu0 %v1165
    %3215 = vmatpush1.bf16.msra.mxu0 %v1164
    %3216 = vmatprep.subr.bf16.mxu0 %v1161
    %3217 = vmatpush1.bf16.msra.mxu0 %v1160
    %3218 = vmatprep.subr.bf16.mxu0 %v1157
    %3219 = vmatpush1.bf16.msra.mxu0 %v1156
    %3220 = vmatprep.subr.bf16.mxu0 %v1153
    %3221 = vmatpush1.bf16.msra.mxu0 %v1152
    %3222 = vmatprep.subr.bf16.mxu0 %v1149
    %3223 = vmatpush1.bf16.msra.mxu0 %v1148
    %3224 = vmatprep.subr.bf16.mxu0 %v1209
    %3225 = vmatpush2.bf16.msra.mxu0 %v1208
    %3226 = vmatprep.subr.bf16.mxu0 %v1205
    %3227 = vmatpush2.bf16.msra.mxu0 %v1204
    %3228 = vmatprep.subr.bf16.mxu0 %v1201
    %3229 = vmatpush2.bf16.msra.mxu0 %v1200
    %3230 = vmatprep.subr.bf16.mxu0 %v1197
    %3231 = vmatpush2.bf16.msra.mxu0 %v1196
    %3232 = vmatprep.subr.bf16.mxu0 %v1193
    %3233 = vmatpush2.bf16.msra.mxu0 %v1192
    %3234 = vmatprep.subr.bf16.mxu0 %v1189
    %3235 = vmatpush2.bf16.msra.mxu0 %v1188
    %3236 = vmatprep.subr.bf16.mxu0 %v1185
    %3237 = vmatpush2.bf16.msra.mxu0 %v1184
    %3238 = vmatprep.subr.bf16.mxu0 %v1181
    %3239 = vmatpush2.bf16.msra.mxu0 %v1180
    %3240 = vmatprep.mubr.bf16.mxu0 %v3166
    %3241 = vmatmul.mubr.bf16.gmra.mxu0 %v3055
    %v3242 = vpop.f32.mrf.mxu0
    %v3243 = vadd.f32 %v945, %v3242
    %v3244 = vpop.f32.mrf.mxu0
    %v3245 = vadd.f32 %v949, %v3244
    %v3246 = vpop.f32.mrf.mxu0
    %v3247 = vpop.f32.mrf.mxu0
    %3248 = vdwg.mxu0
    %v3249 = vxor.u32 %v3202, 2147483648
    %v3250 = vxor.u32 %v3204, 2147483648
    %v3251 = vxor.u32 %v3243, 2147483648
    %v3252 = vmul.f32 %v3249, 1.442695
    %v3253 = vpow.pop %v3252
    %v3254 = vmul.f32 %v3250, 1.442695
    %v3255 = vpow.pop %v3254
    %v3256 = vmul.f32 %v3251, 1.442695
    %v3257 = vpow.pop %v3256
    %v3258 = vadd.f32 %v3253, 1.0
    %v3259 = vadd.f32 %v3255, 1.0
    %v3260 = vadd.f32 %v3257, 1.0
    %v3261 = vrcp.pop %v3258
    %v3262 = vmul.f32 1.0, %v3261
    %v3263 = vrcp.pop %v3259
    %v3264 = vmul.f32 1.0, %v3263
    %v3265 = vrcp.pop %v3260
    %v3266 = vmul.f32 1.0, %v3265
    %v3267 = vtanh.pop %v3245
    %v3268 = vmul.f32 %v3264, %v2938
    %v3269 = vmul.f32 %v3262, %v3267
    %v3270 = vadd.f32 %v3268, %v3269
    %v3271 = vtanh.pop %v3270
    %v3272 = vmul.f32 %v3266, %v3271
    %v3273 = vpack.c.bf16 %v3047, %v3047
    %3274 = vmatprep.subr.bf16.mxu0 %v1847
    %3275 = vmatpush1.bf16.msra.mxu0 %v1846
    %3276 = vmatprep.subr.bf16.mxu0 %v1843
    %3277 = vmatpush1.bf16.msra.mxu0 %v1842
    %3278 = vmatprep.subr.bf16.mxu0 %v1839
    %3279 = vmatpush1.bf16.msra.mxu0 %v1838
    %3280 = vmatprep.subr.bf16.mxu0 %v1835
    %3281 = vmatpush1.bf16.msra.mxu0 %v1834
    %3282 = vmatprep.subr.bf16.mxu0 %v1831
    %3283 = vmatpush1.bf16.msra.mxu0 %v1830
    %3284 = vmatprep.subr.bf16.mxu0 %v1827
    %3285 = vmatpush1.bf16.msra.mxu0 %v1826
    %3286 = vmatprep.subr.bf16.mxu0 %v1823
    %3287 = vmatpush1.bf16.msra.mxu0 %v1822
    %3288 = vmatprep.subr.bf16.mxu0 %v1819
    %3289 = vmatpush1.bf16.msra.mxu0 %v1818
    %3290 = vmatprep.subr.bf16.mxu0 %v1879
    %3291 = vmatpush2.bf16.msra.mxu0 %v1878
    %3292 = vmatprep.subr.bf16.mxu0 %v1875
    %3293 = vmatpush2.bf16.msra.mxu0 %v1874
    %3294 = vmatprep.subr.bf16.mxu0 %v1871
    %3295 = vmatpush2.bf16.msra.mxu0 %v1870
    %3296 = vmatprep.subr.bf16.mxu0 %v1867
    %3297 = vmatpush2.bf16.msra.mxu0 %v1866
    %3298 = vmatprep.subr.bf16.mxu0 %v1863
    %3299 = vmatpush2.bf16.msra.mxu0 %v1862
    %3300 = vmatprep.subr.bf16.mxu0 %v1859
    %3301 = vmatpush2.bf16.msra.mxu0 %v1858
    %3302 = vmatprep.subr.bf16.mxu0 %v1855
    %3303 = vmatpush2.bf16.msra.mxu0 %v1854
    %3304 = vmatprep.subr.bf16.mxu0 %v1851
    %3305 = vmatpush2.bf16.msra.mxu0 %v1850
    %3306 = vmatprep.mubr.bf16.mxu0 %v3273
    %3307 = vmatmul.mubr.bf16.gmra.mxu0 %v3166
    %v3308 = vpop.f32.mrf.mxu0
    %v3309 = vadd.f32 %v1609, %v3308
    %v3310 = vpop.f32.mrf.mxu0
    %v3311 = vadd.f32 %v1613, %v3310
    %v3312 = vpop.f32.mrf.mxu0
    %v3313 = vpop.f32.mrf.mxu0
    %3314 = vdwg.mxu0
    %3315 = vmatprep.subr.bf16.mxu0 %v1849
    %3316 = vmatpush1.bf16.msra.mxu0 %v1848
    %3317 = vmatprep.subr.bf16.mxu0 %v1845
    %3318 = vmatpush1.bf16.msra.mxu0 %v1844
    %3319 = vmatprep.subr.bf16.mxu0 %v1841
    %3320 = vmatpush1.bf16.msra.mxu0 %v1840
    %3321 = vmatprep.subr.bf16.mxu0 %v1837
    %3322 = vmatpush1.bf16.msra.mxu0 %v1836
    %3323 = vmatprep.subr.bf16.mxu0 %v1833
    %3324 = vmatpush1.bf16.msra.mxu0 %v1832
    %3325 = vmatprep.subr.bf16.mxu0 %v1829
    %3326 = vmatpush1.bf16.msra.mxu0 %v1828
    %3327 = vmatprep.subr.bf16.mxu0 %v1825
    %3328 = vmatpush1.bf16.msra.mxu0 %v1824
    %3329 = vmatprep.subr.bf16.mxu0 %v1821
    %3330 = vmatpush1.bf16.msra.mxu0 %v1820
    %3331 = vmatprep.subr.bf16.mxu0 %v1881
    %3332 = vmatpush2.bf16.msra.mxu0 %v1880
    %3333 = vmatprep.subr.bf16.mxu0 %v1877
    %3334 = vmatpush2.bf16.msra.mxu0 %v1876
    %3335 = vmatprep.subr.bf16.mxu0 %v1873
    %3336 = vmatpush2.bf16.msra.mxu0 %v1872
    %3337 = vmatprep.subr.bf16.mxu0 %v1869
    %3338 = vmatpush2.bf16.msra.mxu0 %v1868
    %3339 = vmatprep.subr.bf16.mxu0 %v1865
    %3340 = vmatpush2.bf16.msra.mxu0 %v1864
    %3341 = vmatprep.subr.bf16.mxu0 %v1861
    %3342 = vmatpush2.bf16.msra.mxu0 %v1860
    %3343 = vmatprep.subr.bf16.mxu0 %v1857
    %3344 = vmatpush2.bf16.msra.mxu0 %v1856
    %3345 = vmatprep.subr.bf16.mxu0 %v1853
    %3346 = vmatpush2.bf16.msra.mxu0 %v1852
    %3347 = vmatprep.mubr.bf16.mxu0 %v3273
    %3348 = vmatmul.mubr.bf16.gmra.mxu0 %v3166
    %v3349 = vpop.f32.mrf.mxu0
    %v3350 = vadd.f32 %v1617, %v3349
    %v3351 = vpop.f32.mrf.mxu0
    %v3352 = vadd.f32 %v1621, %v3351
    %v3353 = vpop.f32.mrf.mxu0
    %v3354 = vpop.f32.mrf.mxu0
    %3355 = vdwg.mxu0
    %v3356 = vxor.u32 %v3309, 2147483648
    %v3357 = vxor.u32 %v3311, 2147483648
    %v3358 = vxor.u32 %v3350, 2147483648
    %v3359 = vmul.f32 %v3356, 1.442695
    %v3360 = vpow.pop %v3359
    %v3361 = vmul.f32 %v3357, 1.442695
    %v3362 = vpow.pop %v3361
    %v3363 = vmul.f32 %v3358, 1.442695
    %v3364 = vpow.pop %v3363
    %v3365 = vadd.f32 %v3360, 1.0
    %v3366 = vadd.f32 %v3362, 1.0
    %v3367 = vadd.f32 %v3364, 1.0
    %v3368 = vrcp.pop %v3365
    %v3369 = vmul.f32 1.0, %v3368
    %v3370 = vrcp.pop %v3366
    %v3371 = vmul.f32 1.0, %v3370
    %v3372 = vrcp.pop %v3367
    %v3373 = vmul.f32 1.0, %v3372
    %v3374 = vtanh.pop %v3352
    %v3375 = vmul.f32 %v3371, %v3045
    %v3376 = vmul.f32 %v3369, %v3374
    %v3377 = vadd.f32 %v3375, %v3376
    %v3378 = vtanh.pop %v3377
    %v3379 = vmul.f32 %v3373, %v3378
    %s3380 = smul.u32 7, 4
    %s3381 = smul.addr %s3380, 8
    %s3382 = scalar_lea.vmem [#allocation2], %s3381
    %v3383 = vld [vmem:[%s3382] sm:$0xff]
    %v3384 = vld [vmem:[%s3382 + $0x8] sm:$0xff]
    %v3385 = vld [vmem:[%s3382 + $0x10] sm:$0xff]
    %v3386 = vld [vmem:[%s3382 + $0x18] sm:$0xff]
    %v3387 = vpack.c.bf16 %v3165, %v3165
    %3388 = vmatprep.subr.bf16.mxu0 %v669
    %3389 = vmatpush1.bf16.msra.mxu0 %v668
    %3390 = vmatprep.subr.bf16.mxu0 %v665
    %3391 = vmatpush1.bf16.msra.mxu0 %v664
    %3392 = vmatprep.subr.bf16.mxu0 %v661
    %3393 = vmatpush1.bf16.msra.mxu0 %v660
    %3394 = vmatprep.subr.bf16.mxu0 %v657
    %3395 = vmatpush1.bf16.msra.mxu0 %v656
    %3396 = vmatprep.subr.bf16.mxu0 %v653
    %3397 = vmatpush1.bf16.msra.mxu0 %v652
    %3398 = vmatprep.subr.bf16.mxu0 %v649
    %3399 = vmatpush1.bf16.msra.mxu0 %v648
    %3400 = vmatprep.subr.bf16.mxu0 %v645
    %3401 = vmatpush1.bf16.msra.mxu0 %v644
    %3402 = vmatprep.subr.bf16.mxu0 %v641
    %3403 = vmatpush1.bf16.msra.mxu0 %v640
    %3404 = vmatprep.subr.bf16.mxu0 0
    %3405 = vmatpush2.bf16.msra.mxu0 0
    %3406 = vmatprep.subr.bf16.mxu0 0
    %3407 = vmatpush2.bf16.msra.mxu0 0
    %3408 = vmatprep.subr.bf16.mxu0 0
    %3409 = vmatpush2.bf16.msra.mxu0 0
    %3410 = vmatprep.subr.bf16.mxu0 0
    %3411 = vmatpush2.bf16.msra.mxu0 0
    %3412 = vmatprep.subr.bf16.mxu0 0
    %3413 = vmatpush2.bf16.msra.mxu0 0
    %3414 = vmatprep.subr.bf16.mxu0 0
    %3415 = vmatpush2.bf16.msra.mxu0 0
    %3416 = vmatprep.subr.bf16.mxu0 0
    %3417 = vmatpush2.bf16.msra.mxu0 0
    %3418 = vmatprep.subr.bf16.mxu0 0
    %3419 = vmatpush2.bf16.msra.mxu0 0
    %3420 = vmatprep.mubr.bf16.mxu0 0
    %3421 = vmatmul.mubr.bf16.gmra.mxu0 %v3387
    %v3422 = vpop.f32.mrf.mxu0
    %v3423 = vadd.f32 0.0, %v3422
    %v3424 = vpop.f32.mrf.mxu0
    %v3425 = vadd.f32 0.0, %v3424
    %v3426 = vpop.f32.mrf.mxu0
    %v3427 = vpop.f32.mrf.mxu0
    %3428 = vdwg.mxu0
    %3429 = vmatprep.subr.bf16.mxu0 %v671
    %3430 = vmatpush1.bf16.msra.mxu0 %v670
    %3431 = vmatprep.subr.bf16.mxu0 %v667
    %3432 = vmatpush1.bf16.msra.mxu0 %v666
    %3433 = vmatprep.subr.bf16.mxu0 %v663
    %3434 = vmatpush1.bf16.msra.mxu0 %v662
    %3435 = vmatprep.subr.bf16.mxu0 %v659
    %3436 = vmatpush1.bf16.msra.mxu0 %v658
    %3437 = vmatprep.subr.bf16.mxu0 %v655
    %3438 = vmatpush1.bf16.msra.mxu0 %v654
    %3439 = vmatprep.subr.bf16.mxu0 %v651
    %3440 = vmatpush1.bf16.msra.mxu0 %v650
    %3441 = vmatprep.subr.bf16.mxu0 %v647
    %3442 = vmatpush1.bf16.msra.mxu0 %v646
    %3443 = vmatprep.subr.bf16.mxu0 %v643
    %3444 = vmatpush1.bf16.msra.mxu0 %v642
    %3445 = vmatprep.subr.bf16.mxu0 0
    %3446 = vmatpush2.bf16.msra.mxu0 0
    %3447 = vmatprep.subr.bf16.mxu0 0
    %3448 = vmatpush2.bf16.msra.mxu0 0
    %3449 = vmatprep.subr.bf16.mxu0 0
    %3450 = vmatpush2.bf16.msra.mxu0 0
    %3451 = vmatprep.subr.bf16.mxu0 0
    %3452 = vmatpush2.bf16.msra.mxu0 0
    %3453 = vmatprep.subr.bf16.mxu0 0
    %3454 = vmatpush2.bf16.msra.mxu0 0
    %3455 = vmatprep.subr.bf16.mxu0 0
    %3456 = vmatpush2.bf16.msra.mxu0 0
    %3457 = vmatprep.subr.bf16.mxu0 0
    %3458 = vmatpush2.bf16.msra.mxu0 0
    %3459 = vmatprep.subr.bf16.mxu0 0
    %3460 = vmatpush2.bf16.msra.mxu0 0
    %3461 = vmatprep.mubr.bf16.mxu0 0
    %3462 = vmatmul.mubr.bf16.gmra.mxu0 %v3387
    %v3463 = vpop.f32.mrf.mxu0
    %v3464 = vadd.f32 0.0, %v3463
    %v3465 = vpop.f32.mrf.mxu0
    %v3466 = vadd.f32 0.0, %v3465
    %v3467 = vpop.f32.mrf.mxu0
    %v3468 = vpop.f32.mrf.mxu0
    %3469 = vdwg.mxu0
    %v3470 = vadd.f32 %v3383, %v3423
    %v3471 = vadd.f32 %v3384, %v3425
    %v3472 = vadd.f32 %v3385, %v3464
    %v3473 = vadd.f32 %v3386, %v3466
    %v3474 = vxor.u32 %v3470, 2147483648
    %v3475 = vxor.u32 %v3471, 2147483648
    %v3476 = vxor.u32 %v3472, 2147483648
    %v3477 = vmul.f32 %v3474, 1.442695
    %v3478 = vpow.pop %v3477
    %v3479 = vmul.f32 %v3475, 1.442695
    %v3480 = vpow.pop %v3479
    %v3481 = vmul.f32 %v3476, 1.442695
    %v3482 = vpow.pop %v3481
    %v3483 = vadd.f32 %v3478, 1.0
    %v3484 = vadd.f32 %v3480, 1.0
    %v3485 = vadd.f32 %v3482, 1.0
    %v3486 = vrcp.pop %v3483
    %v3487 = vmul.f32 1.0, %v3486
    %v3488 = vrcp.pop %v3484
    %v3489 = vmul.f32 1.0, %v3488
    %v3490 = vrcp.pop %v3485
    %v3491 = vmul.f32 1.0, %v3490
    %v3492 = vtanh.pop %v3473
    %v3493 = vmul.f32 %v3489, %v3163
    %v3494 = vmul.f32 %v3487, %v3492
    %v3495 = vadd.f32 %v3493, %v3494
    %v3496 = vtanh.pop %v3495
    %v3497 = vmul.f32 %v3491, %v3496
    %v3498 = vpack.c.bf16 %v3272, %v3272
    %3499 = vmatprep.subr.bf16.mxu0 %v1175
    %3500 = vmatpush1.bf16.msra.mxu0 %v1174
    %3501 = vmatprep.subr.bf16.mxu0 %v1171
    %3502 = vmatpush1.bf16.msra.mxu0 %v1170
    %3503 = vmatprep.subr.bf16.mxu0 %v1167
    %3504 = vmatpush1.bf16.msra.mxu0 %v1166
    %3505 = vmatprep.subr.bf16.mxu0 %v1163
    %3506 = vmatpush1.bf16.msra.mxu0 %v1162
    %3507 = vmatprep.subr.bf16.mxu0 %v1159
    %3508 = vmatpush1.bf16.msra.mxu0 %v1158
    %3509 = vmatprep.subr.bf16.mxu0 %v1155
    %3510 = vmatpush1.bf16.msra.mxu0 %v1154
    %3511 = vmatprep.subr.bf16.mxu0 %v1151
    %3512 = vmatpush1.bf16.msra.mxu0 %v1150
    %3513 = vmatprep.subr.bf16.mxu0 %v1147
    %3514 = vmatpush1.bf16.msra.mxu0 %v1146
    %3515 = vmatprep.subr.bf16.mxu0 %v1207
    %3516 = vmatpush2.bf16.msra.mxu0 %v1206
    %3517 = vmatprep.subr.bf16.mxu0 %v1203
    %3518 = vmatpush2.bf16.msra.mxu0 %v1202
    %3519 = vmatprep.subr.bf16.mxu0 %v1199
    %3520 = vmatpush2.bf16.msra.mxu0 %v1198
    %3521 = vmatprep.subr.bf16.mxu0 %v1195
    %3522 = vmatpush2.bf16.msra.mxu0 %v1194
    %3523 = vmatprep.subr.bf16.mxu0 %v1191
    %3524 = vmatpush2.bf16.msra.mxu0 %v1190
    %3525 = vmatprep.subr.bf16.mxu0 %v1187
    %3526 = vmatpush2.bf16.msra.mxu0 %v1186
    %3527 = vmatprep.subr.bf16.mxu0 %v1183
    %3528 = vmatpush2.bf16.msra.mxu0 %v1182
    %3529 = vmatprep.subr.bf16.mxu0 %v1179
    %3530 = vmatpush2.bf16.msra.mxu0 %v1178
    %3531 = vmatprep.mubr.bf16.mxu0 %v3498
    %3532 = vmatmul.mubr.bf16.gmra.mxu0 %v3387
    %v3533 = vpop.f32.mrf.mxu0
    %v3534 = vadd.f32 %v937, %v3533
    %v3535 = vpop.f32.mrf.mxu0
    %v3536 = vadd.f32 %v941, %v3535
    %v3537 = vpop.f32.mrf.mxu0
    %v3538 = vpop.f32.mrf.mxu0
    %3539 = vdwg.mxu0
    %3540 = vmatprep.subr.bf16.mxu0 %v1177
    %3541 = vmatpush1.bf16.msra.mxu0 %v1176
    %3542 = vmatprep.subr.bf16.mxu0 %v1173
    %3543 = vmatpush1.bf16.msra.mxu0 %v1172
    %3544 = vmatprep.subr.bf16.mxu0 %v1169
    %3545 = vmatpush1.bf16.msra.mxu0 %v1168
    %3546 = vmatprep.subr.bf16.mxu0 %v1165
    %3547 = vmatpush1.bf16.msra.mxu0 %v1164
    %3548 = vmatprep.subr.bf16.mxu0 %v1161
    %3549 = vmatpush1.bf16.msra.mxu0 %v1160
    %3550 = vmatprep.subr.bf16.mxu0 %v1157
    %3551 = vmatpush1.bf16.msra.mxu0 %v1156
    %3552 = vmatprep.subr.bf16.mxu0 %v1153
    %3553 = vmatpush1.bf16.msra.mxu0 %v1152
    %3554 = vmatprep.subr.bf16.mxu0 %v1149
    %3555 = vmatpush1.bf16.msra.mxu0 %v1148
    %3556 = vmatprep.subr.bf16.mxu0 %v1209
    %3557 = vmatpush2.bf16.msra.mxu0 %v1208
    %3558 = vmatprep.subr.bf16.mxu0 %v1205
    %3559 = vmatpush2.bf16.msra.mxu0 %v1204
    %3560 = vmatprep.subr.bf16.mxu0 %v1201
    %3561 = vmatpush2.bf16.msra.mxu0 %v1200
    %3562 = vmatprep.subr.bf16.mxu0 %v1197
    %3563 = vmatpush2.bf16.msra.mxu0 %v1196
    %3564 = vmatprep.subr.bf16.mxu0 %v1193
    %3565 = vmatpush2.bf16.msra.mxu0 %v1192
    %3566 = vmatprep.subr.bf16.mxu0 %v1189
    %3567 = vmatpush2.bf16.msra.mxu0 %v1188
    %3568 = vmatprep.subr.bf16.mxu0 %v1185
    %3569 = vmatpush2.bf16.msra.mxu0 %v1184
    %3570 = vmatprep.subr.bf16.mxu0 %v1181
    %3571 = vmatpush2.bf16.msra.mxu0 %v1180
    %3572 = vmatprep.mubr.bf16.mxu0 %v3498
    %3573 = vmatmul.mubr.bf16.gmra.mxu0 %v3387
    %v3574 = vpop.f32.mrf.mxu0
    %v3575 = vadd.f32 %v945, %v3574
    %v3576 = vpop.f32.mrf.mxu0
    %v3577 = vadd.f32 %v949, %v3576
    %v3578 = vpop.f32.mrf.mxu0
    %v3579 = vpop.f32.mrf.mxu0
    %3580 = vdwg.mxu0
    %v3581 = vxor.u32 %v3534, 2147483648
    %v3582 = vxor.u32 %v3536, 2147483648
    %v3583 = vxor.u32 %v3575, 2147483648
    %v3584 = vmul.f32 %v3581, 1.442695
    %v3585 = vpow.pop %v3584
    %v3586 = vmul.f32 %v3582, 1.442695
    %v3587 = vpow.pop %v3586
    %v3588 = vmul.f32 %v3583, 1.442695
    %v3589 = vpow.pop %v3588
    %v3590 = vadd.f32 %v3585, 1.0
    %v3591 = vadd.f32 %v3587, 1.0
    %v3592 = vadd.f32 %v3589, 1.0
    %v3593 = vrcp.pop %v3590
    %v3594 = vmul.f32 1.0, %v3593
    %v3595 = vrcp.pop %v3591
    %v3596 = vmul.f32 1.0, %v3595
    %v3597 = vrcp.pop %v3592
    %v3598 = vmul.f32 1.0, %v3597
    %v3599 = vtanh.pop %v3577
    %v3600 = vmul.f32 %v3596, %v3270
    %v3601 = vmul.f32 %v3594, %v3599
    %v3602 = vadd.f32 %v3600, %v3601
    %v3603 = vtanh.pop %v3602
    %v3604 = vmul.f32 %v3598, %v3603
    %v3605 = vpack.c.bf16 %v3379, %v3379
    %3606 = vmatprep.subr.bf16.mxu0 %v1847
    %3607 = vmatpush1.bf16.msra.mxu0 %v1846
    %3608 = vmatprep.subr.bf16.mxu0 %v1843
    %3609 = vmatpush1.bf16.msra.mxu0 %v1842
    %3610 = vmatprep.subr.bf16.mxu0 %v1839
    %3611 = vmatpush1.bf16.msra.mxu0 %v1838
    %3612 = vmatprep.subr.bf16.mxu0 %v1835
    %3613 = vmatpush1.bf16.msra.mxu0 %v1834
    %3614 = vmatprep.subr.bf16.mxu0 %v1831
    %3615 = vmatpush1.bf16.msra.mxu0 %v1830
    %3616 = vmatprep.subr.bf16.mxu0 %v1827
    %3617 = vmatpush1.bf16.msra.mxu0 %v1826
    %3618 = vmatprep.subr.bf16.mxu0 %v1823
    %3619 = vmatpush1.bf16.msra.mxu0 %v1822
    %3620 = vmatprep.subr.bf16.mxu0 %v1819
    %3621 = vmatpush1.bf16.msra.mxu0 %v1818
    %3622 = vmatprep.subr.bf16.mxu0 %v1879
    %3623 = vmatpush2.bf16.msra.mxu0 %v1878
    %3624 = vmatprep.subr.bf16.mxu0 %v1875
    %3625 = vmatpush2.bf16.msra.mxu0 %v1874
    %3626 = vmatprep.subr.bf16.mxu0 %v1871
    %3627 = vmatpush2.bf16.msra.mxu0 %v1870
    %3628 = vmatprep.subr.bf16.mxu0 %v1867
    %3629 = vmatpush2.bf16.msra.mxu0 %v1866
    %3630 = vmatprep.subr.bf16.mxu0 %v1863
    %3631 = vmatpush2.bf16.msra.mxu0 %v1862
    %3632 = vmatprep.subr.bf16.mxu0 %v1859
    %3633 = vmatpush2.bf16.msra.mxu0 %v1858
    %3634 = vmatprep.subr.bf16.mxu0 %v1855
    %3635 = vmatpush2.bf16.msra.mxu0 %v1854
    %3636 = vmatprep.subr.bf16.mxu0 %v1851
    %3637 = vmatpush2.bf16.msra.mxu0 %v1850
    %3638 = vmatprep.mubr.bf16.mxu0 %v3605
    %3639 = vmatmul.mubr.bf16.gmra.mxu0 %v3498
    %v3640 = vpop.f32.mrf.mxu0
    %v3641 = vadd.f32 %v1609, %v3640
    %v3642 = vpop.f32.mrf.mxu0
    %v3643 = vadd.f32 %v1613, %v3642
    %v3644 = vpop.f32.mrf.mxu0
    %v3645 = vpop.f32.mrf.mxu0
    %3646 = vdwg.mxu0
    %3647 = vmatprep.subr.bf16.mxu0 %v1849
    %3648 = vmatpush1.bf16.msra.mxu0 %v1848
    %3649 = vmatprep.subr.bf16.mxu0 %v1845
    %3650 = vmatpush1.bf16.msra.mxu0 %v1844
    %3651 = vmatprep.subr.bf16.mxu0 %v1841
    %3652 = vmatpush1.bf16.msra.mxu0 %v1840
    %3653 = vmatprep.subr.bf16.mxu0 %v1837
    %3654 = vmatpush1.bf16.msra.mxu0 %v1836
    %3655 = vmatprep.subr.bf16.mxu0 %v1833
    %3656 = vmatpush1.bf16.msra.mxu0 %v1832
    %3657 = vmatprep.subr.bf16.mxu0 %v1829
    %3658 = vmatpush1.bf16.msra.mxu0 %v1828
    %3659 = vmatprep.subr.bf16.mxu0 %v1825
    %3660 = vmatpush1.bf16.msra.mxu0 %v1824
    %3661 = vmatprep.subr.bf16.mxu0 %v1821
    %3662 = vmatpush1.bf16.msra.mxu0 %v1820
    %3663 = vmatprep.subr.bf16.mxu0 %v1881
    %3664 = vmatpush2.bf16.msra.mxu0 %v1880
    %3665 = vmatprep.subr.bf16.mxu0 %v1877
    %3666 = vmatpush2.bf16.msra.mxu0 %v1876
    %3667 = vmatprep.subr.bf16.mxu0 %v1873
    %3668 = vmatpush2.bf16.msra.mxu0 %v1872
    %3669 = vmatprep.subr.bf16.mxu0 %v1869
    %3670 = vmatpush2.bf16.msra.mxu0 %v1868
    %3671 = vmatprep.subr.bf16.mxu0 %v1865
    %3672 = vmatpush2.bf16.msra.mxu0 %v1864
    %3673 = vmatprep.subr.bf16.mxu0 %v1861
    %3674 = vmatpush2.bf16.msra.mxu0 %v1860
    %3675 = vmatprep.subr.bf16.mxu0 %v1857
    %3676 = vmatpush2.bf16.msra.mxu0 %v1856
    %3677 = vmatprep.subr.bf16.mxu0 %v1853
    %3678 = vmatpush2.bf16.msra.mxu0 %v1852
    %3679 = vmatprep.mubr.bf16.mxu0 %v3605
    %3680 = vmatmul.mubr.bf16.gmra.mxu0 %v3498
    %v3681 = vpop.f32.mrf.mxu0
    %v3682 = vadd.f32 %v1617, %v3681
    %v3683 = vpop.f32.mrf.mxu0
    %v3684 = vadd.f32 %v1621, %v3683
    %v3685 = vpop.f32.mrf.mxu0
    %v3686 = vpop.f32.mrf.mxu0
    %3687 = vdwg.mxu0
    %v3688 = vxor.u32 %v3641, 2147483648
    %v3689 = vxor.u32 %v3643, 2147483648
    %v3690 = vxor.u32 %v3682, 2147483648
    %v3691 = vmul.f32 %v3688, 1.442695
    %v3692 = vpow.pop %v3691
    %v3693 = vmul.f32 %v3689, 1.442695
    %v3694 = vpow.pop %v3693
    %v3695 = vmul.f32 %v3690, 1.442695
    %v3696 = vpow.pop %v3695
    %v3697 = vadd.f32 %v3692, 1.0
    %v3698 = vadd.f32 %v3694, 1.0
    %v3699 = vadd.f32 %v3696, 1.0
    %v3700 = vrcp.pop %v3697
    %v3701 = vmul.f32 1.0, %v3700
    %v3702 = vrcp.pop %v3698
    %v3703 = vmul.f32 1.0, %v3702
    %v3704 = vrcp.pop %v3699
    %v3705 = vmul.f32 1.0, %v3704
    %v3706 = vtanh.pop %v3684
    %v3707 = vmul.f32 %v3703, %v3377
    %v3708 = vmul.f32 %v3701, %v3706
    %v3709 = vadd.f32 %v3707, %v3708
    %v3710 = vtanh.pop %v3709
    %v3711 = vmul.f32 %v3705, %v3710
    %v3712 = vpack.c.bf16 %v3497, %v3497
    %v3713 = vpack.c.bf16 %v3604, %v3604
    %3714 = vmatprep.subr.bf16.mxu0 %v1175
    %3715 = vmatpush1.bf16.msra.mxu0 %v1174
    %3716 = vmatprep.subr.bf16.mxu0 %v1171
    %3717 = vmatpush1.bf16.msra.mxu0 %v1170
    %3718 = vmatprep.subr.bf16.mxu0 %v1167
    %3719 = vmatpush1.bf16.msra.mxu0 %v1166
    %3720 = vmatprep.subr.bf16.mxu0 %v1163
    %3721 = vmatpush1.bf16.msra.mxu0 %v1162
    %3722 = vmatprep.subr.bf16.mxu0 %v1159
    %3723 = vmatpush1.bf16.msra.mxu0 %v1158
    %3724 = vmatprep.subr.bf16.mxu0 %v1155
    %3725 = vmatpush1.bf16.msra.mxu0 %v1154
    %3726 = vmatprep.subr.bf16.mxu0 %v1151
    %3727 = vmatpush1.bf16.msra.mxu0 %v1150
    %3728 = vmatprep.subr.bf16.mxu0 %v1147
    %3729 = vmatpush1.bf16.msra.mxu0 %v1146
    %3730 = vmatprep.subr.bf16.mxu0 %v1207
    %3731 = vmatpush2.bf16.msra.mxu0 %v1206
    %3732 = vmatprep.subr.bf16.mxu0 %v1203
    %3733 = vmatpush2.bf16.msra.mxu0 %v1202
    %3734 = vmatprep.subr.bf16.mxu0 %v1199
    %3735 = vmatpush2.bf16.msra.mxu0 %v1198
    %3736 = vmatprep.subr.bf16.mxu0 %v1195
    %3737 = vmatpush2.bf16.msra.mxu0 %v1194
    %3738 = vmatprep.subr.bf16.mxu0 %v1191
    %3739 = vmatpush2.bf16.msra.mxu0 %v1190
    %3740 = vmatprep.subr.bf16.mxu0 %v1187
    %3741 = vmatpush2.bf16.msra.mxu0 %v1186
    %3742 = vmatprep.subr.bf16.mxu0 %v1183
    %3743 = vmatpush2.bf16.msra.mxu0 %v1182
    %3744 = vmatprep.subr.bf16.mxu0 %v1179
    %3745 = vmatpush2.bf16.msra.mxu0 %v1178
    %3746 = vmatprep.mubr.bf16.mxu0 %v3713
    %3747 = vmatmul.mubr.bf16.gmra.mxu0 %v3712
    %v3748 = vpop.f32.mrf.mxu0
    %v3749 = vadd.f32 %v937, %v3748
    %v3750 = vpop.f32.mrf.mxu0
    %v3751 = vadd.f32 %v941, %v3750
    %v3752 = vpop.f32.mrf.mxu0
    %v3753 = vpop.f32.mrf.mxu0
    %3754 = vdwg.mxu0
    %3755 = vmatprep.subr.bf16.mxu0 %v1177
    %3756 = vmatpush1.bf16.msra.mxu0 %v1176
    %3757 = vmatprep.subr.bf16.mxu0 %v1173
    %3758 = vmatpush1.bf16.msra.mxu0 %v1172
    %3759 = vmatprep.subr.bf16.mxu0 %v1169
    %3760 = vmatpush1.bf16.msra.mxu0 %v1168
    %3761 = vmatprep.subr.bf16.mxu0 %v1165
    %3762 = vmatpush1.bf16.msra.mxu0 %v1164
    %3763 = vmatprep.subr.bf16.mxu0 %v1161
    %3764 = vmatpush1.bf16.msra.mxu0 %v1160
    %3765 = vmatprep.subr.bf16.mxu0 %v1157
    %3766 = vmatpush1.bf16.msra.mxu0 %v1156
    %3767 = vmatprep.subr.bf16.mxu0 %v1153
    %3768 = vmatpush1.bf16.msra.mxu0 %v1152
    %3769 = vmatprep.subr.bf16.mxu0 %v1149
    %3770 = vmatpush1.bf16.msra.mxu0 %v1148
    %3771 = vmatprep.subr.bf16.mxu0 %v1209
    %3772 = vmatpush2.bf16.msra.mxu0 %v1208
    %3773 = vmatprep.subr.bf16.mxu0 %v1205
    %3774 = vmatpush2.bf16.msra.mxu0 %v1204
    %3775 = vmatprep.subr.bf16.mxu0 %v1201
    %3776 = vmatpush2.bf16.msra.mxu0 %v1200
    %3777 = vmatprep.subr.bf16.mxu0 %v1197
    %3778 = vmatpush2.bf16.msra.mxu0 %v1196
    %3779 = vmatprep.subr.bf16.mxu0 %v1193
    %3780 = vmatpush2.bf16.msra.mxu0 %v1192
    %3781 = vmatprep.subr.bf16.mxu0 %v1189
    %3782 = vmatpush2.bf16.msra.mxu0 %v1188
    %3783 = vmatprep.subr.bf16.mxu0 %v1185
    %3784 = vmatpush2.bf16.msra.mxu0 %v1184
    %3785 = vmatprep.subr.bf16.mxu0 %v1181
    %3786 = vmatpush2.bf16.msra.mxu0 %v1180
    %3787 = vmatprep.mubr.bf16.mxu0 %v3713
    %3788 = vmatmul.mubr.bf16.gmra.mxu0 %v3712
    %v3789 = vpop.f32.mrf.mxu0
    %v3790 = vadd.f32 %v945, %v3789
    %v3791 = vpop.f32.mrf.mxu0
    %v3792 = vadd.f32 %v949, %v3791
    %v3793 = vpop.f32.mrf.mxu0
    %v3794 = vpop.f32.mrf.mxu0
    %3795 = vdwg.mxu0
    %v3796 = vxor.u32 %v3749, 2147483648
    %v3797 = vxor.u32 %v3751, 2147483648
    %v3798 = vxor.u32 %v3790, 2147483648
    %v3799 = vmul.f32 %v3796, 1.442695
    %v3800 = vpow.pop %v3799
    %v3801 = vmul.f32 %v3797, 1.442695
    %v3802 = vpow.pop %v3801
    %v3803 = vmul.f32 %v3798, 1.442695
    %v3804 = vpow.pop %v3803
    %v3805 = vadd.f32 %v3800, 1.0
    %v3806 = vadd.f32 %v3802, 1.0
    %v3807 = vadd.f32 %v3804, 1.0
    %v3808 = vrcp.pop %v3805
    %v3809 = vmul.f32 1.0, %v3808
    %v3810 = vrcp.pop %v3806
    %v3811 = vmul.f32 1.0, %v3810
    %v3812 = vrcp.pop %v3807
    %v3813 = vmul.f32 1.0, %v3812
    %v3814 = vtanh.pop %v3792
    %v3815 = vmul.f32 %v3811, %v3602
    %v3816 = vmul.f32 %v3809, %v3814
    %v3817 = vadd.f32 %v3815, %v3816
    %v3818 = vtanh.pop %v3817
    %v3819 = vmul.f32 %v3813, %v3818
    %v3820 = vpack.c.bf16 %v3711, %v3711
    %3821 = vmatprep.subr.bf16.mxu0 %v1847
    %3822 = vmatpush1.bf16.msra.mxu0 %v1846
    %3823 = vmatprep.subr.bf16.mxu0 %v1843
    %3824 = vmatpush1.bf16.msra.mxu0 %v1842
    %3825 = vmatprep.subr.bf16.mxu0 %v1839
    %3826 = vmatpush1.bf16.msra.mxu0 %v1838
    %3827 = vmatprep.subr.bf16.mxu0 %v1835
    %3828 = vmatpush1.bf16.msra.mxu0 %v1834
    %3829 = vmatprep.subr.bf16.mxu0 %v1831
    %3830 = vmatpush1.bf16.msra.mxu0 %v1830
    %3831 = vmatprep.subr.bf16.mxu0 %v1827
    %3832 = vmatpush1.bf16.msra.mxu0 %v1826
    %3833 = vmatprep.subr.bf16.mxu0 %v1823
    %3834 = vmatpush1.bf16.msra.mxu0 %v1822
    %3835 = vmatprep.subr.bf16.mxu0 %v1819
    %3836 = vmatpush1.bf16.msra.mxu0 %v1818
    %3837 = vmatprep.subr.bf16.mxu0 %v1879
    %3838 = vmatpush2.bf16.msra.mxu0 %v1878
    %3839 = vmatprep.subr.bf16.mxu0 %v1875
    %3840 = vmatpush2.bf16.msra.mxu0 %v1874
    %3841 = vmatprep.subr.bf16.mxu0 %v1871
    %3842 = vmatpush2.bf16.msra.mxu0 %v1870
    %3843 = vmatprep.subr.bf16.mxu0 %v1867
    %3844 = vmatpush2.bf16.msra.mxu0 %v1866
    %3845 = vmatprep.subr.bf16.mxu0 %v1863
    %3846 = vmatpush2.bf16.msra.mxu0 %v1862
    %3847 = vmatprep.subr.bf16.mxu0 %v1859
    %3848 = vmatpush2.bf16.msra.mxu0 %v1858
    %3849 = vmatprep.subr.bf16.mxu0 %v1855
    %3850 = vmatpush2.bf16.msra.mxu0 %v1854
    %3851 = vmatprep.subr.bf16.mxu0 %v1851
    %3852 = vmatpush2.bf16.msra.mxu0 %v1850
    %3853 = vmatprep.mubr.bf16.mxu0 %v3820
    %3854 = vmatmul.mubr.bf16.gmra.mxu0 %v3713
    %v3855 = vpop.f32.mrf.mxu0
    %v3856 = vadd.f32 %v1609, %v3855
    %v3857 = vpop.f32.mrf.mxu0
    %v3858 = vadd.f32 %v1613, %v3857
    %v3859 = vpop.f32.mrf.mxu0
    %v3860 = vpop.f32.mrf.mxu0
    %3861 = vdwg.mxu0
    %3862 = vmatprep.subr.bf16.mxu0 %v1849
    %3863 = vmatpush1.bf16.msra.mxu0 %v1848
    %3864 = vmatprep.subr.bf16.mxu0 %v1845
    %3865 = vmatpush1.bf16.msra.mxu0 %v1844
    %3866 = vmatprep.subr.bf16.mxu0 %v1841
    %3867 = vmatpush1.bf16.msra.mxu0 %v1840
    %3868 = vmatprep.subr.bf16.mxu0 %v1837
    %3869 = vmatpush1.bf16.msra.mxu0 %v1836
    %3870 = vmatprep.subr.bf16.mxu0 %v1833
    %3871 = vmatpush1.bf16.msra.mxu0 %v1832
    %3872 = vmatprep.subr.bf16.mxu0 %v1829
    %3873 = vmatpush1.bf16.msra.mxu0 %v1828
    %3874 = vmatprep.subr.bf16.mxu0 %v1825
    %3875 = vmatpush1.bf16.msra.mxu0 %v1824
    %3876 = vmatprep.subr.bf16.mxu0 %v1821
    %3877 = vmatpush1.bf16.msra.mxu0 %v1820
    %3878 = vmatprep.subr.bf16.mxu0 %v1881
    %3879 = vmatpush2.bf16.msra.mxu0 %v1880
    %3880 = vmatprep.subr.bf16.mxu0 %v1877
    %3881 = vmatpush2.bf16.msra.mxu0 %v1876
    %3882 = vmatprep.subr.bf16.mxu0 %v1873
    %3883 = vmatpush2.bf16.msra.mxu0 %v1872
    %3884 = vmatprep.subr.bf16.mxu0 %v1869
    %3885 = vmatpush2.bf16.msra.mxu0 %v1868
    %3886 = vmatprep.subr.bf16.mxu0 %v1865
    %3887 = vmatpush2.bf16.msra.mxu0 %v1864
    %3888 = vmatprep.subr.bf16.mxu0 %v1861
    %3889 = vmatpush2.bf16.msra.mxu0 %v1860
    %3890 = vmatprep.subr.bf16.mxu0 %v1857
    %3891 = vmatpush2.bf16.msra.mxu0 %v1856
    %3892 = vmatprep.subr.bf16.mxu0 %v1853
    %3893 = vmatpush2.bf16.msra.mxu0 %v1852
    %3894 = vmatprep.mubr.bf16.mxu0 %v3820
    %3895 = vmatmul.mubr.bf16.gmra.mxu0 %v3713
    %v3896 = vpop.f32.mrf.mxu0
    %v3897 = vadd.f32 %v1617, %v3896
    %v3898 = vpop.f32.mrf.mxu0
    %v3899 = vadd.f32 %v1621, %v3898
    %v3900 = vpop.f32.mrf.mxu0
    %v3901 = vpop.f32.mrf.mxu0
    %3902 = vdwg.mxu0
    %v3903 = vxor.u32 %v3856, 2147483648
    %v3904 = vxor.u32 %v3858, 2147483648
    %v3905 = vxor.u32 %v3897, 2147483648
    %v3906 = vmul.f32 %v3903, 1.442695
    %v3907 = vpow.pop %v3906
    %v3908 = vmul.f32 %v3904, 1.442695
    %v3909 = vpow.pop %v3908
    %v3910 = vmul.f32 %v3905, 1.442695
    %v3911 = vpow.pop %v3910
    %v3912 = vadd.f32 %v3907, 1.0
    %v3913 = vadd.f32 %v3909, 1.0
    %v3914 = vadd.f32 %v3911, 1.0
    %v3915 = vrcp.pop %v3912
    %v3916 = vmul.f32 1.0, %v3915
    %v3917 = vrcp.pop %v3913
    %v3918 = vmul.f32 1.0, %v3917
    %v3919 = vrcp.pop %v3914
    %v3920 = vmul.f32 1.0, %v3919
    %v3921 = vtanh.pop %v3899
    %v3922 = vmul.f32 %v3918, %v3709
    %v3923 = vmul.f32 %v3916, %v3921
    %v3924 = vadd.f32 %v3922, %v3923
    %v3925 = vtanh.pop %v3924
    %v3926 = vmul.f32 %v3920, %v3925
    %v3927 = vpack.c.bf16 %v3819, %v3819
    %v3928 = vpack.c.bf16 %v3926, %v3926
    %3929 = vmatprep.subr.bf16.mxu0 %v1847
    %3930 = vmatpush1.bf16.msra.mxu0 %v1846
    %3931 = vmatprep.subr.bf16.mxu0 %v1843
    %3932 = vmatpush1.bf16.msra.mxu0 %v1842
    %3933 = vmatprep.subr.bf16.mxu0 %v1839
    %3934 = vmatpush1.bf16.msra.mxu0 %v1838
    %3935 = vmatprep.subr.bf16.mxu0 %v1835
    %3936 = vmatpush1.bf16.msra.mxu0 %v1834
    %3937 = vmatprep.subr.bf16.mxu0 %v1831
    %3938 = vmatpush1.bf16.msra.mxu0 %v1830
    %3939 = vmatprep.subr.bf16.mxu0 %v1827
    %3940 = vmatpush1.bf16.msra.mxu0 %v1826
    %3941 = vmatprep.subr.bf16.mxu0 %v1823
    %3942 = vmatpush1.bf16.msra.mxu0 %v1822
    %3943 = vmatprep.subr.bf16.mxu0 %v1819
    %3944 = vmatpush1.bf16.msra.mxu0 %v1818
    %3945 = vmatprep.subr.bf16.mxu0 %v1879
    %3946 = vmatpush2.bf16.msra.mxu0 %v1878
    %3947 = vmatprep.subr.bf16.mxu0 %v1875
    %3948 = vmatpush2.bf16.msra.mxu0 %v1874
    %3949 = vmatprep.subr.bf16.mxu0 %v1871
    %3950 = vmatpush2.bf16.msra.mxu0 %v1870
    %3951 = vmatprep.subr.bf16.mxu0 %v1867
    %3952 = vmatpush2.bf16.msra.mxu0 %v1866
    %3953 = vmatprep.subr.bf16.mxu0 %v1863
    %3954 = vmatpush2.bf16.msra.mxu0 %v1862
    %3955 = vmatprep.subr.bf16.mxu0 %v1859
    %3956 = vmatpush2.bf16.msra.mxu0 %v1858
    %3957 = vmatprep.subr.bf16.mxu0 %v1855
    %3958 = vmatpush2.bf16.msra.mxu0 %v1854
    %3959 = vmatprep.subr.bf16.mxu0 %v1851
    %3960 = vmatpush2.bf16.msra.mxu0 %v1850
    %3961 = vmatprep.mubr.bf16.mxu0 %v3928
    %3962 = vmatmul.mubr.bf16.gmra.mxu0 %v3927
    %v3963 = vpop.f32.mrf.mxu0
    %v3964 = vadd.f32 %v1609, %v3963
    %v3965 = vpop.f32.mrf.mxu0
    %v3966 = vadd.f32 %v1613, %v3965
    %v3967 = vpop.f32.mrf.mxu0
    %v3968 = vpop.f32.mrf.mxu0
    %3969 = vdwg.mxu0
    %3970 = vmatprep.subr.bf16.mxu0 %v1849
    %3971 = vmatpush1.bf16.msra.mxu0 %v1848
    %3972 = vmatprep.subr.bf16.mxu0 %v1845
    %3973 = vmatpush1.bf16.msra.mxu0 %v1844
    %3974 = vmatprep.subr.bf16.mxu0 %v1841
    %3975 = vmatpush1.bf16.msra.mxu0 %v1840
    %3976 = vmatprep.subr.bf16.mxu0 %v1837
    %3977 = vmatpush1.bf16.msra.mxu0 %v1836
    %3978 = vmatprep.subr.bf16.mxu0 %v1833
    %3979 = vmatpush1.bf16.msra.mxu0 %v1832
    %3980 = vmatprep.subr.bf16.mxu0 %v1829
    %3981 = vmatpush1.bf16.msra.mxu0 %v1828
    %3982 = vmatprep.subr.bf16.mxu0 %v1825
    %3983 = vmatpush1.bf16.msra.mxu0 %v1824
    %3984 = vmatprep.subr.bf16.mxu0 %v1821
    %3985 = vmatpush1.bf16.msra.mxu0 %v1820
    %3986 = vmatprep.subr.bf16.mxu0 %v1881
    %3987 = vmatpush2.bf16.msra.mxu0 %v1880
    %3988 = vmatprep.subr.bf16.mxu0 %v1877
    %3989 = vmatpush2.bf16.msra.mxu0 %v1876
    %3990 = vmatprep.subr.bf16.mxu0 %v1873
    %3991 = vmatpush2.bf16.msra.mxu0 %v1872
    %3992 = vmatprep.subr.bf16.mxu0 %v1869
    %3993 = vmatpush2.bf16.msra.mxu0 %v1868
    %3994 = vmatprep.subr.bf16.mxu0 %v1865
    %3995 = vmatpush2.bf16.msra.mxu0 %v1864
    %3996 = vmatprep.subr.bf16.mxu0 %v1861
    %3997 = vmatpush2.bf16.msra.mxu0 %v1860
    %3998 = vmatprep.subr.bf16.mxu0 %v1857
    %3999 = vmatpush2.bf16.msra.mxu0 %v1856
    %4000 = vmatprep.subr.bf16.mxu0 %v1853
    %4001 = vmatpush2.bf16.msra.mxu0 %v1852
    %4002 = vmatprep.mubr.bf16.mxu0 %v3928
    %4003 = vmatmul.mubr.bf16.gmra.mxu0 %v3927
    %v4004 = vpop.f32.mrf.mxu0
    %v4005 = vadd.f32 %v1617, %v4004
    %v4006 = vpop.f32.mrf.mxu0
    %v4007 = vadd.f32 %v1621, %v4006
    %v4008 = vpop.f32.mrf.mxu0
    %v4009 = vpop.f32.mrf.mxu0
    %4010 = vdwg.mxu0
    %v4011 = vxor.u32 %v3964, 2147483648
    %v4012 = vxor.u32 %v3966, 2147483648
    %v4013 = vxor.u32 %v4005, 2147483648
    %v4014 = vmul.f32 %v4011, 1.442695
    %v4015 = vpow.pop %v4014
    %v4016 = vmul.f32 %v4012, 1.442695
    %v4017 = vpow.pop %v4016
    %v4018 = vmul.f32 %v4013, 1.442695
    %v4019 = vpow.pop %v4018
    %v4020 = vadd.f32 %v4015, 1.0
    %v4021 = vadd.f32 %v4017, 1.0
    %v4022 = vadd.f32 %v4019, 1.0
    %v4023 = vrcp.pop %v4020
    %v4024 = vmul.f32 1.0, %v4023
    %v4025 = vrcp.pop %v4021
    %v4026 = vmul.f32 1.0, %v4025
    %v4027 = vrcp.pop %v4022
    %v4028 = vmul.f32 1.0, %v4027
    %v4029 = vtanh.pop %v4007
    %v4030 = vmul.f32 %v4026, %v3924
    %v4031 = vmul.f32 %v4024, %v4029
    %v4032 = vadd.f32 %v4030, %v4031
    %v4033 = vtanh.pop %v4032
    %v4034 = vmul.f32 %v4028, %v4033
    %4035 = vst [vmem:[#allocation11] sm:$0xff] %v4034
    // Predicated region
    $region50: #{tpu_custom_call.1} parent=1 // pred_check
      _
    $region51: #{tpu_custom_call.1} parent=1 // pred_check_branch
      %4037 = sbr.rel (0) target = $region53
    $region52: #{tpu_custom_call.1} parent=1 // pred_region
      %s4039 = ssub.s32 128, 128
      %4040 = vsyncadd [#allocation5], %s4039
      %s4042 = sshll.u32 [#allocation11], 4
      %s4043 = int_to_ptr.vmem [resolvable:$true] %s4042
      %4045 = dma.vmem_to_hbm [thread:$0]  %s4043, 128, %s8, [#allocation5]
    $region53: #{tpu_custom_call.1} parent=1 // pred_fallthru
      _
    // Predicated region
    $region54: #{tpu_custom_call.1} parent=1 // pred_check
      _
    $region55: #{tpu_custom_call.1} parent=1 // pred_check_branch
      %4047 = sbr.rel (0) target = $region57
    $region56: #{tpu_custom_call.1} parent=1 // pred_region
      %4048 = dma.done [#allocation5], 128
    $region57: #{tpu_custom_call.1} parent=1 // pred_fallthru
      _
    %4049 = vsyncpa [#allocation4], 1
    %4050 = vsyncpa [#allocation7], 1
    %4051 = vsyncpa [#allocation10], 1
    %4052 = vsyncpa [#allocation5], 1

</llo_original>
